<compile_context>
chip_gen: v7x
topology: tpu7x:2x2x1
jax: 0.10.0
libtpu: 0.0.40
codegen_flags: <defaults>
</compile_context>

<pallas_src>
import jax
import jax.numpy as jnp
from jax.experimental import pallas as pl
from jax.experimental.pallas import tpu as pltpu


# ----------------------------- Pallas kernel -----------------------------

def _conv_matmul_bias_relu_kernel(p_ref, w_ref, b_ref, o_ref):
    # (M, K) @ (K, Cout) + bias(1, Cout) -> ReLU.  All operands are full VMEM blocks,
    # f32 in / f32 accumulate / f32 out.
    acc = jnp.dot(p_ref[...], w_ref[...], preferred_element_type=jnp.float32)
    o_ref[...] = jnp.maximum(acc + b_ref[...], 0.0).astype(o_ref.dtype)


# ------------------------------ XLA-side glue ------------------------------

def _im2col(x_nhwc, k=4, stride=2):
    """(N, H, W, C) -> (N*Ho*Wo, k*k*C) patches; K ordered (kh, kw, cin), cin fastest.

    16 static strided slices + concat + reshape: XLA fuses this into one small fusion.
    """
    N, H, W, C = x_nhwc.shape
    Ho = (H - k) // stride + 1
    Wo = (W - k) // stride + 1
    cols = []
    for kh in range(k):
        for kw in range(k):
            cols.append(
                x_nhwc[:, kh:kh + stride * (Ho - 1) + 1:stride,
                       kw:kw + stride * (Wo - 1) + 1:stride, :])
    patches = jnp.concatenate(cols, axis=-1)          # (N, Ho, Wo, k*k*C)
    return patches.reshape(N * Ho * Wo, k * k * C), (N, Ho, Wo)


def conv2d_relu_pallas(x_nhwc, w_mat, b_mat):
    """One Conv2d(kernel=4, stride=2, valid) + ReLU layer as a single Pallas matmul kernel.

    x_nhwc: (N, H, W, Cin) f32
    w_mat : (K, Cout) f32, K = 4*4*Cin ordered (kh, kw, cin)   [pre-packed at init]
    b_mat : (1, Cout) f32
    Returns (N, Ho, Wo, Cout) f32.
    """
    K, Cout = w_mat.shape
    patches, (N, Ho, Wo) = _im2col(x_nhwc, 4, 2)
    M = patches.shape[0]

    cost = pl.CostEstimate(
        flops=2 * M * K * Cout,
        transcendentals=0,
        bytes_accessed=4 * (M * K + K * Cout + Cout + M * Cout))

    out = pl.pallas_call(
        _conv_matmul_bias_relu_kernel,
        out_shape=jax.ShapeDtypeStruct((M, Cout), jnp.float32),
        grid=(1,),
        in_specs=[
            pl.BlockSpec((M, K), lambda i: (0, 0)),       # patches (full block)
            pl.BlockSpec((K, Cout), lambda i: (0, 0)),    # weights (full block)
            pl.BlockSpec((1, Cout), lambda i: (0, 0)),    # bias
        ],
        out_specs=pl.BlockSpec((M, Cout), lambda i: (0, 0)),
        compiler_params=pltpu.CompilerParams(vmem_limit_bytes=32 * 1024 * 1024),
        cost_estimate=cost,
    )(patches, w_mat, b_mat)

    return out.reshape(N, Ho, Wo, Cout)


# ------------------------- parameter init (PyTorch-equivalent) -------------------------

def xavier_uniform(key, shape, gain):
    # PyTorch xavier_uniform_ on Conv2d weight (Cout, Cin, KH, KW):
    # fan_in = Cin*KH*KW, fan_out = Cout*KH*KW
    cout, cin, kh, kw = shape
    fan_in = cin * kh * kw
    fan_out = cout * kh * kw
    bound = gain * (6.0 / (fan_in + fan_out)) ** 0.5
    return jax.random.uniform(key, shape, jnp.float32, -bound, bound)


def pack_conv_params(w, b):
    # (Cout, Cin, 4, 4) PyTorch layout -> (K, Cout) with K ordered (kh, kw, cin) to match the
    # _im2col column order; bias -> (1, Cout).  Done once at init so the per-call wrapper has
    # zero weight-layout ops.
    cout, cin, kh, kw = w.shape
    w_mat = jnp.transpose(w, (2, 3, 1, 0)).reshape(kh * kw * cin, cout)
    return w_mat, b.reshape(1, cout).astype(jnp.float32)


def init_encoder_params(key, num_channels):
    # Mirrors EncoderBase.__init__/_weights_init: xavier_uniform(gain=sqrt(2)), bias=0.1
    gain = 2.0 ** 0.5  # nn.init.calculate_gain('relu')
    chans = [num_channels, 32, 64, 128, 256]
    keys = jax.random.split(key, 4)
    params = []
    for i in range(4):
        w = xavier_uniform(keys[i], (chans[i + 1], chans[i], 4, 4), gain)
        b = jnp.full((chans[i + 1],), 0.1, jnp.float32)
        params.append(pack_conv_params(w, b))
    return params


def encoder_forward(params, x_nchw):
    # NCHW (PyTorch) -> NHWC (kernel layout)
    x = jnp.transpose(x_nchw, (0, 2, 3, 1)).astype(jnp.float32)
    for w_mat, b_mat in params:
        x = conv2d_relu_pallas(x, w_mat, b_mat)
    # Flatten exactly like PyTorch's x.view(N, -1) on NCHW: channel-major order.
    x = jnp.transpose(x, (0, 3, 1, 2))
    return x.reshape(x.shape[0], -1)


if __name__ == "__main__":
    key = jax.random.PRNGKey(0)
    k_param, k_x = jax.random.split(key)

    num_channels = 4
    # 64x64 spatial is the smallest "natural" size giving the module's
    # 2*2*256 = 1024 flattened output (64 -> 31 -> 14 -> 6 -> 2).
    x = jax.random.normal(k_x, (2, num_channels, 64, 64), dtype=jnp.float32)

    params = init_encoder_params(k_param, num_channels)

    out = jax.jit(encoder_forward)(params, x)
    out = jax.block_until_ready(out)

    assert out.shape == (2, 2 * 2 * 256), out.shape
    assert out.dtype == jnp.float32
    assert bool(jnp.all(out >= 0.0))  # ReLU output
    print("KERNEL_OK")
</pallas_src>

<mosaic_0001>
module attributes {stable_mosaic.version = 11 : i64} {
  func.func @_conv_matmul_bias_relu_kernel(%arg0: i32, %arg1: memref<1922x64xf32, #tpu.memory_space<vmem>>, %arg2: memref<64x32xf32, #tpu.memory_space<vmem>>, %arg3: memref<1x32xf32, #tpu.memory_space<vmem>>, %arg4: memref<1922x32xf32, #tpu.memory_space<vmem>>) attributes {dimension_semantics = [#tpu.dimension_semantics<arbitrary>], iteration_bounds = array<i64: 1>, scalar_prefetch = 0 : i64, scratch_operands = 0 : i64, tpu.core_type = #tpu.core_type<tc>, window_params = [{pipeline_mode = #tpu.pipeline_mode<synchronous>, transform_indices = @transform_0, window_bounds = array<i64: 1922, 64>}, {pipeline_mode = #tpu.pipeline_mode<synchronous>, transform_indices = @transform_1, window_bounds = array<i64: 64, 32>}, {pipeline_mode = #tpu.pipeline_mode<synchronous>, transform_indices = @transform_2, window_bounds = array<i64: 1, 32>}, {pipeline_mode = #tpu.pipeline_mode<synchronous>, transform_indices = @transform_3, window_bounds = array<i64: 1922, 32>}]} {
    %c0 = arith.constant 0 : index
    %c0_0 = arith.constant 0 : index
    %0 = vector.load %arg1[%c0, %c0_0] : memref<1922x64xf32, #tpu.memory_space<vmem>>, vector<1922x64xf32>
    %c0_1 = arith.constant 0 : index
    %c0_2 = arith.constant 0 : index
    %1 = vector.load %arg2[%c0_1, %c0_2] : memref<64x32xf32, #tpu.memory_space<vmem>>, vector<64x32xf32>
    %cst = arith.constant dense<0.000000e+00> : vector<1922x32xf32>
    %2 = tpu.matmul %0, %1, %cst {dimension_numbers = #tpu.dot_dimension_numbers<[1], [0], [0], [1], [0, 0, 1, 1], [], []>} : vector<1922x64xf32>, vector<64x32xf32>, vector<1922x32xf32> -> vector<1922x32xf32>
    %c0_3 = arith.constant 0 : index
    %c0_4 = arith.constant 0 : index
    %3 = vector.load %arg3[%c0_3, %c0_4] : memref<1x32xf32, #tpu.memory_space<vmem>>, vector<1x32xf32>
    %4 = vector.broadcast %3 : vector<1x32xf32> to vector<1922x32xf32>
    %5 = arith.addf %2, %4 : vector<1922x32xf32>
    %cst_5 = arith.constant 0.000000e+00 : f32
    %6 = vector.broadcast %cst_5 : f32 to vector<1922x32xf32>
    %7 = arith.maximumf %5, %6 : vector<1922x32xf32>
    %c0_6 = arith.constant 0 : index
    %c0_7 = arith.constant 0 : index
    %8 = vector.load %arg4[%c0_6, %c0_7] : memref<1922x32xf32, #tpu.memory_space<vmem>>, vector<1922x32xf32>
    tpu.vector_store %arg4[%c0_6, %c0_7], %7 {strides = array<i32>} : memref<1922x32xf32, #tpu.memory_space<vmem>>, vector<1922x32xf32>,
    return
  }
  func.func @transform_0(%arg0: i32) -> (i32, i32) {
    %c0_i32 = arith.constant 0 : i32
    %c0_i32_0 = arith.constant 0 : i32
    %c0_i32_1 = arith.constant 0 : i32
    return %c0_i32, %c0_i32_0 : i32, i32
  }
  func.func @transform_1(%arg0: i32) -> (i32, i32) {
    %c0_i32 = arith.constant 0 : i32
    %c0_i32_0 = arith.constant 0 : i32
    %c0_i32_1 = arith.constant 0 : i32
    return %c0_i32, %c0_i32_0 : i32, i32
  }
  func.func @transform_2(%arg0: i32) -> (i32, i32) {
    %c0_i32 = arith.constant 0 : i32
    %c0_i32_0 = arith.constant 0 : i32
    %c0_i32_1 = arith.constant 0 : i32
    return %c0_i32, %c0_i32_0 : i32, i32
  }
  func.func @transform_3(%arg0: i32) -> (i32, i32) {
    %c0_i32 = arith.constant 0 : i32
    %c0_i32_0 = arith.constant 0 : i32
    %c0_i32_1 = arith.constant 0 : i32
    return %c0_i32, %c0_i32_0 : i32, i32
  }
}

module attributes {stable_mosaic.version = 11 : i64} {
  func.func @_conv_matmul_bias_relu_kernel(%arg0: i32, %arg1: memref<392x512xf32, #tpu.memory_space<vmem>>, %arg2: memref<512x64xf32, #tpu.memory_space<vmem>>, %arg3: memref<1x64xf32, #tpu.memory_space<vmem>>, %arg4: memref<392x64xf32, #tpu.memory_space<vmem>>) attributes {dimension_semantics = [#tpu.dimension_semantics<arbitrary>], iteration_bounds = array<i64: 1>, scalar_prefetch = 0 : i64, scratch_operands = 0 : i64, tpu.core_type = #tpu.core_type<tc>, window_params = [{pipeline_mode = #tpu.pipeline_mode<synchronous>, transform_indices = @transform_0, window_bounds = array<i64: 392, 512>}, {pipeline_mode = #tpu.pipeline_mode<synchronous>, transform_indices = @transform_1, window_bounds = array<i64: 512, 64>}, {pipeline_mode = #tpu.pipeline_mode<synchronous>, transform_indices = @transform_2, window_bounds = array<i64: 1, 64>}, {pipeline_mode = #tpu.pipeline_mode<synchronous>, transform_indices = @transform_3, window_bounds = array<i64: 392, 64>}]} {
    %c0 = arith.constant 0 : index
    %c0_0 = arith.constant 0 : index
    %0 = vector.load %arg1[%c0, %c0_0] : memref<392x512xf32, #tpu.memory_space<vmem>>, vector<392x512xf32>
    %c0_1 = arith.constant 0 : index
    %c0_2 = arith.constant 0 : index
    %1 = vector.load %arg2[%c0_1, %c0_2] : memref<512x64xf32, #tpu.memory_space<vmem>>, vector<512x64xf32>
    %cst = arith.constant dense<0.000000e+00> : vector<392x64xf32>
    %2 = tpu.matmul %0, %1, %cst {dimension_numbers = #tpu.dot_dimension_numbers<[1], [0], [0], [1], [0, 0, 1, 1], [], []>} : vector<392x512xf32>, vector<512x64xf32>, vector<392x64xf32> -> vector<392x64xf32>
    %c0_3 = arith.constant 0 : index
    %c0_4 = arith.constant 0 : index
    %3 = vector.load %arg3[%c0_3, %c0_4] : memref<1x64xf32, #tpu.memory_space<vmem>>, vector<1x64xf32>
    %4 = vector.broadcast %3 : vector<1x64xf32> to vector<392x64xf32>
    %5 = arith.addf %2, %4 : vector<392x64xf32>
    %cst_5 = arith.constant 0.000000e+00 : f32
    %6 = vector.broadcast %cst_5 : f32 to vector<392x64xf32>
    %7 = arith.maximumf %5, %6 : vector<392x64xf32>
    %c0_6 = arith.constant 0 : index
    %c0_7 = arith.constant 0 : index
    %8 = vector.load %arg4[%c0_6, %c0_7] : memref<392x64xf32, #tpu.memory_space<vmem>>, vector<392x64xf32>
    tpu.vector_store %arg4[%c0_6, %c0_7], %7 {strides = array<i32>} : memref<392x64xf32, #tpu.memory_space<vmem>>, vector<392x64xf32>,
    return
  }
  func.func @transform_0(%arg0: i32) -> (i32, i32) {
    %c0_i32 = arith.constant 0 : i32
    %c0_i32_0 = arith.constant 0 : i32
    %c0_i32_1 = arith.constant 0 : i32
    return %c0_i32, %c0_i32_0 : i32, i32
  }
  func.func @transform_1(%arg0: i32) -> (i32, i32) {
    %c0_i32 = arith.constant 0 : i32
    %c0_i32_0 = arith.constant 0 : i32
    %c0_i32_1 = arith.constant 0 : i32
    return %c0_i32, %c0_i32_0 : i32, i32
  }
  func.func @transform_2(%arg0: i32) -> (i32, i32) {
    %c0_i32 = arith.constant 0 : i32
    %c0_i32_0 = arith.constant 0 : i32
    %c0_i32_1 = arith.constant 0 : i32
    return %c0_i32, %c0_i32_0 : i32, i32
  }
  func.func @transform_3(%arg0: i32) -> (i32, i32) {
    %c0_i32 = arith.constant 0 : i32
    %c0_i32_0 = arith.constant 0 : i32
    %c0_i32_1 = arith.constant 0 : i32
    return %c0_i32, %c0_i32_0 : i32, i32
  }
}

module attributes {stable_mosaic.version = 11 : i64} {
  func.func @_conv_matmul_bias_relu_kernel(%arg0: i32, %arg1: memref<72x1024xf32, #tpu.memory_space<vmem>>, %arg2: memref<1024x128xf32, #tpu.memory_space<vmem>>, %arg3: memref<1x128xf32, #tpu.memory_space<vmem>>, %arg4: memref<72x128xf32, #tpu.memory_space<vmem>>) attributes {dimension_semantics = [#tpu.dimension_semantics<arbitrary>], iteration_bounds = array<i64: 1>, scalar_prefetch = 0 : i64, scratch_operands = 0 : i64, tpu.core_type = #tpu.core_type<tc>, window_params = [{pipeline_mode = #tpu.pipeline_mode<synchronous>, transform_indices = @transform_0, window_bounds = array<i64: 72, 1024>}, {pipeline_mode = #tpu.pipeline_mode<synchronous>, transform_indices = @transform_1, window_bounds = array<i64: 1024, 128>}, {pipeline_mode = #tpu.pipeline_mode<synchronous>, transform_indices = @transform_2, window_bounds = array<i64: 1, 128>}, {pipeline_mode = #tpu.pipeline_mode<synchronous>, transform_indices = @transform_3, window_bounds = array<i64: 72, 128>}]} {
    %c0 = arith.constant 0 : index
    %c0_0 = arith.constant 0 : index
    %0 = vector.load %arg1[%c0, %c0_0] : memref<72x1024xf32, #tpu.memory_space<vmem>>, vector<72x1024xf32>
    %c0_1 = arith.constant 0 : index
    %c0_2 = arith.constant 0 : index
    %1 = vector.load %arg2[%c0_1, %c0_2] : memref<1024x128xf32, #tpu.memory_space<vmem>>, vector<1024x128xf32>
    %cst = arith.constant dense<0.000000e+00> : vector<72x128xf32>
    %2 = tpu.matmul %0, %1, %cst {dimension_numbers = #tpu.dot_dimension_numbers<[1], [0], [0], [1], [0, 0, 1, 1], [], []>} : vector<72x1024xf32>, vector<1024x128xf32>, vector<72x128xf32> -> vector<72x128xf32>
    %c0_3 = arith.constant 0 : index
    %c0_4 = arith.constant 0 : index
    %3 = vector.load %arg3[%c0_3, %c0_4] : memref<1x128xf32, #tpu.memory_space<vmem>>, vector<1x128xf32>
    %4 = vector.broadcast %3 : vector<1x128xf32> to vector<72x128xf32>
    %5 = arith.addf %2, %4 : vector<72x128xf32>
    %cst_5 = arith.constant 0.000000e+00 : f32
    %6 = vector.broadcast %cst_5 : f32 to vector<72x128xf32>
    %7 = arith.maximumf %5, %6 : vector<72x128xf32>
    %c0_6 = arith.constant 0 : index
    %c0_7 = arith.constant 0 : index
    %8 = vector.load %arg4[%c0_6, %c0_7] : memref<72x128xf32, #tpu.memory_space<vmem>>, vector<72x128xf32>
    tpu.vector_store %arg4[%c0_6, %c0_7], %7 {strides = array<i32>} : memref<72x128xf32, #tpu.memory_space<vmem>>, vector<72x128xf32>,
    return
  }
  func.func @transform_0(%arg0: i32) -> (i32, i32) {
    %c0_i32 = arith.constant 0 : i32
    %c0_i32_0 = arith.constant 0 : i32
    %c0_i32_1 = arith.constant 0 : i32
    return %c0_i32, %c0_i32_0 : i32, i32
  }
  func.func @transform_1(%arg0: i32) -> (i32, i32) {
    %c0_i32 = arith.constant 0 : i32
    %c0_i32_0 = arith.constant 0 : i32
    %c0_i32_1 = arith.constant 0 : i32
    return %c0_i32, %c0_i32_0 : i32, i32
  }
  func.func @transform_2(%arg0: i32) -> (i32, i32) {
    %c0_i32 = arith.constant 0 : i32
    %c0_i32_0 = arith.constant 0 : i32
    %c0_i32_1 = arith.constant 0 : i32
    return %c0_i32, %c0_i32_0 : i32, i32
  }
  func.func @transform_3(%arg0: i32) -> (i32, i32) {
    %c0_i32 = arith.constant 0 : i32
    %c0_i32_0 = arith.constant 0 : i32
    %c0_i32_1 = arith.constant 0 : i32
    return %c0_i32, %c0_i32_0 : i32, i32
  }
}

module attributes {stable_mosaic.version = 11 : i64} {
  func.func @_conv_matmul_bias_relu_kernel(%arg0: i32, %arg1: memref<8x2048xf32, #tpu.memory_space<vmem>>, %arg2: memref<2048x256xf32, #tpu.memory_space<vmem>>, %arg3: memref<1x256xf32, #tpu.memory_space<vmem>>, %arg4: memref<8x256xf32, #tpu.memory_space<vmem>>) attributes {dimension_semantics = [#tpu.dimension_semantics<arbitrary>], iteration_bounds = array<i64: 1>, scalar_prefetch = 0 : i64, scratch_operands = 0 : i64, tpu.core_type = #tpu.core_type<tc>, window_params = [{pipeline_mode = #tpu.pipeline_mode<synchronous>, transform_indices = @transform_0, window_bounds = array<i64: 8, 2048>}, {pipeline_mode = #tpu.pipeline_mode<synchronous>, transform_indices = @transform_1, window_bounds = array<i64: 2048, 256>}, {pipeline_mode = #tpu.pipeline_mode<synchronous>, transform_indices = @transform_2, window_bounds = array<i64: 1, 256>}, {pipeline_mode = #tpu.pipeline_mode<synchronous>, transform_indices = @transform_3, window_bounds = array<i64: 8, 256>}]} {
    %c0 = arith.constant 0 : index
    %c0_0 = arith.constant 0 : index
    %0 = vector.load %arg1[%c0, %c0_0] : memref<8x2048xf32, #tpu.memory_space<vmem>>, vector<8x2048xf32>
    %c0_1 = arith.constant 0 : index
    %c0_2 = arith.constant 0 : index
    %1 = vector.load %arg2[%c0_1, %c0_2] : memref<2048x256xf32, #tpu.memory_space<vmem>>, vector<2048x256xf32>
    %cst = arith.constant dense<0.000000e+00> : vector<8x256xf32>
    %2 = tpu.matmul %0, %1, %cst {dimension_numbers = #tpu.dot_dimension_numbers<[1], [0], [0], [1], [0, 0, 1, 1], [], []>} : vector<8x2048xf32>, vector<2048x256xf32>, vector<8x256xf32> -> vector<8x256xf32>
    %c0_3 = arith.constant 0 : index
    %c0_4 = arith.constant 0 : index
    %3 = vector.load %arg3[%c0_3, %c0_4] : memref<1x256xf32, #tpu.memory_space<vmem>>, vector<1x256xf32>
    %4 = vector.broadcast %3 : vector<1x256xf32> to vector<8x256xf32>
    %5 = arith.addf %2, %4 : vector<8x256xf32>
    %cst_5 = arith.constant 0.000000e+00 : f32
    %6 = vector.broadcast %cst_5 : f32 to vector<8x256xf32>
    %7 = arith.maximumf %5, %6 : vector<8x256xf32>
    %c0_6 = arith.constant 0 : index
    %c0_7 = arith.constant 0 : index
    %8 = vector.load %arg4[%c0_6, %c0_7] : memref<8x256xf32, #tpu.memory_space<vmem>>, vector<8x256xf32>
    tpu.vector_store %arg4[%c0_6, %c0_7], %7 {strides = array<i32>} : memref<8x256xf32, #tpu.memory_space<vmem>>, vector<8x256xf32>,
    return
  }
  func.func @transform_0(%arg0: i32) -> (i32, i32) {
    %c0_i32 = arith.constant 0 : i32
    %c0_i32_0 = arith.constant 0 : i32
    %c0_i32_1 = arith.constant 0 : i32
    return %c0_i32, %c0_i32_0 : i32, i32
  }
  func.func @transform_1(%arg0: i32) -> (i32, i32) {
    %c0_i32 = arith.constant 0 : i32
    %c0_i32_0 = arith.constant 0 : i32
    %c0_i32_1 = arith.constant 0 : i32
    return %c0_i32, %c0_i32_0 : i32, i32
  }
  func.func @transform_2(%arg0: i32) -> (i32, i32) {
    %c0_i32 = arith.constant 0 : i32
    %c0_i32_0 = arith.constant 0 : i32
    %c0_i32_1 = arith.constant 0 : i32
    return %c0_i32, %c0_i32_0 : i32, i32
  }
  func.func @transform_3(%arg0: i32) -> (i32, i32) {
    %c0_i32 = arith.constant 0 : i32
    %c0_i32_0 = arith.constant 0 : i32
    %c0_i32_1 = arith.constant 0 : i32
    return %c0_i32, %c0_i32_0 : i32, i32
  }
}

</mosaic_0001>

<llo_original>
// kernel: encoder_forward.4
$region0: #{encoder_forward.4}
  #allocation0 [shape = 'u32[]', space=smem, size = 0x4, offset = 0x4, fixed_abs, tag = 'smem constant byte address 0x4 - core index']
  #allocation1 [shape = 'u32[144,128]{1,0:T(1,128)}', space=vmem, size = 0x12000, scoped, tag = 'internal scratch']
  %s0 = inlined_call_operand.vmem [shape: f32[1922,64], index: 0, kind: input, shape index: {}]
  %s1 = inlined_call_operand.vmem [shape: f32[64,32], index: 1, kind: input, shape index: {}]
  %s2 = inlined_call_operand.vmem [shape: f32[1,32], index: 2, kind: input, shape index: {}]
  %s3 = inlined_call_operand.vmem [shape: f32[1922,32], index: 3, kind: output, shape index: {}]
  %s4 = sld [smem:[#allocation0]]
  $region22: #{encoder_forward.4} parent=0
    _
  %s6 = ssub.s32 1, %s4
  %s7 = scalar_select 0, %s6, %s4
  // Predicated region
  $region2: #{encoder_forward.4} parent=0 // pred_check
    _
  $region3: #{encoder_forward.4} parent=0 // pred_check_branch
    %9 = sbr.rel (0) target = $region5
  $region4: #{encoder_forward.4} parent=0 // pred_region
    _
  $region5: #{encoder_forward.4} parent=0 // pred_fallthru
    _
  // Predicated region
  $region6: #{encoder_forward.4} parent=0 // pred_check
    _
  $region7: #{encoder_forward.4} parent=0 // pred_check_branch
    %11 = sbr.rel (0) target = $region9
  $region8: #{encoder_forward.4} parent=0 // pred_region
    _
  $region9: #{encoder_forward.4} parent=0 // pred_fallthru
    _
  // Predicated region
  $region10: #{encoder_forward.4} parent=0 // pred_check
    _
  $region11: #{encoder_forward.4} parent=0 // pred_check_branch
    %13 = sbr.rel (0) target = $region13
  $region12: #{encoder_forward.4} parent=0 // pred_region
    _
  $region13: #{encoder_forward.4} parent=0 // pred_fallthru
    _
  %v14 = vld [vmem:[%s0] sm:$0xff]
  %v15 = vld [vmem:[%s0 + $0x8] sm:$0xff]
  %v16 = vld [vmem:[%s0 + $0x10] sm:$0xff]
  %v17 = vld [vmem:[%s0 + $0x18] sm:$0xff]
  %v18 = vld [vmem:[%s0 + $0x20] sm:$0xff]
  %v19 = vld [vmem:[%s0 + $0x28] sm:$0xff]
  %v20 = vld [vmem:[%s0 + $0x30] sm:$0xff]
  %v21 = vld [vmem:[%s0 + $0x38] sm:$0xff]
  %v22 = vld [vmem:[%s0 + $0x40] sm:$0xff]
  %v23 = vld [vmem:[%s0 + $0x48] sm:$0xff]
  %v24 = vld [vmem:[%s0 + $0x50] sm:$0xff]
  %v25 = vld [vmem:[%s0 + $0x58] sm:$0xff]
  %v26 = vld [vmem:[%s0 + $0x60] sm:$0xff]
  %v27 = vld [vmem:[%s0 + $0x68] sm:$0xff]
  %v28 = vld [vmem:[%s0 + $0x70] sm:$0xff]
  %v29 = vld [vmem:[%s0 + $0x78] sm:$0xff]
  %v30 = vld [vmem:[%s0 + $0x80] sm:$0xff]
  %v31 = vld [vmem:[%s0 + $0x88] sm:$0xff]
  %v32 = vld [vmem:[%s0 + $0x90] sm:$0xff]
  %v33 = vld [vmem:[%s0 + $0x98] sm:$0xff]
  %v34 = vld [vmem:[%s0 + $0xa0] sm:$0xff]
  %v35 = vld [vmem:[%s0 + $0xa8] sm:$0xff]
  %v36 = vld [vmem:[%s0 + $0xb0] sm:$0xff]
  %v37 = vld [vmem:[%s0 + $0xb8] sm:$0xff]
  %v38 = vld [vmem:[%s0 + $0xc0] sm:$0xff]
  %v39 = vld [vmem:[%s0 + $0xc8] sm:$0xff]
  %v40 = vld [vmem:[%s0 + $0xd0] sm:$0xff]
  %v41 = vld [vmem:[%s0 + $0xd8] sm:$0xff]
  %v42 = vld [vmem:[%s0 + $0xe0] sm:$0xff]
  %v43 = vld [vmem:[%s0 + $0xe8] sm:$0xff]
  %v44 = vld [vmem:[%s0 + $0xf0] sm:$0xff]
  %v45 = vld [vmem:[%s0 + $0xf8] sm:$0xff]
  %v46 = vld [vmem:[%s0 + $0x100] sm:$0xff]
  %v47 = vld [vmem:[%s0 + $0x108] sm:$0xff]
  %v48 = vld [vmem:[%s0 + $0x110] sm:$0xff]
  %v49 = vld [vmem:[%s0 + $0x118] sm:$0xff]
  %v50 = vld [vmem:[%s0 + $0x120] sm:$0xff]
  %v51 = vld [vmem:[%s0 + $0x128] sm:$0xff]
  %v52 = vld [vmem:[%s0 + $0x130] sm:$0xff]
  %v53 = vld [vmem:[%s0 + $0x138] sm:$0xff]
  %v54 = vld [vmem:[%s0 + $0x140] sm:$0xff]
  %v55 = vld [vmem:[%s0 + $0x148] sm:$0xff]
  %v56 = vld [vmem:[%s0 + $0x150] sm:$0xff]
  %v57 = vld [vmem:[%s0 + $0x158] sm:$0xff]
  %v58 = vld [vmem:[%s0 + $0x160] sm:$0xff]
  %v59 = vld [vmem:[%s0 + $0x168] sm:$0xff]
  %v60 = vld [vmem:[%s0 + $0x170] sm:$0xff]
  %v61 = vld [vmem:[%s0 + $0x178] sm:$0xff]
  %v62 = vld [vmem:[%s0 + $0x180] sm:$0xff]
  %v63 = vld [vmem:[%s0 + $0x188] sm:$0xff]
  %v64 = vld [vmem:[%s0 + $0x190] sm:$0xff]
  %v65 = vld [vmem:[%s0 + $0x198] sm:$0xff]
  %v66 = vld [vmem:[%s0 + $0x1a0] sm:$0xff]
  %v67 = vld [vmem:[%s0 + $0x1a8] sm:$0xff]
  %v68 = vld [vmem:[%s0 + $0x1b0] sm:$0xff]
  %v69 = vld [vmem:[%s0 + $0x1b8] sm:$0xff]
  %v70 = vld [vmem:[%s0 + $0x1c0] sm:$0xff]
  %v71 = vld [vmem:[%s0 + $0x1c8] sm:$0xff]
  %v72 = vld [vmem:[%s0 + $0x1d0] sm:$0xff]
  %v73 = vld [vmem:[%s0 + $0x1d8] sm:$0xff]
  %v74 = vld [vmem:[%s0 + $0x1e0] sm:$0xff]
  %v75 = vld [vmem:[%s0 + $0x1e8] sm:$0xff]
  %v76 = vld [vmem:[%s0 + $0x1f0] sm:$0xff]
  %v77 = vld [vmem:[%s0 + $0x1f8] sm:$0xff]
  %v78 = vld [vmem:[%s0 + $0x200] sm:$0xff]
  %v79 = vld [vmem:[%s0 + $0x208] sm:$0xff]
  %v80 = vld [vmem:[%s0 + $0x210] sm:$0xff]
  %v81 = vld [vmem:[%s0 + $0x218] sm:$0xff]
  %v82 = vld [vmem:[%s0 + $0x220] sm:$0xff]
  %v83 = vld [vmem:[%s0 + $0x228] sm:$0xff]
  %v84 = vld [vmem:[%s0 + $0x230] sm:$0xff]
  %v85 = vld [vmem:[%s0 + $0x238] sm:$0xff]
  %v86 = vld [vmem:[%s0 + $0x240] sm:$0xff]
  %v87 = vld [vmem:[%s0 + $0x248] sm:$0xff]
  %v88 = vld [vmem:[%s0 + $0x250] sm:$0xff]
  %v89 = vld [vmem:[%s0 + $0x258] sm:$0xff]
  %v90 = vld [vmem:[%s0 + $0x260] sm:$0xff]
  %v91 = vld [vmem:[%s0 + $0x268] sm:$0xff]
  %v92 = vld [vmem:[%s0 + $0x270] sm:$0xff]
  %v93 = vld [vmem:[%s0 + $0x278] sm:$0xff]
  %v94 = vld [vmem:[%s0 + $0x280] sm:$0xff]
  %v95 = vld [vmem:[%s0 + $0x288] sm:$0xff]
  %v96 = vld [vmem:[%s0 + $0x290] sm:$0xff]
  %v97 = vld [vmem:[%s0 + $0x298] sm:$0xff]
  %v98 = vld [vmem:[%s0 + $0x2a0] sm:$0xff]
  %v99 = vld [vmem:[%s0 + $0x2a8] sm:$0xff]
  %v100 = vld [vmem:[%s0 + $0x2b0] sm:$0xff]
  %v101 = vld [vmem:[%s0 + $0x2b8] sm:$0xff]
  %v102 = vld [vmem:[%s0 + $0x2c0] sm:$0xff]
  %v103 = vld [vmem:[%s0 + $0x2c8] sm:$0xff]
  %v104 = vld [vmem:[%s0 + $0x2d0] sm:$0xff]
  %v105 = vld [vmem:[%s0 + $0x2d8] sm:$0xff]
  %v106 = vld [vmem:[%s0 + $0x2e0] sm:$0xff]
  %v107 = vld [vmem:[%s0 + $0x2e8] sm:$0xff]
  %v108 = vld [vmem:[%s0 + $0x2f0] sm:$0xff]
  %v109 = vld [vmem:[%s0 + $0x2f8] sm:$0xff]
  %v110 = vld [vmem:[%s0 + $0x300] sm:$0xff]
  %v111 = vld [vmem:[%s0 + $0x308] sm:$0xff]
  %v112 = vld [vmem:[%s0 + $0x310] sm:$0xff]
  %v113 = vld [vmem:[%s0 + $0x318] sm:$0xff]
  %v114 = vld [vmem:[%s0 + $0x320] sm:$0xff]
  %v115 = vld [vmem:[%s0 + $0x328] sm:$0xff]
  %v116 = vld [vmem:[%s0 + $0x330] sm:$0xff]
  %v117 = vld [vmem:[%s0 + $0x338] sm:$0xff]
  %v118 = vld [vmem:[%s0 + $0x340] sm:$0xff]
  %v119 = vld [vmem:[%s0 + $0x348] sm:$0xff]
  %v120 = vld [vmem:[%s0 + $0x350] sm:$0xff]
  %v121 = vld [vmem:[%s0 + $0x358] sm:$0xff]
  %v122 = vld [vmem:[%s0 + $0x360] sm:$0xff]
  %v123 = vld [vmem:[%s0 + $0x368] sm:$0xff]
  %v124 = vld [vmem:[%s0 + $0x370] sm:$0xff]
  %v125 = vld [vmem:[%s0 + $0x378] sm:$0xff]
  %v126 = vld [vmem:[%s0 + $0x380] sm:$0xff]
  %v127 = vld [vmem:[%s0 + $0x388] sm:$0xff]
  %v128 = vld [vmem:[%s0 + $0x390] sm:$0xff]
  %v129 = vld [vmem:[%s0 + $0x398] sm:$0xff]
  %v130 = vld [vmem:[%s0 + $0x3a0] sm:$0xff]
  %v131 = vld [vmem:[%s0 + $0x3a8] sm:$0xff]
  %v132 = vld [vmem:[%s0 + $0x3b0] sm:$0xff]
  %v133 = vld [vmem:[%s0 + $0x3b8] sm:$0xff]
  %v134 = vld [vmem:[%s0 + $0x3c0] sm:$0xff]
  %v135 = vld [vmem:[%s0 + $0x3c8] sm:$0xff]
  %v136 = vld [vmem:[%s0 + $0x3d0] sm:$0xff]
  %v137 = vld [vmem:[%s0 + $0x3d8] sm:$0xff]
  %v138 = vld [vmem:[%s0 + $0x3e0] sm:$0xff]
  %v139 = vld [vmem:[%s0 + $0x3e8] sm:$0xff]
  %v140 = vld [vmem:[%s0 + $0x3f0] sm:$0xff]
  %v141 = vld [vmem:[%s0 + $0x3f8] sm:$0xff]
  %v142 = vld [vmem:[%s0 + $0x400] sm:$0xff]
  %v143 = vld [vmem:[%s0 + $0x408] sm:$0xff]
  %v144 = vld [vmem:[%s0 + $0x410] sm:$0xff]
  %v145 = vld [vmem:[%s0 + $0x418] sm:$0xff]
  %v146 = vld [vmem:[%s0 + $0x420] sm:$0xff]
  %v147 = vld [vmem:[%s0 + $0x428] sm:$0xff]
  %v148 = vld [vmem:[%s0 + $0x430] sm:$0xff]
  %v149 = vld [vmem:[%s0 + $0x438] sm:$0xff]
  %v150 = vld [vmem:[%s0 + $0x440] sm:$0xff]
  %v151 = vld [vmem:[%s0 + $0x448] sm:$0xff]
  %v152 = vld [vmem:[%s0 + $0x450] sm:$0xff]
  %v153 = vld [vmem:[%s0 + $0x458] sm:$0xff]
  %v154 = vld [vmem:[%s0 + $0x460] sm:$0xff]
  %v155 = vld [vmem:[%s0 + $0x468] sm:$0xff]
  %v156 = vld [vmem:[%s0 + $0x470] sm:$0xff]
  %v157 = vld [vmem:[%s0 + $0x478] sm:$0xff]
  %v158 = vld [vmem:[%s0 + $0x480] sm:$0xff]
  %v159 = vld [vmem:[%s0 + $0x488] sm:$0xff]
  %v160 = vld [vmem:[%s0 + $0x490] sm:$0xff]
  %v161 = vld [vmem:[%s0 + $0x498] sm:$0xff]
  %v162 = vld [vmem:[%s0 + $0x4a0] sm:$0xff]
  %v163 = vld [vmem:[%s0 + $0x4a8] sm:$0xff]
  %v164 = vld [vmem:[%s0 + $0x4b0] sm:$0xff]
  %v165 = vld [vmem:[%s0 + $0x4b8] sm:$0xff]
  %v166 = vld [vmem:[%s0 + $0x4c0] sm:$0xff]
  %v167 = vld [vmem:[%s0 + $0x4c8] sm:$0xff]
  %v168 = vld [vmem:[%s0 + $0x4d0] sm:$0xff]
  %v169 = vld [vmem:[%s0 + $0x4d8] sm:$0xff]
  %v170 = vld [vmem:[%s0 + $0x4e0] sm:$0xff]
  %v171 = vld [vmem:[%s0 + $0x4e8] sm:$0xff]
  %v172 = vld [vmem:[%s0 + $0x4f0] sm:$0xff]
  %v173 = vld [vmem:[%s0 + $0x4f8] sm:$0xff]
  %v174 = vld [vmem:[%s0 + $0x500] sm:$0xff]
  %v175 = vld [vmem:[%s0 + $0x508] sm:$0xff]
  %v176 = vld [vmem:[%s0 + $0x510] sm:$0xff]
  %v177 = vld [vmem:[%s0 + $0x518] sm:$0xff]
  %v178 = vld [vmem:[%s0 + $0x520] sm:$0xff]
  %v179 = vld [vmem:[%s0 + $0x528] sm:$0xff]
  %v180 = vld [vmem:[%s0 + $0x530] sm:$0xff]
  %v181 = vld [vmem:[%s0 + $0x538] sm:$0xff]
  %v182 = vld [vmem:[%s0 + $0x540] sm:$0xff]
  %v183 = vld [vmem:[%s0 + $0x548] sm:$0xff]
  %v184 = vld [vmem:[%s0 + $0x550] sm:$0xff]
  %v185 = vld [vmem:[%s0 + $0x558] sm:$0xff]
  %v186 = vld [vmem:[%s0 + $0x560] sm:$0xff]
  %v187 = vld [vmem:[%s0 + $0x568] sm:$0xff]
  %v188 = vld [vmem:[%s0 + $0x570] sm:$0xff]
  %v189 = vld [vmem:[%s0 + $0x578] sm:$0xff]
  %v190 = vld [vmem:[%s0 + $0x580] sm:$0xff]
  %v191 = vld [vmem:[%s0 + $0x588] sm:$0xff]
  %v192 = vld [vmem:[%s0 + $0x590] sm:$0xff]
  %v193 = vld [vmem:[%s0 + $0x598] sm:$0xff]
  %v194 = vld [vmem:[%s0 + $0x5a0] sm:$0xff]
  %v195 = vld [vmem:[%s0 + $0x5a8] sm:$0xff]
  %v196 = vld [vmem:[%s0 + $0x5b0] sm:$0xff]
  %v197 = vld [vmem:[%s0 + $0x5b8] sm:$0xff]
  %v198 = vld [vmem:[%s0 + $0x5c0] sm:$0xff]
  %v199 = vld [vmem:[%s0 + $0x5c8] sm:$0xff]
  %v200 = vld [vmem:[%s0 + $0x5d0] sm:$0xff]
  %v201 = vld [vmem:[%s0 + $0x5d8] sm:$0xff]
  %v202 = vld [vmem:[%s0 + $0x5e0] sm:$0xff]
  %v203 = vld [vmem:[%s0 + $0x5e8] sm:$0xff]
  %v204 = vld [vmem:[%s0 + $0x5f0] sm:$0xff]
  %v205 = vld [vmem:[%s0 + $0x5f8] sm:$0xff]
  %v206 = vld [vmem:[%s0 + $0x600] sm:$0xff]
  %v207 = vld [vmem:[%s0 + $0x608] sm:$0xff]
  %v208 = vld [vmem:[%s0 + $0x610] sm:$0xff]
  %v209 = vld [vmem:[%s0 + $0x618] sm:$0xff]
  %v210 = vld [vmem:[%s0 + $0x620] sm:$0xff]
  %v211 = vld [vmem:[%s0 + $0x628] sm:$0xff]
  %v212 = vld [vmem:[%s0 + $0x630] sm:$0xff]
  %v213 = vld [vmem:[%s0 + $0x638] sm:$0xff]
  %v214 = vld [vmem:[%s0 + $0x640] sm:$0xff]
  %v215 = vld [vmem:[%s0 + $0x648] sm:$0xff]
  %v216 = vld [vmem:[%s0 + $0x650] sm:$0xff]
  %v217 = vld [vmem:[%s0 + $0x658] sm:$0xff]
  %v218 = vld [vmem:[%s0 + $0x660] sm:$0xff]
  %v219 = vld [vmem:[%s0 + $0x668] sm:$0xff]
  %v220 = vld [vmem:[%s0 + $0x670] sm:$0xff]
  %v221 = vld [vmem:[%s0 + $0x678] sm:$0xff]
  %v222 = vld [vmem:[%s0 + $0x680] sm:$0xff]
  %v223 = vld [vmem:[%s0 + $0x688] sm:$0xff]
  %v224 = vld [vmem:[%s0 + $0x690] sm:$0xff]
  %v225 = vld [vmem:[%s0 + $0x698] sm:$0xff]
  %v226 = vld [vmem:[%s0 + $0x6a0] sm:$0xff]
  %v227 = vld [vmem:[%s0 + $0x6a8] sm:$0xff]
  %v228 = vld [vmem:[%s0 + $0x6b0] sm:$0xff]
  %v229 = vld [vmem:[%s0 + $0x6b8] sm:$0xff]
  %v230 = vld [vmem:[%s0 + $0x6c0] sm:$0xff]
  %v231 = vld [vmem:[%s0 + $0x6c8] sm:$0xff]
  %v232 = vld [vmem:[%s0 + $0x6d0] sm:$0xff]
  %v233 = vld [vmem:[%s0 + $0x6d8] sm:$0xff]
  %v234 = vld [vmem:[%s0 + $0x6e0] sm:$0xff]
  %v235 = vld [vmem:[%s0 + $0x6e8] sm:$0xff]
  %v236 = vld [vmem:[%s0 + $0x6f0] sm:$0xff]
  %v237 = vld [vmem:[%s0 + $0x6f8] sm:$0xff]
  %v238 = vld [vmem:[%s0 + $0x700] sm:$0xff]
  %v239 = vld [vmem:[%s0 + $0x708] sm:$0xff]
  %v240 = vld [vmem:[%s0 + $0x710] sm:$0xff]
  %v241 = vld [vmem:[%s0 + $0x718] sm:$0xff]
  %v242 = vld [vmem:[%s0 + $0x720] sm:$0xff]
  %v243 = vld [vmem:[%s0 + $0x728] sm:$0xff]
  %v244 = vld [vmem:[%s0 + $0x730] sm:$0xff]
  %v245 = vld [vmem:[%s0 + $0x738] sm:$0xff]
  %v246 = vld [vmem:[%s0 + $0x740] sm:$0xff]
  %v247 = vld [vmem:[%s0 + $0x748] sm:$0xff]
  %v248 = vld [vmem:[%s0 + $0x750] sm:$0xff]
  %v249 = vld [vmem:[%s0 + $0x758] sm:$0xff]
  %v250 = vld [vmem:[%s0 + $0x760] sm:$0xff]
  %v251 = vld [vmem:[%s0 + $0x768] sm:$0xff]
  %v252 = vld [vmem:[%s0 + $0x770] sm:$0xff]
  %v253 = vld [vmem:[%s0 + $0x778] sm:$0xff]
  %v254 = vld [vmem:[%s0 + $0x780] sm:$0x3]
  %v255 = vld [vmem:[%s1] sm:$0xff]
  %v256 = vld [vmem:[%s1 + $0x8] sm:$0xff]
  %v257 = vld [vmem:[%s1 + $0x10] sm:$0xff]
  %v258 = vld [vmem:[%s1 + $0x18] sm:$0xff]
  %v259 = vld [vmem:[%s1 + $0x20] sm:$0xff]
  %v260 = vld [vmem:[%s1 + $0x28] sm:$0xff]
  %v261 = vld [vmem:[%s1 + $0x30] sm:$0xff]
  %v262 = vld [vmem:[%s1 + $0x38] sm:$0xff]
  %v263 = vld [vmem:[%s2] sm:$0x1]
  %v265 = vlaneseq
  %v266 = vshrl.u32 %v265, 7
  %v267 = vsub.s32 0, %v266
  %v268 = vrot.slane %v263, %v267
  %vm270 = vcmask 523264
  %v272 = vsel %vm270, %v14, 0
  %v275 = vsel %vm270, %v15, 0
  %v278 = vsel %vm270, %v16, 0
  %v281 = vsel %vm270, %v17, 0
  %v284 = vsel %vm270, %v18, 0
  %v287 = vsel %vm270, %v19, 0
  %v290 = vsel %vm270, %v20, 0
  %v293 = vsel %vm270, %v21, 0
  %v296 = vsel %vm270, %v22, 0
  %v299 = vsel %vm270, %v23, 0
  %v302 = vsel %vm270, %v24, 0
  %v305 = vsel %vm270, %v25, 0
  %v308 = vsel %vm270, %v26, 0
  %v311 = vsel %vm270, %v27, 0
  %v314 = vsel %vm270, %v28, 0
  %v317 = vsel %vm270, %v29, 0
  %v320 = vsel %vm270, %v30, 0
  %v323 = vsel %vm270, %v31, 0
  %v326 = vsel %vm270, %v32, 0
  %v329 = vsel %vm270, %v33, 0
  %v332 = vsel %vm270, %v34, 0
  %v335 = vsel %vm270, %v35, 0
  %v338 = vsel %vm270, %v36, 0
  %v341 = vsel %vm270, %v37, 0
  %v344 = vsel %vm270, %v38, 0
  %v347 = vsel %vm270, %v39, 0
  %v350 = vsel %vm270, %v40, 0
  %v353 = vsel %vm270, %v41, 0
  %v356 = vsel %vm270, %v42, 0
  %v359 = vsel %vm270, %v43, 0
  %v362 = vsel %vm270, %v44, 0
  %v365 = vsel %vm270, %v45, 0
  %v368 = vsel %vm270, %v46, 0
  %v371 = vsel %vm270, %v47, 0
  %v374 = vsel %vm270, %v48, 0
  %v377 = vsel %vm270, %v49, 0
  %v380 = vsel %vm270, %v50, 0
  %v383 = vsel %vm270, %v51, 0
  %v386 = vsel %vm270, %v52, 0
  %v389 = vsel %vm270, %v53, 0
  %v392 = vsel %vm270, %v54, 0
  %v395 = vsel %vm270, %v55, 0
  %v398 = vsel %vm270, %v56, 0
  %v401 = vsel %vm270, %v57, 0
  %v404 = vsel %vm270, %v58, 0
  %v407 = vsel %vm270, %v59, 0
  %v410 = vsel %vm270, %v60, 0
  %v413 = vsel %vm270, %v61, 0
  %v416 = vsel %vm270, %v62, 0
  %v419 = vsel %vm270, %v63, 0
  %v422 = vsel %vm270, %v64, 0
  %v425 = vsel %vm270, %v65, 0
  %v428 = vsel %vm270, %v66, 0
  %v431 = vsel %vm270, %v67, 0
  %v434 = vsel %vm270, %v68, 0
  %v437 = vsel %vm270, %v69, 0
  %v440 = vsel %vm270, %v70, 0
  %v443 = vsel %vm270, %v71, 0
  %v446 = vsel %vm270, %v72, 0
  %v449 = vsel %vm270, %v73, 0
  %v452 = vsel %vm270, %v74, 0
  %v455 = vsel %vm270, %v75, 0
  %v458 = vsel %vm270, %v76, 0
  %v461 = vsel %vm270, %v77, 0
  %v464 = vsel %vm270, %v78, 0
  %v467 = vsel %vm270, %v79, 0
  %v470 = vsel %vm270, %v80, 0
  %v473 = vsel %vm270, %v81, 0
  %v476 = vsel %vm270, %v82, 0
  %v479 = vsel %vm270, %v83, 0
  %v482 = vsel %vm270, %v84, 0
  %v485 = vsel %vm270, %v85, 0
  %v488 = vsel %vm270, %v86, 0
  %v491 = vsel %vm270, %v87, 0
  %v494 = vsel %vm270, %v88, 0
  %v497 = vsel %vm270, %v89, 0
  %v500 = vsel %vm270, %v90, 0
  %v503 = vsel %vm270, %v91, 0
  %v506 = vsel %vm270, %v92, 0
  %v509 = vsel %vm270, %v93, 0
  %v512 = vsel %vm270, %v94, 0
  %v515 = vsel %vm270, %v95, 0
  %v518 = vsel %vm270, %v96, 0
  %v521 = vsel %vm270, %v97, 0
  %v524 = vsel %vm270, %v98, 0
  %v527 = vsel %vm270, %v99, 0
  %v530 = vsel %vm270, %v100, 0
  %v533 = vsel %vm270, %v101, 0
  %v536 = vsel %vm270, %v102, 0
  %v539 = vsel %vm270, %v103, 0
  %v542 = vsel %vm270, %v104, 0
  %v545 = vsel %vm270, %v105, 0
  %v548 = vsel %vm270, %v106, 0
  %v551 = vsel %vm270, %v107, 0
  %v554 = vsel %vm270, %v108, 0
  %v557 = vsel %vm270, %v109, 0
  %v560 = vsel %vm270, %v110, 0
  %v563 = vsel %vm270, %v111, 0
  %v566 = vsel %vm270, %v112, 0
  %v569 = vsel %vm270, %v113, 0
  %v572 = vsel %vm270, %v114, 0
  %v575 = vsel %vm270, %v115, 0
  %v578 = vsel %vm270, %v116, 0
  %v581 = vsel %vm270, %v117, 0
  %v584 = vsel %vm270, %v118, 0
  %v587 = vsel %vm270, %v119, 0
  %v590 = vsel %vm270, %v120, 0
  %v593 = vsel %vm270, %v121, 0
  %v596 = vsel %vm270, %v122, 0
  %v599 = vsel %vm270, %v123, 0
  %v602 = vsel %vm270, %v124, 0
  %v605 = vsel %vm270, %v125, 0
  %v608 = vsel %vm270, %v126, 0
  %v611 = vsel %vm270, %v127, 0
  %v614 = vsel %vm270, %v128, 0
  %v617 = vsel %vm270, %v129, 0
  %v620 = vsel %vm270, %v130, 0
  %v623 = vsel %vm270, %v131, 0
  %v626 = vsel %vm270, %v132, 0
  %v629 = vsel %vm270, %v133, 0
  %v632 = vsel %vm270, %v134, 0
  %v635 = vsel %vm270, %v135, 0
  %v638 = vsel %vm270, %v136, 0
  %v641 = vsel %vm270, %v137, 0
  %v644 = vsel %vm270, %v138, 0
  %v647 = vsel %vm270, %v139, 0
  %v650 = vsel %vm270, %v140, 0
  %v653 = vsel %vm270, %v141, 0
  %v656 = vsel %vm270, %v142, 0
  %v659 = vsel %vm270, %v143, 0
  %v662 = vsel %vm270, %v144, 0
  %v665 = vsel %vm270, %v145, 0
  %v668 = vsel %vm270, %v146, 0
  %v671 = vsel %vm270, %v147, 0
  %v674 = vsel %vm270, %v148, 0
  %v677 = vsel %vm270, %v149, 0
  %v680 = vsel %vm270, %v150, 0
  %v683 = vsel %vm270, %v151, 0
  %v686 = vsel %vm270, %v152, 0
  %v689 = vsel %vm270, %v153, 0
  %v692 = vsel %vm270, %v154, 0
  %v695 = vsel %vm270, %v155, 0
  %v698 = vsel %vm270, %v156, 0
  %v701 = vsel %vm270, %v157, 0
  %v704 = vsel %vm270, %v158, 0
  %v707 = vsel %vm270, %v159, 0
  %v710 = vsel %vm270, %v160, 0
  %v713 = vsel %vm270, %v161, 0
  %v716 = vsel %vm270, %v162, 0
  %v719 = vsel %vm270, %v163, 0
  %v722 = vsel %vm270, %v164, 0
  %v725 = vsel %vm270, %v165, 0
  %v728 = vsel %vm270, %v166, 0
  %v731 = vsel %vm270, %v167, 0
  %v734 = vsel %vm270, %v168, 0
  %v737 = vsel %vm270, %v169, 0
  %v740 = vsel %vm270, %v170, 0
  %v743 = vsel %vm270, %v171, 0
  %v746 = vsel %vm270, %v172, 0
  %v749 = vsel %vm270, %v173, 0
  %v752 = vsel %vm270, %v174, 0
  %v755 = vsel %vm270, %v175, 0
  %v758 = vsel %vm270, %v176, 0
  %v761 = vsel %vm270, %v177, 0
  %v764 = vsel %vm270, %v178, 0
  %v767 = vsel %vm270, %v179, 0
  %v770 = vsel %vm270, %v180, 0
  %v773 = vsel %vm270, %v181, 0
  %v776 = vsel %vm270, %v182, 0
  %v779 = vsel %vm270, %v183, 0
  %v782 = vsel %vm270, %v184, 0
  %v785 = vsel %vm270, %v185, 0
  %v788 = vsel %vm270, %v186, 0
  %v791 = vsel %vm270, %v187, 0
  %v794 = vsel %vm270, %v188, 0
  %v797 = vsel %vm270, %v189, 0
  %v800 = vsel %vm270, %v190, 0
  %v803 = vsel %vm270, %v191, 0
  %v806 = vsel %vm270, %v192, 0
  %v809 = vsel %vm270, %v193, 0
  %v812 = vsel %vm270, %v194, 0
  %v815 = vsel %vm270, %v195, 0
  %v818 = vsel %vm270, %v196, 0
  %v821 = vsel %vm270, %v197, 0
  %v824 = vsel %vm270, %v198, 0
  %v827 = vsel %vm270, %v199, 0
  %v830 = vsel %vm270, %v200, 0
  %v833 = vsel %vm270, %v201, 0
  %v836 = vsel %vm270, %v202, 0
  %v839 = vsel %vm270, %v203, 0
  %v842 = vsel %vm270, %v204, 0
  %v845 = vsel %vm270, %v205, 0
  %v848 = vsel %vm270, %v206, 0
  %v851 = vsel %vm270, %v207, 0
  %v854 = vsel %vm270, %v208, 0
  %v857 = vsel %vm270, %v209, 0
  %v860 = vsel %vm270, %v210, 0
  %v863 = vsel %vm270, %v211, 0
  %v866 = vsel %vm270, %v212, 0
  %v869 = vsel %vm270, %v213, 0
  %v872 = vsel %vm270, %v214, 0
  %v875 = vsel %vm270, %v215, 0
  %v878 = vsel %vm270, %v216, 0
  %v881 = vsel %vm270, %v217, 0
  %v884 = vsel %vm270, %v218, 0
  %v887 = vsel %vm270, %v219, 0
  %v890 = vsel %vm270, %v220, 0
  %v893 = vsel %vm270, %v221, 0
  %v896 = vsel %vm270, %v222, 0
  %v899 = vsel %vm270, %v223, 0
  %v902 = vsel %vm270, %v224, 0
  %v905 = vsel %vm270, %v225, 0
  %v908 = vsel %vm270, %v226, 0
  %v911 = vsel %vm270, %v227, 0
  %v914 = vsel %vm270, %v228, 0
  %v917 = vsel %vm270, %v229, 0
  %v920 = vsel %vm270, %v230, 0
  %v923 = vsel %vm270, %v231, 0
  %v926 = vsel %vm270, %v232, 0
  %v929 = vsel %vm270, %v233, 0
  %v932 = vsel %vm270, %v234, 0
  %v935 = vsel %vm270, %v235, 0
  %v938 = vsel %vm270, %v236, 0
  %v941 = vsel %vm270, %v237, 0
  %v944 = vsel %vm270, %v238, 0
  %v947 = vsel %vm270, %v239, 0
  %v950 = vsel %vm270, %v240, 0
  %v953 = vsel %vm270, %v241, 0
  %v956 = vsel %vm270, %v242, 0
  %v959 = vsel %vm270, %v243, 0
  %v962 = vsel %vm270, %v244, 0
  %v965 = vsel %vm270, %v245, 0
  %v968 = vsel %vm270, %v246, 0
  %v971 = vsel %vm270, %v247, 0
  %v974 = vsel %vm270, %v248, 0
  %v977 = vsel %vm270, %v249, 0
  %v980 = vsel %vm270, %v250, 0
  %v983 = vsel %vm270, %v251, 0
  %v986 = vsel %vm270, %v252, 0
  %v989 = vsel %vm270, %v253, 0
  %v992 = vsel %vm270, %v254, 0
  %994 = vmatprep.subr.mxu0 0.0
  %995 = vmatpush1.msra.mxu0 %v255
  %996 = vmatprep.subr.mxu0 0.0
  %997 = vmatpush1.msra.mxu0 %v256
  %998 = vmatprep.subr.mxu0 0.0
  %999 = vmatpush1.msra.mxu0 %v257
  %1000 = vmatprep.subr.mxu0 0.0
  %1001 = vmatpush1.msra.mxu0 %v258
  %1002 = vmatprep.subr.mxu0 0.0
  %1003 = vmatpush1.msra.mxu0 %v259
  %1004 = vmatprep.subr.mxu0 0.0
  %1005 = vmatpush1.msra.mxu0 %v260
  %1006 = vmatprep.subr.mxu0 0.0
  %1007 = vmatpush1.msra.mxu0 %v261
  %1008 = vmatprep.subr.mxu0 0.0
  %1009 = vmatpush1.msra.mxu0 %v262
  %1010 = vmatprep.subr.mxu0 0.0
  %1011 = vmatpush1.msra.mxu0 0.0
  %1012 = vmatprep.subr.mxu0 0.0
  %1013 = vmatpush1.msra.mxu0 0.0
  %1014 = vmatprep.subr.mxu0 0.0
  %1015 = vmatpush1.msra.mxu0 0.0
  %1016 = vmatprep.subr.mxu0 0.0
  %1017 = vmatpush1.msra.mxu0 0.0
  %1018 = vmatprep.subr.mxu0 0.0
  %1019 = vmatpush1.msra.mxu0 0.0
  %1020 = vmatprep.subr.mxu0 0.0
  %1021 = vmatpush1.msra.mxu0 0.0
  %1022 = vmatprep.subr.mxu0 0.0
  %1023 = vmatpush1.msra.mxu0 0.0
  %1024 = vmatprep.subr.mxu0 0.0
  %1025 = vmatpush1.msra.mxu0 0.0
  %1026 = vmatprep.subr.mxu0 0.0
  %1027 = vmatpush1.msra.mxu0 0.0
  %1028 = vmatprep.subr.mxu0 0.0
  %1029 = vmatpush1.msra.mxu0 0.0
  %1030 = vmatprep.subr.mxu0 0.0
  %1031 = vmatpush1.msra.mxu0 0.0
  %1032 = vmatprep.subr.mxu0 0.0
  %1033 = vmatpush1.msra.mxu0 0.0
  %1034 = vmatprep.subr.mxu0 0.0
  %1035 = vmatpush1.msra.mxu0 0.0
  %1036 = vmatprep.subr.mxu0 0.0
  %1037 = vmatpush1.msra.mxu0 0.0
  %1038 = vmatprep.subr.mxu0 0.0
  %1039 = vmatpush1.msra.mxu0 0.0
  %1040 = vmatprep.subr.mxu0 0.0
  %1041 = vmatpush1.msra.mxu0 0.0
  %1042 = vmatprep.subr.mxu0 0.0
  %1043 = vmatpush1.msra.mxu0 0.0
  %1044 = vmatprep.subr.mxu0 0.0
  %1045 = vmatpush1.msra.mxu0 0.0
  %1046 = vmatprep.subr.mxu0 0.0
  %1047 = vmatpush1.msra.mxu0 0.0
  %1048 = vmatprep.subr.mxu0 0.0
  %1049 = vmatpush1.msra.mxu0 0.0
  %1050 = vmatprep.subr.mxu0 0.0
  %1051 = vmatpush1.msra.mxu0 0.0
  %1052 = vmatprep.subr.mxu0 0.0
  %1053 = vmatpush1.msra.mxu0 0.0
  %1054 = vmatprep.subr.mxu0 0.0
  %1055 = vmatpush1.msra.mxu0 0.0
  %1056 = vmatprep.subr.mxu0 0.0
  %1057 = vmatpush1.msra.mxu0 0.0
  %1058 = vmatprep.mubr.f32.mxu0 0.0
  %1059 = vmatmul.mubr.f32.gmra.mrb[0].mxu0 %v272
  %v1060 = vpop.f32.mrb[0].mxu0
  %v1061 = vadd.f32 %v268, %v1060
  %v1062 = vpop.f32.mrb[0].mxu0
  %1063 = vmatprep.mubr.f32.mxu0 0.0
  %1064 = vmatmul.mubr.f32.gmra.mrb[0].mxu0 %v275
  %v1065 = vpop.f32.mrb[0].mxu0
  %v1066 = vadd.f32 %v268, %v1065
  %v1067 = vpop.f32.mrb[0].mxu0
  %1068 = vmatprep.mubr.f32.mxu0 0.0
  %1069 = vmatmul.mubr.f32.gmra.mrb[0].mxu0 %v278
  %v1070 = vpop.f32.mrb[0].mxu0
  %v1071 = vadd.f32 %v268, %v1070
  %v1072 = vpop.f32.mrb[0].mxu0
  %1073 = vmatprep.mubr.f32.mxu0 0.0
  %1074 = vmatmul.mubr.f32.gmra.mrb[0].mxu0 %v281
  %v1075 = vpop.f32.mrb[0].mxu0
  %v1076 = vadd.f32 %v268, %v1075
  %v1077 = vpop.f32.mrb[0].mxu0
  %1078 = vmatprep.mubr.f32.mxu0 0.0
  %1079 = vmatmul.mubr.f32.gmra.mrb[0].mxu0 %v284
  %v1080 = vpop.f32.mrb[0].mxu0
  %v1081 = vadd.f32 %v268, %v1080
  %v1082 = vpop.f32.mrb[0].mxu0
  %1083 = vmatprep.mubr.f32.mxu0 0.0
  %1084 = vmatmul.mubr.f32.gmra.mrb[0].mxu0 %v287
  %v1085 = vpop.f32.mrb[0].mxu0
  %v1086 = vadd.f32 %v268, %v1085
  %v1087 = vpop.f32.mrb[0].mxu0
  %1088 = vmatprep.mubr.f32.mxu0 0.0
  %1089 = vmatmul.mubr.f32.gmra.mrb[0].mxu0 %v290
  %v1090 = vpop.f32.mrb[0].mxu0
  %v1091 = vadd.f32 %v268, %v1090
  %v1092 = vpop.f32.mrb[0].mxu0
  %1093 = vmatprep.mubr.f32.mxu0 0.0
  %1094 = vmatmul.mubr.f32.gmra.mrb[0].mxu0 %v293
  %v1095 = vpop.f32.mrb[0].mxu0
  %v1096 = vadd.f32 %v268, %v1095
  %v1097 = vpop.f32.mrb[0].mxu0
  %1098 = vmatprep.mubr.f32.mxu0 0.0
  %1099 = vmatmul.mubr.f32.gmra.mrb[0].mxu0 %v296
  %v1100 = vpop.f32.mrb[0].mxu0
  %v1101 = vadd.f32 %v268, %v1100
  %v1102 = vpop.f32.mrb[0].mxu0
  %1103 = vmatprep.mubr.f32.mxu0 0.0
  %1104 = vmatmul.mubr.f32.gmra.mrb[0].mxu0 %v299
  %v1105 = vpop.f32.mrb[0].mxu0
  %v1106 = vadd.f32 %v268, %v1105
  %v1107 = vpop.f32.mrb[0].mxu0
  %1108 = vmatprep.mubr.f32.mxu0 0.0
  %1109 = vmatmul.mubr.f32.gmra.mrb[0].mxu0 %v302
  %v1110 = vpop.f32.mrb[0].mxu0
  %v1111 = vadd.f32 %v268, %v1110
  %v1112 = vpop.f32.mrb[0].mxu0
  %1113 = vmatprep.mubr.f32.mxu0 0.0
  %1114 = vmatmul.mubr.f32.gmra.mrb[0].mxu0 %v305
  %v1115 = vpop.f32.mrb[0].mxu0
  %v1116 = vadd.f32 %v268, %v1115
  %v1117 = vpop.f32.mrb[0].mxu0
  %1118 = vmatprep.mubr.f32.mxu0 0.0
  %1119 = vmatmul.mubr.f32.gmra.mrb[0].mxu0 %v308
  %v1120 = vpop.f32.mrb[0].mxu0
  %v1121 = vadd.f32 %v268, %v1120
  %v1122 = vpop.f32.mrb[0].mxu0
  %1123 = vmatprep.mubr.f32.mxu0 0.0
  %1124 = vmatmul.mubr.f32.gmra.mrb[0].mxu0 %v311
  %v1125 = vpop.f32.mrb[0].mxu0
  %v1126 = vadd.f32 %v268, %v1125
  %v1127 = vpop.f32.mrb[0].mxu0
  %1128 = vmatprep.mubr.f32.mxu0 0.0
  %1129 = vmatmul.mubr.f32.gmra.mrb[0].mxu0 %v314
  %v1130 = vpop.f32.mrb[0].mxu0
  %v1131 = vadd.f32 %v268, %v1130
  %v1132 = vpop.f32.mrb[0].mxu0
  %1133 = vmatprep.mubr.f32.mxu0 0.0
  %1134 = vmatmul.mubr.f32.gmra.mrb[0].mxu0 %v317
  %v1135 = vpop.f32.mrb[0].mxu0
  %v1136 = vadd.f32 %v268, %v1135
  %v1137 = vpop.f32.mrb[0].mxu0
  %1138 = vmatprep.mubr.f32.mxu0 0.0
  %1139 = vmatmul.mubr.f32.gmra.mrb[0].mxu0 %v320
  %v1140 = vpop.f32.mrb[0].mxu0
  %v1141 = vadd.f32 %v268, %v1140
  %v1142 = vpop.f32.mrb[0].mxu0
  %1143 = vmatprep.mubr.f32.mxu0 0.0
  %1144 = vmatmul.mubr.f32.gmra.mrb[0].mxu0 %v323
  %v1145 = vpop.f32.mrb[0].mxu0
  %v1146 = vadd.f32 %v268, %v1145
  %v1147 = vpop.f32.mrb[0].mxu0
  %1148 = vmatprep.mubr.f32.mxu0 0.0
  %1149 = vmatmul.mubr.f32.gmra.mrb[0].mxu0 %v326
  %v1150 = vpop.f32.mrb[0].mxu0
  %v1151 = vadd.f32 %v268, %v1150
  %v1152 = vpop.f32.mrb[0].mxu0
  %1153 = vmatprep.mubr.f32.mxu0 0.0
  %1154 = vmatmul.mubr.f32.gmra.mrb[0].mxu0 %v329
  %v1155 = vpop.f32.mrb[0].mxu0
  %v1156 = vadd.f32 %v268, %v1155
  %v1157 = vpop.f32.mrb[0].mxu0
  %1158 = vmatprep.mubr.f32.mxu0 0.0
  %1159 = vmatmul.mubr.f32.gmra.mrb[0].mxu0 %v332
  %v1160 = vpop.f32.mrb[0].mxu0
  %v1161 = vadd.f32 %v268, %v1160
  %v1162 = vpop.f32.mrb[0].mxu0
  %1163 = vmatprep.mubr.f32.mxu0 0.0
  %1164 = vmatmul.mubr.f32.gmra.mrb[0].mxu0 %v335
  %v1165 = vpop.f32.mrb[0].mxu0
  %v1166 = vadd.f32 %v268, %v1165
  %v1167 = vpop.f32.mrb[0].mxu0
  %1168 = vmatprep.mubr.f32.mxu0 0.0
  %1169 = vmatmul.mubr.f32.gmra.mrb[0].mxu0 %v338
  %v1170 = vpop.f32.mrb[0].mxu0
  %v1171 = vadd.f32 %v268, %v1170
  %v1172 = vpop.f32.mrb[0].mxu0
  %1173 = vmatprep.mubr.f32.mxu0 0.0
  %1174 = vmatmul.mubr.f32.gmra.mrb[0].mxu0 %v341
  %v1175 = vpop.f32.mrb[0].mxu0
  %v1176 = vadd.f32 %v268, %v1175
  %v1177 = vpop.f32.mrb[0].mxu0
  %1178 = vmatprep.mubr.f32.mxu0 0.0
  %1179 = vmatmul.mubr.f32.gmra.mrb[0].mxu0 %v344
  %v1180 = vpop.f32.mrb[0].mxu0
  %v1181 = vadd.f32 %v268, %v1180
  %v1182 = vpop.f32.mrb[0].mxu0
  %1183 = vmatprep.mubr.f32.mxu0 0.0
  %1184 = vmatmul.mubr.f32.gmra.mrb[0].mxu0 %v347
  %v1185 = vpop.f32.mrb[0].mxu0
  %v1186 = vadd.f32 %v268, %v1185
  %v1187 = vpop.f32.mrb[0].mxu0
  %1188 = vmatprep.mubr.f32.mxu0 0.0
  %1189 = vmatmul.mubr.f32.gmra.mrb[0].mxu0 %v350
  %v1190 = vpop.f32.mrb[0].mxu0
  %v1191 = vadd.f32 %v268, %v1190
  %v1192 = vpop.f32.mrb[0].mxu0
  %1193 = vmatprep.mubr.f32.mxu0 0.0
  %1194 = vmatmul.mubr.f32.gmra.mrb[0].mxu0 %v353
  %v1195 = vpop.f32.mrb[0].mxu0
  %v1196 = vadd.f32 %v268, %v1195
  %v1197 = vpop.f32.mrb[0].mxu0
  %1198 = vmatprep.mubr.f32.mxu0 0.0
  %1199 = vmatmul.mubr.f32.gmra.mrb[0].mxu0 %v356
  %v1200 = vpop.f32.mrb[0].mxu0
  %v1201 = vadd.f32 %v268, %v1200
  %v1202 = vpop.f32.mrb[0].mxu0
  %1203 = vmatprep.mubr.f32.mxu0 0.0
  %1204 = vmatmul.mubr.f32.gmra.mrb[0].mxu0 %v359
  %v1205 = vpop.f32.mrb[0].mxu0
  %v1206 = vadd.f32 %v268, %v1205
  %v1207 = vpop.f32.mrb[0].mxu0
  %1208 = vmatprep.mubr.f32.mxu0 0.0
  %1209 = vmatmul.mubr.f32.gmra.mrb[0].mxu0 %v362
  %v1210 = vpop.f32.mrb[0].mxu0
  %v1211 = vadd.f32 %v268, %v1210
  %v1212 = vpop.f32.mrb[0].mxu0
  %1213 = vmatprep.mubr.f32.mxu0 0.0
  %1214 = vmatmul.mubr.f32.gmra.mrb[0].mxu0 %v365
  %v1215 = vpop.f32.mrb[0].mxu0
  %v1216 = vadd.f32 %v268, %v1215
  %v1217 = vpop.f32.mrb[0].mxu0
  %1218 = vmatprep.mubr.f32.mxu0 0.0
  %1219 = vmatmul.mubr.f32.gmra.mrb[0].mxu0 %v368
  %v1220 = vpop.f32.mrb[0].mxu0
  %v1221 = vadd.f32 %v268, %v1220
  %v1222 = vpop.f32.mrb[0].mxu0
  %1223 = vmatprep.mubr.f32.mxu0 0.0
  %1224 = vmatmul.mubr.f32.gmra.mrb[0].mxu0 %v371
  %v1225 = vpop.f32.mrb[0].mxu0
  %v1226 = vadd.f32 %v268, %v1225
  %v1227 = vpop.f32.mrb[0].mxu0
  %1228 = vmatprep.mubr.f32.mxu0 0.0
  %1229 = vmatmul.mubr.f32.gmra.mrb[0].mxu0 %v374
  %v1230 = vpop.f32.mrb[0].mxu0
  %v1231 = vadd.f32 %v268, %v1230
  %v1232 = vpop.f32.mrb[0].mxu0
  %1233 = vmatprep.mubr.f32.mxu0 0.0
  %1234 = vmatmul.mubr.f32.gmra.mrb[0].mxu0 %v377
  %v1235 = vpop.f32.mrb[0].mxu0
  %v1236 = vadd.f32 %v268, %v1235
  %v1237 = vpop.f32.mrb[0].mxu0
  %1238 = vmatprep.mubr.f32.mxu0 0.0
  %1239 = vmatmul.mubr.f32.gmra.mrb[0].mxu0 %v380
  %v1240 = vpop.f32.mrb[0].mxu0
  %v1241 = vadd.f32 %v268, %v1240
  %v1242 = vpop.f32.mrb[0].mxu0
  %1243 = vmatprep.mubr.f32.mxu0 0.0
  %1244 = vmatmul.mubr.f32.gmra.mrb[0].mxu0 %v383
  %v1245 = vpop.f32.mrb[0].mxu0
  %v1246 = vadd.f32 %v268, %v1245
  %v1247 = vpop.f32.mrb[0].mxu0
  %1248 = vmatprep.mubr.f32.mxu0 0.0
  %1249 = vmatmul.mubr.f32.gmra.mrb[0].mxu0 %v386
  %v1250 = vpop.f32.mrb[0].mxu0
  %v1251 = vadd.f32 %v268, %v1250
  %v1252 = vpop.f32.mrb[0].mxu0
  %1253 = vmatprep.mubr.f32.mxu0 0.0
  %1254 = vmatmul.mubr.f32.gmra.mrb[0].mxu0 %v389
  %v1255 = vpop.f32.mrb[0].mxu0
  %v1256 = vadd.f32 %v268, %v1255
  %v1257 = vpop.f32.mrb[0].mxu0
  %1258 = vmatprep.mubr.f32.mxu0 0.0
  %1259 = vmatmul.mubr.f32.gmra.mrb[0].mxu0 %v392
  %v1260 = vpop.f32.mrb[0].mxu0
  %v1261 = vadd.f32 %v268, %v1260
  %v1262 = vpop.f32.mrb[0].mxu0
  %1263 = vmatprep.mubr.f32.mxu0 0.0
  %1264 = vmatmul.mubr.f32.gmra.mrb[0].mxu0 %v395
  %v1265 = vpop.f32.mrb[0].mxu0
  %v1266 = vadd.f32 %v268, %v1265
  %v1267 = vpop.f32.mrb[0].mxu0
  %1268 = vmatprep.mubr.f32.mxu0 0.0
  %1269 = vmatmul.mubr.f32.gmra.mrb[0].mxu0 %v398
  %v1270 = vpop.f32.mrb[0].mxu0
  %v1271 = vadd.f32 %v268, %v1270
  %v1272 = vpop.f32.mrb[0].mxu0
  %1273 = vmatprep.mubr.f32.mxu0 0.0
  %1274 = vmatmul.mubr.f32.gmra.mrb[0].mxu0 %v401
  %v1275 = vpop.f32.mrb[0].mxu0
  %v1276 = vadd.f32 %v268, %v1275
  %v1277 = vpop.f32.mrb[0].mxu0
  %1278 = vmatprep.mubr.f32.mxu0 0.0
  %1279 = vmatmul.mubr.f32.gmra.mrb[0].mxu0 %v404
  %v1280 = vpop.f32.mrb[0].mxu0
  %v1281 = vadd.f32 %v268, %v1280
  %v1282 = vpop.f32.mrb[0].mxu0
  %1283 = vmatprep.mubr.f32.mxu0 0.0
  %1284 = vmatmul.mubr.f32.gmra.mrb[0].mxu0 %v407
  %v1285 = vpop.f32.mrb[0].mxu0
  %v1286 = vadd.f32 %v268, %v1285
  %v1287 = vpop.f32.mrb[0].mxu0
  %1288 = vmatprep.mubr.f32.mxu0 0.0
  %1289 = vmatmul.mubr.f32.gmra.mrb[0].mxu0 %v410
  %v1290 = vpop.f32.mrb[0].mxu0
  %v1291 = vadd.f32 %v268, %v1290
  %v1292 = vpop.f32.mrb[0].mxu0
  %1293 = vmatprep.mubr.f32.mxu0 0.0
  %1294 = vmatmul.mubr.f32.gmra.mrb[0].mxu0 %v413
  %v1295 = vpop.f32.mrb[0].mxu0
  %v1296 = vadd.f32 %v268, %v1295
  %v1297 = vpop.f32.mrb[0].mxu0
  %1298 = vmatprep.mubr.f32.mxu0 0.0
  %1299 = vmatmul.mubr.f32.gmra.mrb[0].mxu0 %v416
  %v1300 = vpop.f32.mrb[0].mxu0
  %v1301 = vadd.f32 %v268, %v1300
  %v1302 = vpop.f32.mrb[0].mxu0
  %1303 = vmatprep.mubr.f32.mxu0 0.0
  %1304 = vmatmul.mubr.f32.gmra.mrb[0].mxu0 %v419
  %v1305 = vpop.f32.mrb[0].mxu0
  %v1306 = vadd.f32 %v268, %v1305
  %v1307 = vpop.f32.mrb[0].mxu0
  %1308 = vmatprep.mubr.f32.mxu0 0.0
  %1309 = vmatmul.mubr.f32.gmra.mrb[0].mxu0 %v422
  %v1310 = vpop.f32.mrb[0].mxu0
  %v1311 = vadd.f32 %v268, %v1310
  %v1312 = vpop.f32.mrb[0].mxu0
  %1313 = vmatprep.mubr.f32.mxu0 0.0
  %1314 = vmatmul.mubr.f32.gmra.mrb[0].mxu0 %v425
  %v1315 = vpop.f32.mrb[0].mxu0
  %v1316 = vadd.f32 %v268, %v1315
  %v1317 = vpop.f32.mrb[0].mxu0
  %1318 = vmatprep.mubr.f32.mxu0 0.0
  %1319 = vmatmul.mubr.f32.gmra.mrb[0].mxu0 %v428
  %v1320 = vpop.f32.mrb[0].mxu0
  %v1321 = vadd.f32 %v268, %v1320
  %v1322 = vpop.f32.mrb[0].mxu0
  %1323 = vmatprep.mubr.f32.mxu0 0.0
  %1324 = vmatmul.mubr.f32.gmra.mrb[0].mxu0 %v431
  %v1325 = vpop.f32.mrb[0].mxu0
  %v1326 = vadd.f32 %v268, %v1325
  %v1327 = vpop.f32.mrb[0].mxu0
  %1328 = vmatprep.mubr.f32.mxu0 0.0
  %1329 = vmatmul.mubr.f32.gmra.mrb[0].mxu0 %v434
  %v1330 = vpop.f32.mrb[0].mxu0
  %v1331 = vadd.f32 %v268, %v1330
  %v1332 = vpop.f32.mrb[0].mxu0
  %1333 = vmatprep.mubr.f32.mxu0 0.0
  %1334 = vmatmul.mubr.f32.gmra.mrb[0].mxu0 %v437
  %v1335 = vpop.f32.mrb[0].mxu0
  %v1336 = vadd.f32 %v268, %v1335
  %v1337 = vpop.f32.mrb[0].mxu0
  %1338 = vmatprep.mubr.f32.mxu0 0.0
  %1339 = vmatmul.mubr.f32.gmra.mrb[0].mxu0 %v440
  %v1340 = vpop.f32.mrb[0].mxu0
  %v1341 = vadd.f32 %v268, %v1340
  %v1342 = vpop.f32.mrb[0].mxu0
  %1343 = vmatprep.mubr.f32.mxu0 0.0
  %1344 = vmatmul.mubr.f32.gmra.mrb[0].mxu0 %v443
  %v1345 = vpop.f32.mrb[0].mxu0
  %v1346 = vadd.f32 %v268, %v1345
  %v1347 = vpop.f32.mrb[0].mxu0
  %1348 = vmatprep.mubr.f32.mxu0 0.0
  %1349 = vmatmul.mubr.f32.gmra.mrb[0].mxu0 %v446
  %v1350 = vpop.f32.mrb[0].mxu0
  %v1351 = vadd.f32 %v268, %v1350
  %v1352 = vpop.f32.mrb[0].mxu0
  %1353 = vmatprep.mubr.f32.mxu0 0.0
  %1354 = vmatmul.mubr.f32.gmra.mrb[0].mxu0 %v449
  %v1355 = vpop.f32.mrb[0].mxu0
  %v1356 = vadd.f32 %v268, %v1355
  %v1357 = vpop.f32.mrb[0].mxu0
  %1358 = vmatprep.mubr.f32.mxu0 0.0
  %1359 = vmatmul.mubr.f32.gmra.mrb[0].mxu0 %v452
  %v1360 = vpop.f32.mrb[0].mxu0
  %v1361 = vadd.f32 %v268, %v1360
  %v1362 = vpop.f32.mrb[0].mxu0
  %1363 = vmatprep.mubr.f32.mxu0 0.0
  %1364 = vmatmul.mubr.f32.gmra.mrb[0].mxu0 %v455
  %v1365 = vpop.f32.mrb[0].mxu0
  %v1366 = vadd.f32 %v268, %v1365
  %v1367 = vpop.f32.mrb[0].mxu0
  %1368 = vmatprep.mubr.f32.mxu0 0.0
  %1369 = vmatmul.mubr.f32.gmra.mrb[0].mxu0 %v458
  %v1370 = vpop.f32.mrb[0].mxu0
  %v1371 = vadd.f32 %v268, %v1370
  %v1372 = vpop.f32.mrb[0].mxu0
  %1373 = vmatprep.mubr.f32.mxu0 0.0
  %1374 = vmatmul.mubr.f32.gmra.mrb[0].mxu0 %v461
  %v1375 = vpop.f32.mrb[0].mxu0
  %v1376 = vadd.f32 %v268, %v1375
  %v1377 = vpop.f32.mrb[0].mxu0
  %1378 = vmatprep.mubr.f32.mxu0 0.0
  %1379 = vmatmul.mubr.f32.gmra.mrb[0].mxu0 %v464
  %v1380 = vpop.f32.mrb[0].mxu0
  %v1381 = vadd.f32 %v268, %v1380
  %v1382 = vpop.f32.mrb[0].mxu0
  %1383 = vmatprep.mubr.f32.mxu0 0.0
  %1384 = vmatmul.mubr.f32.gmra.mrb[0].mxu0 %v467
  %v1385 = vpop.f32.mrb[0].mxu0
  %v1386 = vadd.f32 %v268, %v1385
  %v1387 = vpop.f32.mrb[0].mxu0
  %1388 = vmatprep.mubr.f32.mxu0 0.0
  %1389 = vmatmul.mubr.f32.gmra.mrb[0].mxu0 %v470
  %v1390 = vpop.f32.mrb[0].mxu0
  %v1391 = vadd.f32 %v268, %v1390
  %v1392 = vpop.f32.mrb[0].mxu0
  %1393 = vmatprep.mubr.f32.mxu0 0.0
  %1394 = vmatmul.mubr.f32.gmra.mrb[0].mxu0 %v473
  %v1395 = vpop.f32.mrb[0].mxu0
  %v1396 = vadd.f32 %v268, %v1395
  %v1397 = vpop.f32.mrb[0].mxu0
  %1398 = vmatprep.mubr.f32.mxu0 0.0
  %1399 = vmatmul.mubr.f32.gmra.mrb[0].mxu0 %v476
  %v1400 = vpop.f32.mrb[0].mxu0
  %v1401 = vadd.f32 %v268, %v1400
  %v1402 = vpop.f32.mrb[0].mxu0
  %1403 = vmatprep.mubr.f32.mxu0 0.0
  %1404 = vmatmul.mubr.f32.gmra.mrb[0].mxu0 %v479
  %v1405 = vpop.f32.mrb[0].mxu0
  %v1406 = vadd.f32 %v268, %v1405
  %v1407 = vpop.f32.mrb[0].mxu0
  %1408 = vmatprep.mubr.f32.mxu0 0.0
  %1409 = vmatmul.mubr.f32.gmra.mrb[0].mxu0 %v482
  %v1410 = vpop.f32.mrb[0].mxu0
  %v1411 = vadd.f32 %v268, %v1410
  %v1412 = vpop.f32.mrb[0].mxu0
  %1413 = vmatprep.mubr.f32.mxu0 0.0
  %1414 = vmatmul.mubr.f32.gmra.mrb[0].mxu0 %v485
  %v1415 = vpop.f32.mrb[0].mxu0
  %v1416 = vadd.f32 %v268, %v1415
  %v1417 = vpop.f32.mrb[0].mxu0
  %1418 = vmatprep.mubr.f32.mxu0 0.0
  %1419 = vmatmul.mubr.f32.gmra.mrb[0].mxu0 %v488
  %v1420 = vpop.f32.mrb[0].mxu0
  %v1421 = vadd.f32 %v268, %v1420
  %v1422 = vpop.f32.mrb[0].mxu0
  %1423 = vmatprep.mubr.f32.mxu0 0.0
  %1424 = vmatmul.mubr.f32.gmra.mrb[0].mxu0 %v491
  %v1425 = vpop.f32.mrb[0].mxu0
  %v1426 = vadd.f32 %v268, %v1425
  %v1427 = vpop.f32.mrb[0].mxu0
  %1428 = vmatprep.mubr.f32.mxu0 0.0
  %1429 = vmatmul.mubr.f32.gmra.mrb[0].mxu0 %v494
  %v1430 = vpop.f32.mrb[0].mxu0
  %v1431 = vadd.f32 %v268, %v1430
  %v1432 = vpop.f32.mrb[0].mxu0
  %1433 = vmatprep.mubr.f32.mxu0 0.0
  %1434 = vmatmul.mubr.f32.gmra.mrb[0].mxu0 %v497
  %v1435 = vpop.f32.mrb[0].mxu0
  %v1436 = vadd.f32 %v268, %v1435
  %v1437 = vpop.f32.mrb[0].mxu0
  %1438 = vmatprep.mubr.f32.mxu0 0.0
  %1439 = vmatmul.mubr.f32.gmra.mrb[0].mxu0 %v500
  %v1440 = vpop.f32.mrb[0].mxu0
  %v1441 = vadd.f32 %v268, %v1440
  %v1442 = vpop.f32.mrb[0].mxu0
  %1443 = vmatprep.mubr.f32.mxu0 0.0
  %1444 = vmatmul.mubr.f32.gmra.mrb[0].mxu0 %v503
  %v1445 = vpop.f32.mrb[0].mxu0
  %v1446 = vadd.f32 %v268, %v1445
  %v1447 = vpop.f32.mrb[0].mxu0
  %1448 = vmatprep.mubr.f32.mxu0 0.0
  %1449 = vmatmul.mubr.f32.gmra.mrb[0].mxu0 %v506
  %v1450 = vpop.f32.mrb[0].mxu0
  %v1451 = vadd.f32 %v268, %v1450
  %v1452 = vpop.f32.mrb[0].mxu0
  %1453 = vmatprep.mubr.f32.mxu0 0.0
  %1454 = vmatmul.mubr.f32.gmra.mrb[0].mxu0 %v509
  %v1455 = vpop.f32.mrb[0].mxu0
  %v1456 = vadd.f32 %v268, %v1455
  %v1457 = vpop.f32.mrb[0].mxu0
  %1458 = vmatprep.mubr.f32.mxu0 0.0
  %1459 = vmatmul.mubr.f32.gmra.mrb[0].mxu0 %v512
  %v1460 = vpop.f32.mrb[0].mxu0
  %v1461 = vadd.f32 %v268, %v1460
  %v1462 = vpop.f32.mrb[0].mxu0
  %1463 = vmatprep.mubr.f32.mxu0 0.0
  %1464 = vmatmul.mubr.f32.gmra.mrb[0].mxu0 %v515
  %v1465 = vpop.f32.mrb[0].mxu0
  %v1466 = vadd.f32 %v268, %v1465
  %v1467 = vpop.f32.mrb[0].mxu0
  %1468 = vmatprep.mubr.f32.mxu0 0.0
  %1469 = vmatmul.mubr.f32.gmra.mrb[0].mxu0 %v518
  %v1470 = vpop.f32.mrb[0].mxu0
  %v1471 = vadd.f32 %v268, %v1470
  %v1472 = vpop.f32.mrb[0].mxu0
  %1473 = vmatprep.mubr.f32.mxu0 0.0
  %1474 = vmatmul.mubr.f32.gmra.mrb[0].mxu0 %v521
  %v1475 = vpop.f32.mrb[0].mxu0
  %v1476 = vadd.f32 %v268, %v1475
  %v1477 = vpop.f32.mrb[0].mxu0
  %1478 = vmatprep.mubr.f32.mxu0 0.0
  %1479 = vmatmul.mubr.f32.gmra.mrb[0].mxu0 %v524
  %v1480 = vpop.f32.mrb[0].mxu0
  %v1481 = vadd.f32 %v268, %v1480
  %v1482 = vpop.f32.mrb[0].mxu0
  %1483 = vmatprep.mubr.f32.mxu0 0.0
  %1484 = vmatmul.mubr.f32.gmra.mrb[0].mxu0 %v527
  %v1485 = vpop.f32.mrb[0].mxu0
  %v1486 = vadd.f32 %v268, %v1485
  %v1487 = vpop.f32.mrb[0].mxu0
  %1488 = vmatprep.mubr.f32.mxu0 0.0
  %1489 = vmatmul.mubr.f32.gmra.mrb[0].mxu0 %v530
  %v1490 = vpop.f32.mrb[0].mxu0
  %v1491 = vadd.f32 %v268, %v1490
  %v1492 = vpop.f32.mrb[0].mxu0
  %1493 = vmatprep.mubr.f32.mxu0 0.0
  %1494 = vmatmul.mubr.f32.gmra.mrb[0].mxu0 %v533
  %v1495 = vpop.f32.mrb[0].mxu0
  %v1496 = vadd.f32 %v268, %v1495
  %v1497 = vpop.f32.mrb[0].mxu0
  %1498 = vmatprep.mubr.f32.mxu0 0.0
  %1499 = vmatmul.mubr.f32.gmra.mrb[0].mxu0 %v536
  %v1500 = vpop.f32.mrb[0].mxu0
  %v1501 = vadd.f32 %v268, %v1500
  %v1502 = vpop.f32.mrb[0].mxu0
  %1503 = vmatprep.mubr.f32.mxu0 0.0
  %1504 = vmatmul.mubr.f32.gmra.mrb[0].mxu0 %v539
  %v1505 = vpop.f32.mrb[0].mxu0
  %v1506 = vadd.f32 %v268, %v1505
  %v1507 = vpop.f32.mrb[0].mxu0
  %1508 = vmatprep.mubr.f32.mxu0 0.0
  %1509 = vmatmul.mubr.f32.gmra.mrb[0].mxu0 %v542
  %v1510 = vpop.f32.mrb[0].mxu0
  %v1511 = vadd.f32 %v268, %v1510
  %v1512 = vpop.f32.mrb[0].mxu0
  %1513 = vmatprep.mubr.f32.mxu0 0.0
  %1514 = vmatmul.mubr.f32.gmra.mrb[0].mxu0 %v545
  %v1515 = vpop.f32.mrb[0].mxu0
  %v1516 = vadd.f32 %v268, %v1515
  %v1517 = vpop.f32.mrb[0].mxu0
  %1518 = vmatprep.mubr.f32.mxu0 0.0
  %1519 = vmatmul.mubr.f32.gmra.mrb[0].mxu0 %v548
  %v1520 = vpop.f32.mrb[0].mxu0
  %v1521 = vadd.f32 %v268, %v1520
  %v1522 = vpop.f32.mrb[0].mxu0
  %1523 = vmatprep.mubr.f32.mxu0 0.0
  %1524 = vmatmul.mubr.f32.gmra.mrb[0].mxu0 %v551
  %v1525 = vpop.f32.mrb[0].mxu0
  %v1526 = vadd.f32 %v268, %v1525
  %v1527 = vpop.f32.mrb[0].mxu0
  %1528 = vmatprep.mubr.f32.mxu0 0.0
  %1529 = vmatmul.mubr.f32.gmra.mrb[0].mxu0 %v554
  %v1530 = vpop.f32.mrb[0].mxu0
  %v1531 = vadd.f32 %v268, %v1530
  %v1532 = vpop.f32.mrb[0].mxu0
  %1533 = vmatprep.mubr.f32.mxu0 0.0
  %1534 = vmatmul.mubr.f32.gmra.mrb[0].mxu0 %v557
  %v1535 = vpop.f32.mrb[0].mxu0
  %v1536 = vadd.f32 %v268, %v1535
  %v1537 = vpop.f32.mrb[0].mxu0
  %1538 = vmatprep.mubr.f32.mxu0 0.0
  %1539 = vmatmul.mubr.f32.gmra.mrb[0].mxu0 %v560
  %v1540 = vpop.f32.mrb[0].mxu0
  %v1541 = vadd.f32 %v268, %v1540
  %v1542 = vpop.f32.mrb[0].mxu0
  %1543 = vmatprep.mubr.f32.mxu0 0.0
  %1544 = vmatmul.mubr.f32.gmra.mrb[0].mxu0 %v563
  %v1545 = vpop.f32.mrb[0].mxu0
  %v1546 = vadd.f32 %v268, %v1545
  %v1547 = vpop.f32.mrb[0].mxu0
  %1548 = vmatprep.mubr.f32.mxu0 0.0
  %1549 = vmatmul.mubr.f32.gmra.mrb[0].mxu0 %v566
  %v1550 = vpop.f32.mrb[0].mxu0
  %v1551 = vadd.f32 %v268, %v1550
  %v1552 = vpop.f32.mrb[0].mxu0
  %1553 = vmatprep.mubr.f32.mxu0 0.0
  %1554 = vmatmul.mubr.f32.gmra.mrb[0].mxu0 %v569
  %v1555 = vpop.f32.mrb[0].mxu0
  %v1556 = vadd.f32 %v268, %v1555
  %v1557 = vpop.f32.mrb[0].mxu0
  %1558 = vmatprep.mubr.f32.mxu0 0.0
  %1559 = vmatmul.mubr.f32.gmra.mrb[0].mxu0 %v572
  %v1560 = vpop.f32.mrb[0].mxu0
  %v1561 = vadd.f32 %v268, %v1560
  %v1562 = vpop.f32.mrb[0].mxu0
  %1563 = vmatprep.mubr.f32.mxu0 0.0
  %1564 = vmatmul.mubr.f32.gmra.mrb[0].mxu0 %v575
  %v1565 = vpop.f32.mrb[0].mxu0
  %v1566 = vadd.f32 %v268, %v1565
  %v1567 = vpop.f32.mrb[0].mxu0
  %1568 = vmatprep.mubr.f32.mxu0 0.0
  %1569 = vmatmul.mubr.f32.gmra.mrb[0].mxu0 %v578
  %v1570 = vpop.f32.mrb[0].mxu0
  %v1571 = vadd.f32 %v268, %v1570
  %v1572 = vpop.f32.mrb[0].mxu0
  %1573 = vmatprep.mubr.f32.mxu0 0.0
  %1574 = vmatmul.mubr.f32.gmra.mrb[0].mxu0 %v581
  %v1575 = vpop.f32.mrb[0].mxu0
  %v1576 = vadd.f32 %v268, %v1575
  %v1577 = vpop.f32.mrb[0].mxu0
  %1578 = vmatprep.mubr.f32.mxu0 0.0
  %1579 = vmatmul.mubr.f32.gmra.mrb[0].mxu0 %v584
  %v1580 = vpop.f32.mrb[0].mxu0
  %v1581 = vadd.f32 %v268, %v1580
  %v1582 = vpop.f32.mrb[0].mxu0
  %1583 = vmatprep.mubr.f32.mxu0 0.0
  %1584 = vmatmul.mubr.f32.gmra.mrb[0].mxu0 %v587
  %v1585 = vpop.f32.mrb[0].mxu0
  %v1586 = vadd.f32 %v268, %v1585
  %v1587 = vpop.f32.mrb[0].mxu0
  %1588 = vmatprep.mubr.f32.mxu0 0.0
  %1589 = vmatmul.mubr.f32.gmra.mrb[0].mxu0 %v590
  %v1590 = vpop.f32.mrb[0].mxu0
  %v1591 = vadd.f32 %v268, %v1590
  %v1592 = vpop.f32.mrb[0].mxu0
  %1593 = vmatprep.mubr.f32.mxu0 0.0
  %1594 = vmatmul.mubr.f32.gmra.mrb[0].mxu0 %v593
  %v1595 = vpop.f32.mrb[0].mxu0
  %v1596 = vadd.f32 %v268, %v1595
  %v1597 = vpop.f32.mrb[0].mxu0
  %1598 = vmatprep.mubr.f32.mxu0 0.0
  %1599 = vmatmul.mubr.f32.gmra.mrb[0].mxu0 %v596
  %v1600 = vpop.f32.mrb[0].mxu0
  %v1601 = vadd.f32 %v268, %v1600
  %v1602 = vpop.f32.mrb[0].mxu0
  %1603 = vmatprep.mubr.f32.mxu0 0.0
  %1604 = vmatmul.mubr.f32.gmra.mrb[0].mxu0 %v599
  %v1605 = vpop.f32.mrb[0].mxu0
  %v1606 = vadd.f32 %v268, %v1605
  %v1607 = vpop.f32.mrb[0].mxu0
  %1608 = vmatprep.mubr.f32.mxu0 0.0
  %1609 = vmatmul.mubr.f32.gmra.mrb[0].mxu0 %v602
  %v1610 = vpop.f32.mrb[0].mxu0
  %v1611 = vadd.f32 %v268, %v1610
  %v1612 = vpop.f32.mrb[0].mxu0
  %1613 = vmatprep.mubr.f32.mxu0 0.0
  %1614 = vmatmul.mubr.f32.gmra.mrb[0].mxu0 %v605
  %v1615 = vpop.f32.mrb[0].mxu0
  %v1616 = vadd.f32 %v268, %v1615
  %v1617 = vpop.f32.mrb[0].mxu0
  %1618 = vmatprep.mubr.f32.mxu0 0.0
  %1619 = vmatmul.mubr.f32.gmra.mrb[0].mxu0 %v608
  %v1620 = vpop.f32.mrb[0].mxu0
  %v1621 = vadd.f32 %v268, %v1620
  %v1622 = vpop.f32.mrb[0].mxu0
  %1623 = vmatprep.mubr.f32.mxu0 0.0
  %1624 = vmatmul.mubr.f32.gmra.mrb[0].mxu0 %v611
  %v1625 = vpop.f32.mrb[0].mxu0
  %v1626 = vadd.f32 %v268, %v1625
  %v1627 = vpop.f32.mrb[0].mxu0
  %1628 = vmatprep.mubr.f32.mxu0 0.0
  %1629 = vmatmul.mubr.f32.gmra.mrb[0].mxu0 %v614
  %v1630 = vpop.f32.mrb[0].mxu0
  %v1631 = vadd.f32 %v268, %v1630
  %v1632 = vpop.f32.mrb[0].mxu0
  %1633 = vmatprep.mubr.f32.mxu0 0.0
  %1634 = vmatmul.mubr.f32.gmra.mrb[0].mxu0 %v617
  %v1635 = vpop.f32.mrb[0].mxu0
  %v1636 = vadd.f32 %v268, %v1635
  %v1637 = vpop.f32.mrb[0].mxu0
  %1638 = vmatprep.mubr.f32.mxu0 0.0
  %1639 = vmatmul.mubr.f32.gmra.mrb[0].mxu0 %v620
  %v1640 = vpop.f32.mrb[0].mxu0
  %v1641 = vadd.f32 %v268, %v1640
  %v1642 = vpop.f32.mrb[0].mxu0
  %1643 = vmatprep.mubr.f32.mxu0 0.0
  %1644 = vmatmul.mubr.f32.gmra.mrb[0].mxu0 %v623
  %v1645 = vpop.f32.mrb[0].mxu0
  %v1646 = vadd.f32 %v268, %v1645
  %v1647 = vpop.f32.mrb[0].mxu0
  %1648 = vmatprep.mubr.f32.mxu0 0.0
  %1649 = vmatmul.mubr.f32.gmra.mrb[0].mxu0 %v626
  %v1650 = vpop.f32.mrb[0].mxu0
  %v1651 = vadd.f32 %v268, %v1650
  %v1652 = vpop.f32.mrb[0].mxu0
  %1653 = vmatprep.mubr.f32.mxu0 0.0
  %1654 = vmatmul.mubr.f32.gmra.mrb[0].mxu0 %v629
  %v1655 = vpop.f32.mrb[0].mxu0
  %v1656 = vadd.f32 %v268, %v1655
  %v1657 = vpop.f32.mrb[0].mxu0
  %1658 = vmatprep.mubr.f32.mxu0 0.0
  %1659 = vmatmul.mubr.f32.gmra.mrb[0].mxu0 %v632
  %v1660 = vpop.f32.mrb[0].mxu0
  %v1661 = vadd.f32 %v268, %v1660
  %v1662 = vpop.f32.mrb[0].mxu0
  %1663 = vmatprep.mubr.f32.mxu0 0.0
  %1664 = vmatmul.mubr.f32.gmra.mrb[0].mxu0 %v635
  %v1665 = vpop.f32.mrb[0].mxu0
  %v1666 = vadd.f32 %v268, %v1665
  %v1667 = vpop.f32.mrb[0].mxu0
  %1668 = vmatprep.mubr.f32.mxu0 0.0
  %1669 = vmatmul.mubr.f32.gmra.mrb[0].mxu0 %v638
  %v1670 = vpop.f32.mrb[0].mxu0
  %v1671 = vadd.f32 %v268, %v1670
  %v1672 = vpop.f32.mrb[0].mxu0
  %1673 = vmatprep.mubr.f32.mxu0 0.0
  %1674 = vmatmul.mubr.f32.gmra.mrb[0].mxu0 %v641
  %v1675 = vpop.f32.mrb[0].mxu0
  %v1676 = vadd.f32 %v268, %v1675
  %v1677 = vpop.f32.mrb[0].mxu0
  %1678 = vmatprep.mubr.f32.mxu0 0.0
  %1679 = vmatmul.mubr.f32.gmra.mrb[0].mxu0 %v644
  %v1680 = vpop.f32.mrb[0].mxu0
  %v1681 = vadd.f32 %v268, %v1680
  %v1682 = vpop.f32.mrb[0].mxu0
  %1683 = vmatprep.mubr.f32.mxu0 0.0
  %1684 = vmatmul.mubr.f32.gmra.mrb[0].mxu0 %v647
  %v1685 = vpop.f32.mrb[0].mxu0
  %v1686 = vadd.f32 %v268, %v1685
  %v1687 = vpop.f32.mrb[0].mxu0
  %1688 = vmatprep.mubr.f32.mxu0 0.0
  %1689 = vmatmul.mubr.f32.gmra.mrb[0].mxu0 %v650
  %v1690 = vpop.f32.mrb[0].mxu0
  %v1691 = vadd.f32 %v268, %v1690
  %v1692 = vpop.f32.mrb[0].mxu0
  %1693 = vmatprep.mubr.f32.mxu0 0.0
  %1694 = vmatmul.mubr.f32.gmra.mrb[0].mxu0 %v653
  %v1695 = vpop.f32.mrb[0].mxu0
  %v1696 = vadd.f32 %v268, %v1695
  %v1697 = vpop.f32.mrb[0].mxu0
  %1698 = vmatprep.mubr.f32.mxu0 0.0
  %1699 = vmatmul.mubr.f32.gmra.mrb[0].mxu0 %v656
  %v1700 = vpop.f32.mrb[0].mxu0
  %v1701 = vadd.f32 %v268, %v1700
  %v1702 = vpop.f32.mrb[0].mxu0
  %1703 = vmatprep.mubr.f32.mxu0 0.0
  %1704 = vmatmul.mubr.f32.gmra.mrb[0].mxu0 %v659
  %v1705 = vpop.f32.mrb[0].mxu0
  %v1706 = vadd.f32 %v268, %v1705
  %v1707 = vpop.f32.mrb[0].mxu0
  %1708 = vmatprep.mubr.f32.mxu0 0.0
  %1709 = vmatmul.mubr.f32.gmra.mrb[0].mxu0 %v662
  %v1710 = vpop.f32.mrb[0].mxu0
  %v1711 = vadd.f32 %v268, %v1710
  %v1712 = vpop.f32.mrb[0].mxu0
  %1713 = vmatprep.mubr.f32.mxu0 0.0
  %1714 = vmatmul.mubr.f32.gmra.mrb[0].mxu0 %v665
  %v1715 = vpop.f32.mrb[0].mxu0
  %v1716 = vadd.f32 %v268, %v1715
  %v1717 = vpop.f32.mrb[0].mxu0
  %1718 = vmatprep.mubr.f32.mxu0 0.0
  %1719 = vmatmul.mubr.f32.gmra.mrb[0].mxu0 %v668
  %v1720 = vpop.f32.mrb[0].mxu0
  %v1721 = vadd.f32 %v268, %v1720
  %v1722 = vpop.f32.mrb[0].mxu0
  %1723 = vmatprep.mubr.f32.mxu0 0.0
  %1724 = vmatmul.mubr.f32.gmra.mrb[0].mxu0 %v671
  %v1725 = vpop.f32.mrb[0].mxu0
  %v1726 = vadd.f32 %v268, %v1725
  %v1727 = vpop.f32.mrb[0].mxu0
  %1728 = vmatprep.mubr.f32.mxu0 0.0
  %1729 = vmatmul.mubr.f32.gmra.mrb[0].mxu0 %v674
  %v1730 = vpop.f32.mrb[0].mxu0
  %v1731 = vadd.f32 %v268, %v1730
  %v1732 = vpop.f32.mrb[0].mxu0
  %1733 = vmatprep.mubr.f32.mxu0 0.0
  %1734 = vmatmul.mubr.f32.gmra.mrb[0].mxu0 %v677
  %v1735 = vpop.f32.mrb[0].mxu0
  %v1736 = vadd.f32 %v268, %v1735
  %v1737 = vpop.f32.mrb[0].mxu0
  %1738 = vmatprep.mubr.f32.mxu0 0.0
  %1739 = vmatmul.mubr.f32.gmra.mrb[0].mxu0 %v680
  %v1740 = vpop.f32.mrb[0].mxu0
  %v1741 = vadd.f32 %v268, %v1740
  %v1742 = vpop.f32.mrb[0].mxu0
  %1743 = vmatprep.mubr.f32.mxu0 0.0
  %1744 = vmatmul.mubr.f32.gmra.mrb[0].mxu0 %v683
  %v1745 = vpop.f32.mrb[0].mxu0
  %v1746 = vadd.f32 %v268, %v1745
  %v1747 = vpop.f32.mrb[0].mxu0
  %1748 = vmatprep.mubr.f32.mxu0 0.0
  %1749 = vmatmul.mubr.f32.gmra.mrb[0].mxu0 %v686
  %v1750 = vpop.f32.mrb[0].mxu0
  %v1751 = vadd.f32 %v268, %v1750
  %v1752 = vpop.f32.mrb[0].mxu0
  %1753 = vmatprep.mubr.f32.mxu0 0.0
  %1754 = vmatmul.mubr.f32.gmra.mrb[0].mxu0 %v689
  %v1755 = vpop.f32.mrb[0].mxu0
  %v1756 = vadd.f32 %v268, %v1755
  %v1757 = vpop.f32.mrb[0].mxu0
  %1758 = vmatprep.mubr.f32.mxu0 0.0
  %1759 = vmatmul.mubr.f32.gmra.mrb[0].mxu0 %v692
  %v1760 = vpop.f32.mrb[0].mxu0
  %v1761 = vadd.f32 %v268, %v1760
  %v1762 = vpop.f32.mrb[0].mxu0
  %1763 = vmatprep.mubr.f32.mxu0 0.0
  %1764 = vmatmul.mubr.f32.gmra.mrb[0].mxu0 %v695
  %v1765 = vpop.f32.mrb[0].mxu0
  %v1766 = vadd.f32 %v268, %v1765
  %v1767 = vpop.f32.mrb[0].mxu0
  %1768 = vmatprep.mubr.f32.mxu0 0.0
  %1769 = vmatmul.mubr.f32.gmra.mrb[0].mxu0 %v698
  %v1770 = vpop.f32.mrb[0].mxu0
  %v1771 = vadd.f32 %v268, %v1770
  %v1772 = vpop.f32.mrb[0].mxu0
  %1773 = vmatprep.mubr.f32.mxu0 0.0
  %1774 = vmatmul.mubr.f32.gmra.mrb[0].mxu0 %v701
  %v1775 = vpop.f32.mrb[0].mxu0
  %v1776 = vadd.f32 %v268, %v1775
  %v1777 = vpop.f32.mrb[0].mxu0
  %1778 = vmatprep.mubr.f32.mxu0 0.0
  %1779 = vmatmul.mubr.f32.gmra.mrb[0].mxu0 %v704
  %v1780 = vpop.f32.mrb[0].mxu0
  %v1781 = vadd.f32 %v268, %v1780
  %v1782 = vpop.f32.mrb[0].mxu0
  %1783 = vmatprep.mubr.f32.mxu0 0.0
  %1784 = vmatmul.mubr.f32.gmra.mrb[0].mxu0 %v707
  %v1785 = vpop.f32.mrb[0].mxu0
  %v1786 = vadd.f32 %v268, %v1785
  %v1787 = vpop.f32.mrb[0].mxu0
  %1788 = vmatprep.mubr.f32.mxu0 0.0
  %1789 = vmatmul.mubr.f32.gmra.mrb[0].mxu0 %v710
  %v1790 = vpop.f32.mrb[0].mxu0
  %v1791 = vadd.f32 %v268, %v1790
  %v1792 = vpop.f32.mrb[0].mxu0
  %1793 = vmatprep.mubr.f32.mxu0 0.0
  %1794 = vmatmul.mubr.f32.gmra.mrb[0].mxu0 %v713
  %v1795 = vpop.f32.mrb[0].mxu0
  %v1796 = vadd.f32 %v268, %v1795
  %v1797 = vpop.f32.mrb[0].mxu0
  %1798 = vmatprep.mubr.f32.mxu0 0.0
  %1799 = vmatmul.mubr.f32.gmra.mrb[0].mxu0 %v716
  %v1800 = vpop.f32.mrb[0].mxu0
  %v1801 = vadd.f32 %v268, %v1800
  %v1802 = vpop.f32.mrb[0].mxu0
  %1803 = vmatprep.mubr.f32.mxu0 0.0
  %1804 = vmatmul.mubr.f32.gmra.mrb[0].mxu0 %v719
  %v1805 = vpop.f32.mrb[0].mxu0
  %v1806 = vadd.f32 %v268, %v1805
  %v1807 = vpop.f32.mrb[0].mxu0
  %1808 = vmatprep.mubr.f32.mxu0 0.0
  %1809 = vmatmul.mubr.f32.gmra.mrb[0].mxu0 %v722
  %v1810 = vpop.f32.mrb[0].mxu0
  %v1811 = vadd.f32 %v268, %v1810
  %v1812 = vpop.f32.mrb[0].mxu0
  %1813 = vmatprep.mubr.f32.mxu0 0.0
  %1814 = vmatmul.mubr.f32.gmra.mrb[0].mxu0 %v725
  %v1815 = vpop.f32.mrb[0].mxu0
  %v1816 = vadd.f32 %v268, %v1815
  %v1817 = vpop.f32.mrb[0].mxu0
  %1818 = vmatprep.mubr.f32.mxu0 0.0
  %1819 = vmatmul.mubr.f32.gmra.mrb[0].mxu0 %v728
  %v1820 = vpop.f32.mrb[0].mxu0
  %v1821 = vadd.f32 %v268, %v1820
  %v1822 = vpop.f32.mrb[0].mxu0
  %1823 = vmatprep.mubr.f32.mxu0 0.0
  %1824 = vmatmul.mubr.f32.gmra.mrb[0].mxu0 %v731
  %v1825 = vpop.f32.mrb[0].mxu0
  %v1826 = vadd.f32 %v268, %v1825
  %v1827 = vpop.f32.mrb[0].mxu0
  %1828 = vmatprep.mubr.f32.mxu0 0.0
  %1829 = vmatmul.mubr.f32.gmra.mrb[0].mxu0 %v734
  %v1830 = vpop.f32.mrb[0].mxu0
  %v1831 = vadd.f32 %v268, %v1830
  %v1832 = vpop.f32.mrb[0].mxu0
  %1833 = vmatprep.mubr.f32.mxu0 0.0
  %1834 = vmatmul.mubr.f32.gmra.mrb[0].mxu0 %v737
  %v1835 = vpop.f32.mrb[0].mxu0
  %v1836 = vadd.f32 %v268, %v1835
  %v1837 = vpop.f32.mrb[0].mxu0
  %1838 = vmatprep.mubr.f32.mxu0 0.0
  %1839 = vmatmul.mubr.f32.gmra.mrb[0].mxu0 %v740
  %v1840 = vpop.f32.mrb[0].mxu0
  %v1841 = vadd.f32 %v268, %v1840
  %v1842 = vpop.f32.mrb[0].mxu0
  %1843 = vmatprep.mubr.f32.mxu0 0.0
  %1844 = vmatmul.mubr.f32.gmra.mrb[0].mxu0 %v743
  %v1845 = vpop.f32.mrb[0].mxu0
  %v1846 = vadd.f32 %v268, %v1845
  %v1847 = vpop.f32.mrb[0].mxu0
  %1848 = vmatprep.mubr.f32.mxu0 0.0
  %1849 = vmatmul.mubr.f32.gmra.mrb[0].mxu0 %v746
  %v1850 = vpop.f32.mrb[0].mxu0
  %v1851 = vadd.f32 %v268, %v1850
  %v1852 = vpop.f32.mrb[0].mxu0
  %1853 = vmatprep.mubr.f32.mxu0 0.0
  %1854 = vmatmul.mubr.f32.gmra.mrb[0].mxu0 %v749
  %v1855 = vpop.f32.mrb[0].mxu0
  %v1856 = vadd.f32 %v268, %v1855
  %v1857 = vpop.f32.mrb[0].mxu0
  %1858 = vmatprep.mubr.f32.mxu0 0.0
  %1859 = vmatmul.mubr.f32.gmra.mrb[0].mxu0 %v752
  %v1860 = vpop.f32.mrb[0].mxu0
  %v1861 = vadd.f32 %v268, %v1860
  %v1862 = vpop.f32.mrb[0].mxu0
  %1863 = vmatprep.mubr.f32.mxu0 0.0
  %1864 = vmatmul.mubr.f32.gmra.mrb[0].mxu0 %v755
  %v1865 = vpop.f32.mrb[0].mxu0
  %v1866 = vadd.f32 %v268, %v1865
  %v1867 = vpop.f32.mrb[0].mxu0
  %1868 = vmatprep.mubr.f32.mxu0 0.0
  %1869 = vmatmul.mubr.f32.gmra.mrb[0].mxu0 %v758
  %v1870 = vpop.f32.mrb[0].mxu0
  %v1871 = vadd.f32 %v268, %v1870
  %v1872 = vpop.f32.mrb[0].mxu0
  %1873 = vmatprep.mubr.f32.mxu0 0.0
  %1874 = vmatmul.mubr.f32.gmra.mrb[0].mxu0 %v761
  %v1875 = vpop.f32.mrb[0].mxu0
  %v1876 = vadd.f32 %v268, %v1875
  %v1877 = vpop.f32.mrb[0].mxu0
  %1878 = vmatprep.mubr.f32.mxu0 0.0
  %1879 = vmatmul.mubr.f32.gmra.mrb[0].mxu0 %v764
  %v1880 = vpop.f32.mrb[0].mxu0
  %v1881 = vadd.f32 %v268, %v1880
  %v1882 = vpop.f32.mrb[0].mxu0
  %1883 = vmatprep.mubr.f32.mxu0 0.0
  %1884 = vmatmul.mubr.f32.gmra.mrb[0].mxu0 %v767
  %v1885 = vpop.f32.mrb[0].mxu0
  %v1886 = vadd.f32 %v268, %v1885
  %v1887 = vpop.f32.mrb[0].mxu0
  %1888 = vmatprep.mubr.f32.mxu0 0.0
  %1889 = vmatmul.mubr.f32.gmra.mrb[0].mxu0 %v770
  %v1890 = vpop.f32.mrb[0].mxu0
  %v1891 = vadd.f32 %v268, %v1890
  %v1892 = vpop.f32.mrb[0].mxu0
  %1893 = vmatprep.mubr.f32.mxu0 0.0
  %1894 = vmatmul.mubr.f32.gmra.mrb[0].mxu0 %v773
  %v1895 = vpop.f32.mrb[0].mxu0
  %v1896 = vadd.f32 %v268, %v1895
  %v1897 = vpop.f32.mrb[0].mxu0
  %1898 = vmatprep.mubr.f32.mxu0 0.0
  %1899 = vmatmul.mubr.f32.gmra.mrb[0].mxu0 %v776
  %v1900 = vpop.f32.mrb[0].mxu0
  %v1901 = vadd.f32 %v268, %v1900
  %v1902 = vpop.f32.mrb[0].mxu0
  %1903 = vmatprep.mubr.f32.mxu0 0.0
  %1904 = vmatmul.mubr.f32.gmra.mrb[0].mxu0 %v779
  %v1905 = vpop.f32.mrb[0].mxu0
  %v1906 = vadd.f32 %v268, %v1905
  %v1907 = vpop.f32.mrb[0].mxu0
  %1908 = vmatprep.mubr.f32.mxu0 0.0
  %1909 = vmatmul.mubr.f32.gmra.mrb[0].mxu0 %v782
  %v1910 = vpop.f32.mrb[0].mxu0
  %v1911 = vadd.f32 %v268, %v1910
  %v1912 = vpop.f32.mrb[0].mxu0
  %1913 = vmatprep.mubr.f32.mxu0 0.0
  %1914 = vmatmul.mubr.f32.gmra.mrb[0].mxu0 %v785
  %v1915 = vpop.f32.mrb[0].mxu0
  %v1916 = vadd.f32 %v268, %v1915
  %v1917 = vpop.f32.mrb[0].mxu0
  %1918 = vmatprep.mubr.f32.mxu0 0.0
  %1919 = vmatmul.mubr.f32.gmra.mrb[0].mxu0 %v788
  %v1920 = vpop.f32.mrb[0].mxu0
  %v1921 = vadd.f32 %v268, %v1920
  %v1922 = vpop.f32.mrb[0].mxu0
  %1923 = vmatprep.mubr.f32.mxu0 0.0
  %1924 = vmatmul.mubr.f32.gmra.mrb[0].mxu0 %v791
  %v1925 = vpop.f32.mrb[0].mxu0
  %v1926 = vadd.f32 %v268, %v1925
  %v1927 = vpop.f32.mrb[0].mxu0
  %1928 = vmatprep.mubr.f32.mxu0 0.0
  %1929 = vmatmul.mubr.f32.gmra.mrb[0].mxu0 %v794
  %v1930 = vpop.f32.mrb[0].mxu0
  %v1931 = vadd.f32 %v268, %v1930
  %v1932 = vpop.f32.mrb[0].mxu0
  %1933 = vmatprep.mubr.f32.mxu0 0.0
  %1934 = vmatmul.mubr.f32.gmra.mrb[0].mxu0 %v797
  %v1935 = vpop.f32.mrb[0].mxu0
  %v1936 = vadd.f32 %v268, %v1935
  %v1937 = vpop.f32.mrb[0].mxu0
  %1938 = vmatprep.mubr.f32.mxu0 0.0
  %1939 = vmatmul.mubr.f32.gmra.mrb[0].mxu0 %v800
  %v1940 = vpop.f32.mrb[0].mxu0
  %v1941 = vadd.f32 %v268, %v1940
  %v1942 = vpop.f32.mrb[0].mxu0
  %1943 = vmatprep.mubr.f32.mxu0 0.0
  %1944 = vmatmul.mubr.f32.gmra.mrb[0].mxu0 %v803
  %v1945 = vpop.f32.mrb[0].mxu0
  %v1946 = vadd.f32 %v268, %v1945
  %v1947 = vpop.f32.mrb[0].mxu0
  %1948 = vmatprep.mubr.f32.mxu0 0.0
  %1949 = vmatmul.mubr.f32.gmra.mrb[0].mxu0 %v806
  %v1950 = vpop.f32.mrb[0].mxu0
  %v1951 = vadd.f32 %v268, %v1950
  %v1952 = vpop.f32.mrb[0].mxu0
  %1953 = vmatprep.mubr.f32.mxu0 0.0
  %1954 = vmatmul.mubr.f32.gmra.mrb[0].mxu0 %v809
  %v1955 = vpop.f32.mrb[0].mxu0
  %v1956 = vadd.f32 %v268, %v1955
  %v1957 = vpop.f32.mrb[0].mxu0
  %1958 = vmatprep.mubr.f32.mxu0 0.0
  %1959 = vmatmul.mubr.f32.gmra.mrb[0].mxu0 %v812
  %v1960 = vpop.f32.mrb[0].mxu0
  %v1961 = vadd.f32 %v268, %v1960
  %v1962 = vpop.f32.mrb[0].mxu0
  %1963 = vmatprep.mubr.f32.mxu0 0.0
  %1964 = vmatmul.mubr.f32.gmra.mrb[0].mxu0 %v815
  %v1965 = vpop.f32.mrb[0].mxu0
  %v1966 = vadd.f32 %v268, %v1965
  %v1967 = vpop.f32.mrb[0].mxu0
  %1968 = vmatprep.mubr.f32.mxu0 0.0
  %1969 = vmatmul.mubr.f32.gmra.mrb[0].mxu0 %v818
  %v1970 = vpop.f32.mrb[0].mxu0
  %v1971 = vadd.f32 %v268, %v1970
  %v1972 = vpop.f32.mrb[0].mxu0
  %1973 = vmatprep.mubr.f32.mxu0 0.0
  %1974 = vmatmul.mubr.f32.gmra.mrb[0].mxu0 %v821
  %v1975 = vpop.f32.mrb[0].mxu0
  %v1976 = vadd.f32 %v268, %v1975
  %v1977 = vpop.f32.mrb[0].mxu0
  %1978 = vmatprep.mubr.f32.mxu0 0.0
  %1979 = vmatmul.mubr.f32.gmra.mrb[0].mxu0 %v824
  %v1980 = vpop.f32.mrb[0].mxu0
  %v1981 = vadd.f32 %v268, %v1980
  %v1982 = vpop.f32.mrb[0].mxu0
  %1983 = vmatprep.mubr.f32.mxu0 0.0
  %1984 = vmatmul.mubr.f32.gmra.mrb[0].mxu0 %v827
  %v1985 = vpop.f32.mrb[0].mxu0
  %v1986 = vadd.f32 %v268, %v1985
  %v1987 = vpop.f32.mrb[0].mxu0
  %1988 = vmatprep.mubr.f32.mxu0 0.0
  %1989 = vmatmul.mubr.f32.gmra.mrb[0].mxu0 %v830
  %v1990 = vpop.f32.mrb[0].mxu0
  %v1991 = vadd.f32 %v268, %v1990
  %v1992 = vpop.f32.mrb[0].mxu0
  %1993 = vmatprep.mubr.f32.mxu0 0.0
  %1994 = vmatmul.mubr.f32.gmra.mrb[0].mxu0 %v833
  %v1995 = vpop.f32.mrb[0].mxu0
  %v1996 = vadd.f32 %v268, %v1995
  %v1997 = vpop.f32.mrb[0].mxu0
  %1998 = vmatprep.mubr.f32.mxu0 0.0
  %1999 = vmatmul.mubr.f32.gmra.mrb[0].mxu0 %v836
  %v2000 = vpop.f32.mrb[0].mxu0
  %v2001 = vadd.f32 %v268, %v2000
  %v2002 = vpop.f32.mrb[0].mxu0
  %2003 = vmatprep.mubr.f32.mxu0 0.0
  %2004 = vmatmul.mubr.f32.gmra.mrb[0].mxu0 %v839
  %v2005 = vpop.f32.mrb[0].mxu0
  %v2006 = vadd.f32 %v268, %v2005
  %v2007 = vpop.f32.mrb[0].mxu0
  %2008 = vmatprep.mubr.f32.mxu0 0.0
  %2009 = vmatmul.mubr.f32.gmra.mrb[0].mxu0 %v842
  %v2010 = vpop.f32.mrb[0].mxu0
  %v2011 = vadd.f32 %v268, %v2010
  %v2012 = vpop.f32.mrb[0].mxu0
  %2013 = vmatprep.mubr.f32.mxu0 0.0
  %2014 = vmatmul.mubr.f32.gmra.mrb[0].mxu0 %v845
  %v2015 = vpop.f32.mrb[0].mxu0
  %v2016 = vadd.f32 %v268, %v2015
  %v2017 = vpop.f32.mrb[0].mxu0
  %2018 = vmatprep.mubr.f32.mxu0 0.0
  %2019 = vmatmul.mubr.f32.gmra.mrb[0].mxu0 %v848
  %v2020 = vpop.f32.mrb[0].mxu0
  %v2021 = vadd.f32 %v268, %v2020
  %v2022 = vpop.f32.mrb[0].mxu0
  %2023 = vmatprep.mubr.f32.mxu0 0.0
  %2024 = vmatmul.mubr.f32.gmra.mrb[0].mxu0 %v851
  %v2025 = vpop.f32.mrb[0].mxu0
  %v2026 = vadd.f32 %v268, %v2025
  %v2027 = vpop.f32.mrb[0].mxu0
  %2028 = vmatprep.mubr.f32.mxu0 0.0
  %2029 = vmatmul.mubr.f32.gmra.mrb[0].mxu0 %v854
  %v2030 = vpop.f32.mrb[0].mxu0
  %v2031 = vadd.f32 %v268, %v2030
  %v2032 = vpop.f32.mrb[0].mxu0
  %2033 = vmatprep.mubr.f32.mxu0 0.0
  %2034 = vmatmul.mubr.f32.gmra.mrb[0].mxu0 %v857
  %v2035 = vpop.f32.mrb[0].mxu0
  %v2036 = vadd.f32 %v268, %v2035
  %v2037 = vpop.f32.mrb[0].mxu0
  %2038 = vmatprep.mubr.f32.mxu0 0.0
  %2039 = vmatmul.mubr.f32.gmra.mrb[0].mxu0 %v860
  %v2040 = vpop.f32.mrb[0].mxu0
  %v2041 = vadd.f32 %v268, %v2040
  %v2042 = vpop.f32.mrb[0].mxu0
  %2043 = vmatprep.mubr.f32.mxu0 0.0
  %2044 = vmatmul.mubr.f32.gmra.mrb[0].mxu0 %v863
  %v2045 = vpop.f32.mrb[0].mxu0
  %v2046 = vadd.f32 %v268, %v2045
  %v2047 = vpop.f32.mrb[0].mxu0
  %2048 = vmatprep.mubr.f32.mxu0 0.0
  %2049 = vmatmul.mubr.f32.gmra.mrb[0].mxu0 %v866
  %v2050 = vpop.f32.mrb[0].mxu0
  %v2051 = vadd.f32 %v268, %v2050
  %v2052 = vpop.f32.mrb[0].mxu0
  %2053 = vmatprep.mubr.f32.mxu0 0.0
  %2054 = vmatmul.mubr.f32.gmra.mrb[0].mxu0 %v869
  %v2055 = vpop.f32.mrb[0].mxu0
  %v2056 = vadd.f32 %v268, %v2055
  %v2057 = vpop.f32.mrb[0].mxu0
  %2058 = vmatprep.mubr.f32.mxu0 0.0
  %2059 = vmatmul.mubr.f32.gmra.mrb[0].mxu0 %v872
  %v2060 = vpop.f32.mrb[0].mxu0
  %v2061 = vadd.f32 %v268, %v2060
  %v2062 = vpop.f32.mrb[0].mxu0
  %2063 = vmatprep.mubr.f32.mxu0 0.0
  %2064 = vmatmul.mubr.f32.gmra.mrb[0].mxu0 %v875
  %v2065 = vpop.f32.mrb[0].mxu0
  %v2066 = vadd.f32 %v268, %v2065
  %v2067 = vpop.f32.mrb[0].mxu0
  %2068 = vmatprep.mubr.f32.mxu0 0.0
  %2069 = vmatmul.mubr.f32.gmra.mrb[0].mxu0 %v878
  %v2070 = vpop.f32.mrb[0].mxu0
  %v2071 = vadd.f32 %v268, %v2070
  %v2072 = vpop.f32.mrb[0].mxu0
  %2073 = vmatprep.mubr.f32.mxu0 0.0
  %2074 = vmatmul.mubr.f32.gmra.mrb[0].mxu0 %v881
  %v2075 = vpop.f32.mrb[0].mxu0
  %v2076 = vadd.f32 %v268, %v2075
  %v2077 = vpop.f32.mrb[0].mxu0
  %2078 = vmatprep.mubr.f32.mxu0 0.0
  %2079 = vmatmul.mubr.f32.gmra.mrb[0].mxu0 %v884
  %v2080 = vpop.f32.mrb[0].mxu0
  %v2081 = vadd.f32 %v268, %v2080
  %v2082 = vpop.f32.mrb[0].mxu0
  %2083 = vmatprep.mubr.f32.mxu0 0.0
  %2084 = vmatmul.mubr.f32.gmra.mrb[0].mxu0 %v887
  %v2085 = vpop.f32.mrb[0].mxu0
  %v2086 = vadd.f32 %v268, %v2085
  %v2087 = vpop.f32.mrb[0].mxu0
  %2088 = vmatprep.mubr.f32.mxu0 0.0
  %2089 = vmatmul.mubr.f32.gmra.mrb[0].mxu0 %v890
  %v2090 = vpop.f32.mrb[0].mxu0
  %v2091 = vadd.f32 %v268, %v2090
  %v2092 = vpop.f32.mrb[0].mxu0
  %2093 = vmatprep.mubr.f32.mxu0 0.0
  %2094 = vmatmul.mubr.f32.gmra.mrb[0].mxu0 %v893
  %v2095 = vpop.f32.mrb[0].mxu0
  %v2096 = vadd.f32 %v268, %v2095
  %v2097 = vpop.f32.mrb[0].mxu0
  %2098 = vmatprep.mubr.f32.mxu0 0.0
  %2099 = vmatmul.mubr.f32.gmra.mrb[0].mxu0 %v896
  %v2100 = vpop.f32.mrb[0].mxu0
  %v2101 = vadd.f32 %v268, %v2100
  %v2102 = vpop.f32.mrb[0].mxu0
  %2103 = vmatprep.mubr.f32.mxu0 0.0
  %2104 = vmatmul.mubr.f32.gmra.mrb[0].mxu0 %v899
  %v2105 = vpop.f32.mrb[0].mxu0
  %v2106 = vadd.f32 %v268, %v2105
  %v2107 = vpop.f32.mrb[0].mxu0
  %2108 = vmatprep.mubr.f32.mxu0 0.0
  %2109 = vmatmul.mubr.f32.gmra.mrb[0].mxu0 %v902
  %v2110 = vpop.f32.mrb[0].mxu0
  %v2111 = vadd.f32 %v268, %v2110
  %v2112 = vpop.f32.mrb[0].mxu0
  %2113 = vmatprep.mubr.f32.mxu0 0.0
  %2114 = vmatmul.mubr.f32.gmra.mrb[0].mxu0 %v905
  %v2115 = vpop.f32.mrb[0].mxu0
  %v2116 = vadd.f32 %v268, %v2115
  %v2117 = vpop.f32.mrb[0].mxu0
  %2118 = vmatprep.mubr.f32.mxu0 0.0
  %2119 = vmatmul.mubr.f32.gmra.mrb[0].mxu0 %v908
  %v2120 = vpop.f32.mrb[0].mxu0
  %v2121 = vadd.f32 %v268, %v2120
  %v2122 = vpop.f32.mrb[0].mxu0
  %2123 = vmatprep.mubr.f32.mxu0 0.0
  %2124 = vmatmul.mubr.f32.gmra.mrb[0].mxu0 %v911
  %v2125 = vpop.f32.mrb[0].mxu0
  %v2126 = vadd.f32 %v268, %v2125
  %v2127 = vpop.f32.mrb[0].mxu0
  %2128 = vmatprep.mubr.f32.mxu0 0.0
  %2129 = vmatmul.mubr.f32.gmra.mrb[0].mxu0 %v914
  %v2130 = vpop.f32.mrb[0].mxu0
  %v2131 = vadd.f32 %v268, %v2130
  %v2132 = vpop.f32.mrb[0].mxu0
  %2133 = vmatprep.mubr.f32.mxu0 0.0
  %2134 = vmatmul.mubr.f32.gmra.mrb[0].mxu0 %v917
  %v2135 = vpop.f32.mrb[0].mxu0
  %v2136 = vadd.f32 %v268, %v2135
  %v2137 = vpop.f32.mrb[0].mxu0
  %2138 = vmatprep.mubr.f32.mxu0 0.0
  %2139 = vmatmul.mubr.f32.gmra.mrb[0].mxu0 %v920
  %v2140 = vpop.f32.mrb[0].mxu0
  %v2141 = vadd.f32 %v268, %v2140
  %v2142 = vpop.f32.mrb[0].mxu0
  %2143 = vmatprep.mubr.f32.mxu0 0.0
  %2144 = vmatmul.mubr.f32.gmra.mrb[0].mxu0 %v923
  %v2145 = vpop.f32.mrb[0].mxu0
  %v2146 = vadd.f32 %v268, %v2145
  %v2147 = vpop.f32.mrb[0].mxu0
  %2148 = vmatprep.mubr.f32.mxu0 0.0
  %2149 = vmatmul.mubr.f32.gmra.mrb[0].mxu0 %v926
  %v2150 = vpop.f32.mrb[0].mxu0
  %v2151 = vadd.f32 %v268, %v2150
  %v2152 = vpop.f32.mrb[0].mxu0
  %2153 = vmatprep.mubr.f32.mxu0 0.0
  %2154 = vmatmul.mubr.f32.gmra.mrb[0].mxu0 %v929
  %v2155 = vpop.f32.mrb[0].mxu0
  %v2156 = vadd.f32 %v268, %v2155
  %v2157 = vpop.f32.mrb[0].mxu0
  %2158 = vmatprep.mubr.f32.mxu0 0.0
  %2159 = vmatmul.mubr.f32.gmra.mrb[0].mxu0 %v932
  %v2160 = vpop.f32.mrb[0].mxu0
  %v2161 = vadd.f32 %v268, %v2160
  %v2162 = vpop.f32.mrb[0].mxu0
  %2163 = vmatprep.mubr.f32.mxu0 0.0
  %2164 = vmatmul.mubr.f32.gmra.mrb[0].mxu0 %v935
  %v2165 = vpop.f32.mrb[0].mxu0
  %v2166 = vadd.f32 %v268, %v2165
  %v2167 = vpop.f32.mrb[0].mxu0
  %2168 = vmatprep.mubr.f32.mxu0 0.0
  %2169 = vmatmul.mubr.f32.gmra.mrb[0].mxu0 %v938
  %v2170 = vpop.f32.mrb[0].mxu0
  %v2171 = vadd.f32 %v268, %v2170
  %v2172 = vpop.f32.mrb[0].mxu0
  %2173 = vmatprep.mubr.f32.mxu0 0.0
  %2174 = vmatmul.mubr.f32.gmra.mrb[0].mxu0 %v941
  %v2175 = vpop.f32.mrb[0].mxu0
  %v2176 = vadd.f32 %v268, %v2175
  %v2177 = vpop.f32.mrb[0].mxu0
  %2178 = vmatprep.mubr.f32.mxu0 0.0
  %2179 = vmatmul.mubr.f32.gmra.mrb[0].mxu0 %v944
  %v2180 = vpop.f32.mrb[0].mxu0
  %v2181 = vadd.f32 %v268, %v2180
  %v2182 = vpop.f32.mrb[0].mxu0
  %2183 = vmatprep.mubr.f32.mxu0 0.0
  %2184 = vmatmul.mubr.f32.gmra.mrb[0].mxu0 %v947
  %v2185 = vpop.f32.mrb[0].mxu0
  %v2186 = vadd.f32 %v268, %v2185
  %v2187 = vpop.f32.mrb[0].mxu0
  %2188 = vmatprep.mubr.f32.mxu0 0.0
  %2189 = vmatmul.mubr.f32.gmra.mrb[0].mxu0 %v950
  %v2190 = vpop.f32.mrb[0].mxu0
  %v2191 = vadd.f32 %v268, %v2190
  %v2192 = vpop.f32.mrb[0].mxu0
  %2193 = vmatprep.mubr.f32.mxu0 0.0
  %2194 = vmatmul.mubr.f32.gmra.mrb[0].mxu0 %v953
  %v2195 = vpop.f32.mrb[0].mxu0
  %v2196 = vadd.f32 %v268, %v2195
  %v2197 = vpop.f32.mrb[0].mxu0
  %2198 = vmatprep.mubr.f32.mxu0 0.0
  %2199 = vmatmul.mubr.f32.gmra.mrb[0].mxu0 %v956
  %v2200 = vpop.f32.mrb[0].mxu0
  %v2201 = vadd.f32 %v268, %v2200
  %v2202 = vpop.f32.mrb[0].mxu0
  %2203 = vmatprep.mubr.f32.mxu0 0.0
  %2204 = vmatmul.mubr.f32.gmra.mrb[0].mxu0 %v959
  %v2205 = vpop.f32.mrb[0].mxu0
  %v2206 = vadd.f32 %v268, %v2205
  %v2207 = vpop.f32.mrb[0].mxu0
  %2208 = vmatprep.mubr.f32.mxu0 0.0
  %2209 = vmatmul.mubr.f32.gmra.mrb[0].mxu0 %v962
  %v2210 = vpop.f32.mrb[0].mxu0
  %v2211 = vadd.f32 %v268, %v2210
  %v2212 = vpop.f32.mrb[0].mxu0
  %2213 = vmatprep.mubr.f32.mxu0 0.0
  %2214 = vmatmul.mubr.f32.gmra.mrb[0].mxu0 %v965
  %v2215 = vpop.f32.mrb[0].mxu0
  %v2216 = vadd.f32 %v268, %v2215
  %v2217 = vpop.f32.mrb[0].mxu0
  %2218 = vmatprep.mubr.f32.mxu0 0.0
  %2219 = vmatmul.mubr.f32.gmra.mrb[0].mxu0 %v968
  %v2220 = vpop.f32.mrb[0].mxu0
  %v2221 = vadd.f32 %v268, %v2220
  %v2222 = vpop.f32.mrb[0].mxu0
  %2223 = vmatprep.mubr.f32.mxu0 0.0
  %2224 = vmatmul.mubr.f32.gmra.mrb[0].mxu0 %v971
  %v2225 = vpop.f32.mrb[0].mxu0
  %v2226 = vadd.f32 %v268, %v2225
  %v2227 = vpop.f32.mrb[0].mxu0
  %2228 = vmatprep.mubr.f32.mxu0 0.0
  %2229 = vmatmul.mubr.f32.gmra.mrb[0].mxu0 %v974
  %v2230 = vpop.f32.mrb[0].mxu0
  %v2231 = vadd.f32 %v268, %v2230
  %v2232 = vpop.f32.mrb[0].mxu0
  %2233 = vmatprep.mubr.f32.mxu0 0.0
  %2234 = vmatmul.mubr.f32.gmra.mrb[0].mxu0 %v977
  %v2235 = vpop.f32.mrb[0].mxu0
  %v2236 = vadd.f32 %v268, %v2235
  %v2237 = vpop.f32.mrb[0].mxu0
  %2238 = vmatprep.mubr.f32.mxu0 0.0
  %2239 = vmatmul.mubr.f32.gmra.mrb[0].mxu0 %v980
  %v2240 = vpop.f32.mrb[0].mxu0
  %v2241 = vadd.f32 %v268, %v2240
  %v2242 = vpop.f32.mrb[0].mxu0
  %2243 = vmatprep.mubr.f32.mxu0 0.0
  %2244 = vmatmul.mubr.f32.gmra.mrb[0].mxu0 %v983
  %v2245 = vpop.f32.mrb[0].mxu0
  %v2246 = vadd.f32 %v268, %v2245
  %v2247 = vpop.f32.mrb[0].mxu0
  %2248 = vmatprep.mubr.f32.mxu0 0.0
  %2249 = vmatmul.mubr.f32.gmra.mrb[0].mxu0 %v986
  %v2250 = vpop.f32.mrb[0].mxu0
  %v2251 = vadd.f32 %v268, %v2250
  %v2252 = vpop.f32.mrb[0].mxu0
  %2253 = vmatprep.mubr.f32.mxu0 0.0
  %2254 = vmatmul.mubr.f32.gmra.mrb[0].mxu0 %v989
  %v2255 = vpop.f32.mrb[0].mxu0
  %v2256 = vadd.f32 %v268, %v2255
  %v2257 = vpop.f32.mrb[0].mxu0
  %2258 = vmatprep.mubr.f32.mxu0 0.0
  %2259 = vmatmul.mubr.f32.gmra.mrb[0].mxu0 %v992
  %v2260 = vpop.f32.mrb[0].mxu0
  %v2261 = vadd.f32 %v268, %v2260
  %v2262 = vpop.f32.mrb[0].mxu0
  %2263 = vdwg.mxu0
  %v2264 = vmax.f32 %v1061, 0.0
  %v2265 = vmax.f32 %v1066, 0.0
  %v2266 = vmax.f32 %v1071, 0.0
  %v2267 = vmax.f32 %v1076, 0.0
  %v2268 = vmax.f32 %v1081, 0.0
  %v2269 = vmax.f32 %v1086, 0.0
  %v2270 = vmax.f32 %v1091, 0.0
  %v2271 = vmax.f32 %v1096, 0.0
  %v2272 = vmax.f32 %v1101, 0.0
  %v2273 = vmax.f32 %v1106, 0.0
  %v2274 = vmax.f32 %v1111, 0.0
  %v2275 = vmax.f32 %v1116, 0.0
  %v2276 = vmax.f32 %v1121, 0.0
  %v2277 = vmax.f32 %v1126, 0.0
  %v2278 = vmax.f32 %v1131, 0.0
  %v2279 = vmax.f32 %v1136, 0.0
  %v2280 = vmax.f32 %v1141, 0.0
  %v2281 = vmax.f32 %v1146, 0.0
  %v2282 = vmax.f32 %v1151, 0.0
  %v2283 = vmax.f32 %v1156, 0.0
  %v2284 = vmax.f32 %v1161, 0.0
  %v2285 = vmax.f32 %v1166, 0.0
  %v2286 = vmax.f32 %v1171, 0.0
  %v2287 = vmax.f32 %v1176, 0.0
  %v2288 = vmax.f32 %v1181, 0.0
  %v2289 = vmax.f32 %v1186, 0.0
  %v2290 = vmax.f32 %v1191, 0.0
  %v2291 = vmax.f32 %v1196, 0.0
  %v2292 = vmax.f32 %v1201, 0.0
  %v2293 = vmax.f32 %v1206, 0.0
  %v2294 = vmax.f32 %v1211, 0.0
  %v2295 = vmax.f32 %v1216, 0.0
  %v2296 = vmax.f32 %v1221, 0.0
  %v2297 = vmax.f32 %v1226, 0.0
  %v2298 = vmax.f32 %v1231, 0.0
  %v2299 = vmax.f32 %v1236, 0.0
  %v2300 = vmax.f32 %v1241, 0.0
  %v2301 = vmax.f32 %v1246, 0.0
  %v2302 = vmax.f32 %v1251, 0.0
  %v2303 = vmax.f32 %v1256, 0.0
  %v2304 = vmax.f32 %v1261, 0.0
  %v2305 = vmax.f32 %v1266, 0.0
  %v2306 = vmax.f32 %v1271, 0.0
  %v2307 = vmax.f32 %v1276, 0.0
  %v2308 = vmax.f32 %v1281, 0.0
  %v2309 = vmax.f32 %v1286, 0.0
  %v2310 = vmax.f32 %v1291, 0.0
  %v2311 = vmax.f32 %v1296, 0.0
  %v2312 = vmax.f32 %v1301, 0.0
  %v2313 = vmax.f32 %v1306, 0.0
  %v2314 = vmax.f32 %v1311, 0.0
  %v2315 = vmax.f32 %v1316, 0.0
  %v2316 = vmax.f32 %v1321, 0.0
  %v2317 = vmax.f32 %v1326, 0.0
  %v2318 = vmax.f32 %v1331, 0.0
  %v2319 = vmax.f32 %v1336, 0.0
  %v2320 = vmax.f32 %v1341, 0.0
  %v2321 = vmax.f32 %v1346, 0.0
  %v2322 = vmax.f32 %v1351, 0.0
  %v2323 = vmax.f32 %v1356, 0.0
  %v2324 = vmax.f32 %v1361, 0.0
  %v2325 = vmax.f32 %v1366, 0.0
  %v2326 = vmax.f32 %v1371, 0.0
  %v2327 = vmax.f32 %v1376, 0.0
  %v2328 = vmax.f32 %v1381, 0.0
  %v2329 = vmax.f32 %v1386, 0.0
  %v2330 = vmax.f32 %v1391, 0.0
  %v2331 = vmax.f32 %v1396, 0.0
  %v2332 = vmax.f32 %v1401, 0.0
  %v2333 = vmax.f32 %v1406, 0.0
  %v2334 = vmax.f32 %v1411, 0.0
  %v2335 = vmax.f32 %v1416, 0.0
  %v2336 = vmax.f32 %v1421, 0.0
  %v2337 = vmax.f32 %v1426, 0.0
  %v2338 = vmax.f32 %v1431, 0.0
  %v2339 = vmax.f32 %v1436, 0.0
  %v2340 = vmax.f32 %v1441, 0.0
  %v2341 = vmax.f32 %v1446, 0.0
  %v2342 = vmax.f32 %v1451, 0.0
  %v2343 = vmax.f32 %v1456, 0.0
  %v2344 = vmax.f32 %v1461, 0.0
  %v2345 = vmax.f32 %v1466, 0.0
  %v2346 = vmax.f32 %v1471, 0.0
  %v2347 = vmax.f32 %v1476, 0.0
  %v2348 = vmax.f32 %v1481, 0.0
  %v2349 = vmax.f32 %v1486, 0.0
  %v2350 = vmax.f32 %v1491, 0.0
  %v2351 = vmax.f32 %v1496, 0.0
  %v2352 = vmax.f32 %v1501, 0.0
  %v2353 = vmax.f32 %v1506, 0.0
  %v2354 = vmax.f32 %v1511, 0.0
  %v2355 = vmax.f32 %v1516, 0.0
  %v2356 = vmax.f32 %v1521, 0.0
  %v2357 = vmax.f32 %v1526, 0.0
  %v2358 = vmax.f32 %v1531, 0.0
  %v2359 = vmax.f32 %v1536, 0.0
  %v2360 = vmax.f32 %v1541, 0.0
  %v2361 = vmax.f32 %v1546, 0.0
  %v2362 = vmax.f32 %v1551, 0.0
  %v2363 = vmax.f32 %v1556, 0.0
  %v2364 = vmax.f32 %v1561, 0.0
  %v2365 = vmax.f32 %v1566, 0.0
  %v2366 = vmax.f32 %v1571, 0.0
  %v2367 = vmax.f32 %v1576, 0.0
  %v2368 = vmax.f32 %v1581, 0.0
  %v2369 = vmax.f32 %v1586, 0.0
  %v2370 = vmax.f32 %v1591, 0.0
  %v2371 = vmax.f32 %v1596, 0.0
  %v2372 = vmax.f32 %v1601, 0.0
  %v2373 = vmax.f32 %v1606, 0.0
  %v2374 = vmax.f32 %v1611, 0.0
  %v2375 = vmax.f32 %v1616, 0.0
  %v2376 = vmax.f32 %v1621, 0.0
  %v2377 = vmax.f32 %v1626, 0.0
  %v2378 = vmax.f32 %v1631, 0.0
  %v2379 = vmax.f32 %v1636, 0.0
  %v2380 = vmax.f32 %v1641, 0.0
  %v2381 = vmax.f32 %v1646, 0.0
  %v2382 = vmax.f32 %v1651, 0.0
  %v2383 = vmax.f32 %v1656, 0.0
  %v2384 = vmax.f32 %v1661, 0.0
  %v2385 = vmax.f32 %v1666, 0.0
  %v2386 = vmax.f32 %v1671, 0.0
  %v2387 = vmax.f32 %v1676, 0.0
  %v2388 = vmax.f32 %v1681, 0.0
  %v2389 = vmax.f32 %v1686, 0.0
  %v2390 = vmax.f32 %v1691, 0.0
  %v2391 = vmax.f32 %v1696, 0.0
  %v2392 = vmax.f32 %v1701, 0.0
  %v2393 = vmax.f32 %v1706, 0.0
  %v2394 = vmax.f32 %v1711, 0.0
  %v2395 = vmax.f32 %v1716, 0.0
  %v2396 = vmax.f32 %v1721, 0.0
  %v2397 = vmax.f32 %v1726, 0.0
  %v2398 = vmax.f32 %v1731, 0.0
  %v2399 = vmax.f32 %v1736, 0.0
  %v2400 = vmax.f32 %v1741, 0.0
  %v2401 = vmax.f32 %v1746, 0.0
  %v2402 = vmax.f32 %v1751, 0.0
  %v2403 = vmax.f32 %v1756, 0.0
  %v2404 = vmax.f32 %v1761, 0.0
  %v2405 = vmax.f32 %v1766, 0.0
  %v2406 = vmax.f32 %v1771, 0.0
  %v2407 = vmax.f32 %v1776, 0.0
  %v2408 = vmax.f32 %v1781, 0.0
  %v2409 = vmax.f32 %v1786, 0.0
  %v2410 = vmax.f32 %v1791, 0.0
  %v2411 = vmax.f32 %v1796, 0.0
  %v2412 = vmax.f32 %v1801, 0.0
  %v2413 = vmax.f32 %v1806, 0.0
  %v2414 = vmax.f32 %v1811, 0.0
  %v2415 = vmax.f32 %v1816, 0.0
  %v2416 = vmax.f32 %v1821, 0.0
  %v2417 = vmax.f32 %v1826, 0.0
  %v2418 = vmax.f32 %v1831, 0.0
  %v2419 = vmax.f32 %v1836, 0.0
  %v2420 = vmax.f32 %v1841, 0.0
  %v2421 = vmax.f32 %v1846, 0.0
  %v2422 = vmax.f32 %v1851, 0.0
  %v2423 = vmax.f32 %v1856, 0.0
  %v2424 = vmax.f32 %v1861, 0.0
  %v2425 = vmax.f32 %v1866, 0.0
  %v2426 = vmax.f32 %v1871, 0.0
  %v2427 = vmax.f32 %v1876, 0.0
  %v2428 = vmax.f32 %v1881, 0.0
  %v2429 = vmax.f32 %v1886, 0.0
  %v2430 = vmax.f32 %v1891, 0.0
  %v2431 = vmax.f32 %v1896, 0.0
  %v2432 = vmax.f32 %v1901, 0.0
  %v2433 = vmax.f32 %v1906, 0.0
  %v2434 = vmax.f32 %v1911, 0.0
  %v2435 = vmax.f32 %v1916, 0.0
  %v2436 = vmax.f32 %v1921, 0.0
  %v2437 = vmax.f32 %v1926, 0.0
  %v2438 = vmax.f32 %v1931, 0.0
  %v2439 = vmax.f32 %v1936, 0.0
  %v2440 = vmax.f32 %v1941, 0.0
  %v2441 = vmax.f32 %v1946, 0.0
  %v2442 = vmax.f32 %v1951, 0.0
  %v2443 = vmax.f32 %v1956, 0.0
  %v2444 = vmax.f32 %v1961, 0.0
  %v2445 = vmax.f32 %v1966, 0.0
  %v2446 = vmax.f32 %v1971, 0.0
  %v2447 = vmax.f32 %v1976, 0.0
  %v2448 = vmax.f32 %v1981, 0.0
  %v2449 = vmax.f32 %v1986, 0.0
  %v2450 = vmax.f32 %v1991, 0.0
  %v2451 = vmax.f32 %v1996, 0.0
  %v2452 = vmax.f32 %v2001, 0.0
  %v2453 = vmax.f32 %v2006, 0.0
  %v2454 = vmax.f32 %v2011, 0.0
  %v2455 = vmax.f32 %v2016, 0.0
  %v2456 = vmax.f32 %v2021, 0.0
  %v2457 = vmax.f32 %v2026, 0.0
  %v2458 = vmax.f32 %v2031, 0.0
  %v2459 = vmax.f32 %v2036, 0.0
  %v2460 = vmax.f32 %v2041, 0.0
  %v2461 = vmax.f32 %v2046, 0.0
  %v2462 = vmax.f32 %v2051, 0.0
  %v2463 = vmax.f32 %v2056, 0.0
  %v2464 = vmax.f32 %v2061, 0.0
  %v2465 = vmax.f32 %v2066, 0.0
  %v2466 = vmax.f32 %v2071, 0.0
  %v2467 = vmax.f32 %v2076, 0.0
  %v2468 = vmax.f32 %v2081, 0.0
  %v2469 = vmax.f32 %v2086, 0.0
  %v2470 = vmax.f32 %v2091, 0.0
  %v2471 = vmax.f32 %v2096, 0.0
  %v2472 = vmax.f32 %v2101, 0.0
  %v2473 = vmax.f32 %v2106, 0.0
  %v2474 = vmax.f32 %v2111, 0.0
  %v2475 = vmax.f32 %v2116, 0.0
  %v2476 = vmax.f32 %v2121, 0.0
  %v2477 = vmax.f32 %v2126, 0.0
  %v2478 = vmax.f32 %v2131, 0.0
  %v2479 = vmax.f32 %v2136, 0.0
  %v2480 = vmax.f32 %v2141, 0.0
  %v2481 = vmax.f32 %v2146, 0.0
  %v2482 = vmax.f32 %v2151, 0.0
  %v2483 = vmax.f32 %v2156, 0.0
  %v2484 = vmax.f32 %v2161, 0.0
  %v2485 = vmax.f32 %v2166, 0.0
  %v2486 = vmax.f32 %v2171, 0.0
  %v2487 = vmax.f32 %v2176, 0.0
  %v2488 = vmax.f32 %v2181, 0.0
  %v2489 = vmax.f32 %v2186, 0.0
  %v2490 = vmax.f32 %v2191, 0.0
  %v2491 = vmax.f32 %v2196, 0.0
  %v2492 = vmax.f32 %v2201, 0.0
  %v2493 = vmax.f32 %v2206, 0.0
  %v2494 = vmax.f32 %v2211, 0.0
  %v2495 = vmax.f32 %v2216, 0.0
  %v2496 = vmax.f32 %v2221, 0.0
  %v2497 = vmax.f32 %v2226, 0.0
  %v2498 = vmax.f32 %v2231, 0.0
  %v2499 = vmax.f32 %v2236, 0.0
  %v2500 = vmax.f32 %v2241, 0.0
  %v2501 = vmax.f32 %v2246, 0.0
  %v2502 = vmax.f32 %v2251, 0.0
  %v2503 = vmax.f32 %v2256, 0.0
  %v2504 = vmax.f32 %v2261, 0.0
  %vm2505 = vcmask 261120
  %2506 = vst.msk [vmem:[%s3] sm:$0xff] %vm2505, %v2264
  %2507 = vst.msk [vmem:[%s3 + $0x8] sm:$0xff] %vm2505, %v2265
  %2508 = vst.msk [vmem:[%s3 + $0x10] sm:$0xff] %vm2505, %v2266
  %2509 = vst.msk [vmem:[%s3 + $0x18] sm:$0xff] %vm2505, %v2267
  %2510 = vst.msk [vmem:[%s3 + $0x20] sm:$0xff] %vm2505, %v2268
  %2511 = vst.msk [vmem:[%s3 + $0x28] sm:$0xff] %vm2505, %v2269
  %2512 = vst.msk [vmem:[%s3 + $0x30] sm:$0xff] %vm2505, %v2270
  %2513 = vst.msk [vmem:[%s3 + $0x38] sm:$0xff] %vm2505, %v2271
  %2514 = vst.msk [vmem:[%s3 + $0x40] sm:$0xff] %vm2505, %v2272
  %2515 = vst.msk [vmem:[%s3 + $0x48] sm:$0xff] %vm2505, %v2273
  %2516 = vst.msk [vmem:[%s3 + $0x50] sm:$0xff] %vm2505, %v2274
  %2517 = vst.msk [vmem:[%s3 + $0x58] sm:$0xff] %vm2505, %v2275
  %2518 = vst.msk [vmem:[%s3 + $0x60] sm:$0xff] %vm2505, %v2276
  %2519 = vst.msk [vmem:[%s3 + $0x68] sm:$0xff] %vm2505, %v2277
  %2520 = vst.msk [vmem:[%s3 + $0x70] sm:$0xff] %vm2505, %v2278
  %2521 = vst.msk [vmem:[%s3 + $0x78] sm:$0xff] %vm2505, %v2279
  %2522 = vst.msk [vmem:[%s3 + $0x80] sm:$0xff] %vm2505, %v2280
  %2523 = vst.msk [vmem:[%s3 + $0x88] sm:$0xff] %vm2505, %v2281
  %2524 = vst.msk [vmem:[%s3 + $0x90] sm:$0xff] %vm2505, %v2282
  %2525 = vst.msk [vmem:[%s3 + $0x98] sm:$0xff] %vm2505, %v2283
  %2526 = vst.msk [vmem:[%s3 + $0xa0] sm:$0xff] %vm2505, %v2284
  %2527 = vst.msk [vmem:[%s3 + $0xa8] sm:$0xff] %vm2505, %v2285
  %2528 = vst.msk [vmem:[%s3 + $0xb0] sm:$0xff] %vm2505, %v2286
  %2529 = vst.msk [vmem:[%s3 + $0xb8] sm:$0xff] %vm2505, %v2287
  %2530 = vst.msk [vmem:[%s3 + $0xc0] sm:$0xff] %vm2505, %v2288
  %2531 = vst.msk [vmem:[%s3 + $0xc8] sm:$0xff] %vm2505, %v2289
  %2532 = vst.msk [vmem:[%s3 + $0xd0] sm:$0xff] %vm2505, %v2290
  %2533 = vst.msk [vmem:[%s3 + $0xd8] sm:$0xff] %vm2505, %v2291
  %2534 = vst.msk [vmem:[%s3 + $0xe0] sm:$0xff] %vm2505, %v2292
  %2535 = vst.msk [vmem:[%s3 + $0xe8] sm:$0xff] %vm2505, %v2293
  %2536 = vst.msk [vmem:[%s3 + $0xf0] sm:$0xff] %vm2505, %v2294
  %2537 = vst.msk [vmem:[%s3 + $0xf8] sm:$0xff] %vm2505, %v2295
  %2538 = vst.msk [vmem:[%s3 + $0x100] sm:$0xff] %vm2505, %v2296
  %2539 = vst.msk [vmem:[%s3 + $0x108] sm:$0xff] %vm2505, %v2297
  %2540 = vst.msk [vmem:[%s3 + $0x110] sm:$0xff] %vm2505, %v2298
  %2541 = vst.msk [vmem:[%s3 + $0x118] sm:$0xff] %vm2505, %v2299
  %2542 = vst.msk [vmem:[%s3 + $0x120] sm:$0xff] %vm2505, %v2300
  %2543 = vst.msk [vmem:[%s3 + $0x128] sm:$0xff] %vm2505, %v2301
  %2544 = vst.msk [vmem:[%s3 + $0x130] sm:$0xff] %vm2505, %v2302
  %2545 = vst.msk [vmem:[%s3 + $0x138] sm:$0xff] %vm2505, %v2303
  %2546 = vst.msk [vmem:[%s3 + $0x140] sm:$0xff] %vm2505, %v2304
  %2547 = vst.msk [vmem:[%s3 + $0x148] sm:$0xff] %vm2505, %v2305
  %2548 = vst.msk [vmem:[%s3 + $0x150] sm:$0xff] %vm2505, %v2306
  %2549 = vst.msk [vmem:[%s3 + $0x158] sm:$0xff] %vm2505, %v2307
  %2550 = vst.msk [vmem:[%s3 + $0x160] sm:$0xff] %vm2505, %v2308
  %2551 = vst.msk [vmem:[%s3 + $0x168] sm:$0xff] %vm2505, %v2309
  %2552 = vst.msk [vmem:[%s3 + $0x170] sm:$0xff] %vm2505, %v2310
  %2553 = vst.msk [vmem:[%s3 + $0x178] sm:$0xff] %vm2505, %v2311
  %2554 = vst.msk [vmem:[%s3 + $0x180] sm:$0xff] %vm2505, %v2312
  %2555 = vst.msk [vmem:[%s3 + $0x188] sm:$0xff] %vm2505, %v2313
  %2556 = vst.msk [vmem:[%s3 + $0x190] sm:$0xff] %vm2505, %v2314
  %2557 = vst.msk [vmem:[%s3 + $0x198] sm:$0xff] %vm2505, %v2315
  %2558 = vst.msk [vmem:[%s3 + $0x1a0] sm:$0xff] %vm2505, %v2316
  %2559 = vst.msk [vmem:[%s3 + $0x1a8] sm:$0xff] %vm2505, %v2317
  %2560 = vst.msk [vmem:[%s3 + $0x1b0] sm:$0xff] %vm2505, %v2318
  %2561 = vst.msk [vmem:[%s3 + $0x1b8] sm:$0xff] %vm2505, %v2319
  %2562 = vst.msk [vmem:[%s3 + $0x1c0] sm:$0xff] %vm2505, %v2320
  %2563 = vst.msk [vmem:[%s3 + $0x1c8] sm:$0xff] %vm2505, %v2321
  %2564 = vst.msk [vmem:[%s3 + $0x1d0] sm:$0xff] %vm2505, %v2322
  %2565 = vst.msk [vmem:[%s3 + $0x1d8] sm:$0xff] %vm2505, %v2323
  %2566 = vst.msk [vmem:[%s3 + $0x1e0] sm:$0xff] %vm2505, %v2324
  %2567 = vst.msk [vmem:[%s3 + $0x1e8] sm:$0xff] %vm2505, %v2325
  %2568 = vst.msk [vmem:[%s3 + $0x1f0] sm:$0xff] %vm2505, %v2326
  %2569 = vst.msk [vmem:[%s3 + $0x1f8] sm:$0xff] %vm2505, %v2327
  %2570 = vst.msk [vmem:[%s3 + $0x200] sm:$0xff] %vm2505, %v2328
  %2571 = vst.msk [vmem:[%s3 + $0x208] sm:$0xff] %vm2505, %v2329
  %2572 = vst.msk [vmem:[%s3 + $0x210] sm:$0xff] %vm2505, %v2330
  %2573 = vst.msk [vmem:[%s3 + $0x218] sm:$0xff] %vm2505, %v2331
  %2574 = vst.msk [vmem:[%s3 + $0x220] sm:$0xff] %vm2505, %v2332
  %2575 = vst.msk [vmem:[%s3 + $0x228] sm:$0xff] %vm2505, %v2333
  %2576 = vst.msk [vmem:[%s3 + $0x230] sm:$0xff] %vm2505, %v2334
  %2577 = vst.msk [vmem:[%s3 + $0x238] sm:$0xff] %vm2505, %v2335
  %2578 = vst.msk [vmem:[%s3 + $0x240] sm:$0xff] %vm2505, %v2336
  %2579 = vst.msk [vmem:[%s3 + $0x248] sm:$0xff] %vm2505, %v2337
  %2580 = vst.msk [vmem:[%s3 + $0x250] sm:$0xff] %vm2505, %v2338
  %2581 = vst.msk [vmem:[%s3 + $0x258] sm:$0xff] %vm2505, %v2339
  %2582 = vst.msk [vmem:[%s3 + $0x260] sm:$0xff] %vm2505, %v2340
  %2583 = vst.msk [vmem:[%s3 + $0x268] sm:$0xff] %vm2505, %v2341
  %2584 = vst.msk [vmem:[%s3 + $0x270] sm:$0xff] %vm2505, %v2342
  %2585 = vst.msk [vmem:[%s3 + $0x278] sm:$0xff] %vm2505, %v2343
  %2586 = vst.msk [vmem:[%s3 + $0x280] sm:$0xff] %vm2505, %v2344
  %2587 = vst.msk [vmem:[%s3 + $0x288] sm:$0xff] %vm2505, %v2345
  %2588 = vst.msk [vmem:[%s3 + $0x290] sm:$0xff] %vm2505, %v2346
  %2589 = vst.msk [vmem:[%s3 + $0x298] sm:$0xff] %vm2505, %v2347
  %2590 = vst.msk [vmem:[%s3 + $0x2a0] sm:$0xff] %vm2505, %v2348
  %2591 = vst.msk [vmem:[%s3 + $0x2a8] sm:$0xff] %vm2505, %v2349
  %2592 = vst.msk [vmem:[%s3 + $0x2b0] sm:$0xff] %vm2505, %v2350
  %2593 = vst.msk [vmem:[%s3 + $0x2b8] sm:$0xff] %vm2505, %v2351
  %2594 = vst.msk [vmem:[%s3 + $0x2c0] sm:$0xff] %vm2505, %v2352
  %2595 = vst.msk [vmem:[%s3 + $0x2c8] sm:$0xff] %vm2505, %v2353
  %2596 = vst.msk [vmem:[%s3 + $0x2d0] sm:$0xff] %vm2505, %v2354
  %2597 = vst.msk [vmem:[%s3 + $0x2d8] sm:$0xff] %vm2505, %v2355
  %2598 = vst.msk [vmem:[%s3 + $0x2e0] sm:$0xff] %vm2505, %v2356
  %2599 = vst.msk [vmem:[%s3 + $0x2e8] sm:$0xff] %vm2505, %v2357
  %2600 = vst.msk [vmem:[%s3 + $0x2f0] sm:$0xff] %vm2505, %v2358
  %2601 = vst.msk [vmem:[%s3 + $0x2f8] sm:$0xff] %vm2505, %v2359
  %2602 = vst.msk [vmem:[%s3 + $0x300] sm:$0xff] %vm2505, %v2360
  %2603 = vst.msk [vmem:[%s3 + $0x308] sm:$0xff] %vm2505, %v2361
  %2604 = vst.msk [vmem:[%s3 + $0x310] sm:$0xff] %vm2505, %v2362
  %2605 = vst.msk [vmem:[%s3 + $0x318] sm:$0xff] %vm2505, %v2363
  %2606 = vst.msk [vmem:[%s3 + $0x320] sm:$0xff] %vm2505, %v2364
  %2607 = vst.msk [vmem:[%s3 + $0x328] sm:$0xff] %vm2505, %v2365
  %2608 = vst.msk [vmem:[%s3 + $0x330] sm:$0xff] %vm2505, %v2366
  %2609 = vst.msk [vmem:[%s3 + $0x338] sm:$0xff] %vm2505, %v2367
  %2610 = vst.msk [vmem:[%s3 + $0x340] sm:$0xff] %vm2505, %v2368
  %2611 = vst.msk [vmem:[%s3 + $0x348] sm:$0xff] %vm2505, %v2369
  %2612 = vst.msk [vmem:[%s3 + $0x350] sm:$0xff] %vm2505, %v2370
  %2613 = vst.msk [vmem:[%s3 + $0x358] sm:$0xff] %vm2505, %v2371
  %2614 = vst.msk [vmem:[%s3 + $0x360] sm:$0xff] %vm2505, %v2372
  %2615 = vst.msk [vmem:[%s3 + $0x368] sm:$0xff] %vm2505, %v2373
  %2616 = vst.msk [vmem:[%s3 + $0x370] sm:$0xff] %vm2505, %v2374
  %2617 = vst.msk [vmem:[%s3 + $0x378] sm:$0xff] %vm2505, %v2375
  %2618 = vst.msk [vmem:[%s3 + $0x380] sm:$0xff] %vm2505, %v2376
  %2619 = vst.msk [vmem:[%s3 + $0x388] sm:$0xff] %vm2505, %v2377
  %2620 = vst.msk [vmem:[%s3 + $0x390] sm:$0xff] %vm2505, %v2378
  %2621 = vst.msk [vmem:[%s3 + $0x398] sm:$0xff] %vm2505, %v2379
  %2622 = vst.msk [vmem:[%s3 + $0x3a0] sm:$0xff] %vm2505, %v2380
  %2623 = vst.msk [vmem:[%s3 + $0x3a8] sm:$0xff] %vm2505, %v2381
  %2624 = vst.msk [vmem:[%s3 + $0x3b0] sm:$0xff] %vm2505, %v2382
  %2625 = vst.msk [vmem:[%s3 + $0x3b8] sm:$0xff] %vm2505, %v2383
  %2626 = vst.msk [vmem:[%s3 + $0x3c0] sm:$0xff] %vm2505, %v2384
  %2627 = vst.msk [vmem:[%s3 + $0x3c8] sm:$0xff] %vm2505, %v2385
  %2628 = vst.msk [vmem:[%s3 + $0x3d0] sm:$0xff] %vm2505, %v2386
  %2629 = vst.msk [vmem:[%s3 + $0x3d8] sm:$0xff] %vm2505, %v2387
  %2630 = vst.msk [vmem:[%s3 + $0x3e0] sm:$0xff] %vm2505, %v2388
  %2631 = vst.msk [vmem:[%s3 + $0x3e8] sm:$0xff] %vm2505, %v2389
  %2632 = vst.msk [vmem:[%s3 + $0x3f0] sm:$0xff] %vm2505, %v2390
  %2633 = vst.msk [vmem:[%s3 + $0x3f8] sm:$0xff] %vm2505, %v2391
  %2634 = vst.msk [vmem:[%s3 + $0x400] sm:$0xff] %vm2505, %v2392
  %2635 = vst.msk [vmem:[%s3 + $0x408] sm:$0xff] %vm2505, %v2393
  %2636 = vst.msk [vmem:[%s3 + $0x410] sm:$0xff] %vm2505, %v2394
  %2637 = vst.msk [vmem:[%s3 + $0x418] sm:$0xff] %vm2505, %v2395
  %2638 = vst.msk [vmem:[%s3 + $0x420] sm:$0xff] %vm2505, %v2396
  %2639 = vst.msk [vmem:[%s3 + $0x428] sm:$0xff] %vm2505, %v2397
  %2640 = vst.msk [vmem:[%s3 + $0x430] sm:$0xff] %vm2505, %v2398
  %2641 = vst.msk [vmem:[%s3 + $0x438] sm:$0xff] %vm2505, %v2399
  %2642 = vst.msk [vmem:[%s3 + $0x440] sm:$0xff] %vm2505, %v2400
  %2643 = vst.msk [vmem:[%s3 + $0x448] sm:$0xff] %vm2505, %v2401
  %2644 = vst.msk [vmem:[%s3 + $0x450] sm:$0xff] %vm2505, %v2402
  %2645 = vst.msk [vmem:[%s3 + $0x458] sm:$0xff] %vm2505, %v2403
  %2646 = vst.msk [vmem:[%s3 + $0x460] sm:$0xff] %vm2505, %v2404
  %2647 = vst.msk [vmem:[%s3 + $0x468] sm:$0xff] %vm2505, %v2405
  %2648 = vst.msk [vmem:[%s3 + $0x470] sm:$0xff] %vm2505, %v2406
  %2649 = vst.msk [vmem:[%s3 + $0x478] sm:$0xff] %vm2505, %v2407
  %2650 = vst.msk [vmem:[%s3 + $0x480] sm:$0xff] %vm2505, %v2408
  %2651 = vst.msk [vmem:[%s3 + $0x488] sm:$0xff] %vm2505, %v2409
  %2652 = vst.msk [vmem:[%s3 + $0x490] sm:$0xff] %vm2505, %v2410
  %2653 = vst.msk [vmem:[%s3 + $0x498] sm:$0xff] %vm2505, %v2411
  %2654 = vst.msk [vmem:[%s3 + $0x4a0] sm:$0xff] %vm2505, %v2412
  %2655 = vst.msk [vmem:[%s3 + $0x4a8] sm:$0xff] %vm2505, %v2413
  %2656 = vst.msk [vmem:[%s3 + $0x4b0] sm:$0xff] %vm2505, %v2414
  %2657 = vst.msk [vmem:[%s3 + $0x4b8] sm:$0xff] %vm2505, %v2415
  %2658 = vst.msk [vmem:[%s3 + $0x4c0] sm:$0xff] %vm2505, %v2416
  %2659 = vst.msk [vmem:[%s3 + $0x4c8] sm:$0xff] %vm2505, %v2417
  %2660 = vst.msk [vmem:[%s3 + $0x4d0] sm:$0xff] %vm2505, %v2418
  %2661 = vst.msk [vmem:[%s3 + $0x4d8] sm:$0xff] %vm2505, %v2419
  %2662 = vst.msk [vmem:[%s3 + $0x4e0] sm:$0xff] %vm2505, %v2420
  %2663 = vst.msk [vmem:[%s3 + $0x4e8] sm:$0xff] %vm2505, %v2421
  %2664 = vst.msk [vmem:[%s3 + $0x4f0] sm:$0xff] %vm2505, %v2422
  %2665 = vst.msk [vmem:[%s3 + $0x4f8] sm:$0xff] %vm2505, %v2423
  %2666 = vst.msk [vmem:[%s3 + $0x500] sm:$0xff] %vm2505, %v2424
  %2667 = vst.msk [vmem:[%s3 + $0x508] sm:$0xff] %vm2505, %v2425
  %2668 = vst.msk [vmem:[%s3 + $0x510] sm:$0xff] %vm2505, %v2426
  %2669 = vst.msk [vmem:[%s3 + $0x518] sm:$0xff] %vm2505, %v2427
  %2670 = vst.msk [vmem:[%s3 + $0x520] sm:$0xff] %vm2505, %v2428
  %2671 = vst.msk [vmem:[%s3 + $0x528] sm:$0xff] %vm2505, %v2429
  %2672 = vst.msk [vmem:[%s3 + $0x530] sm:$0xff] %vm2505, %v2430
  %2673 = vst.msk [vmem:[%s3 + $0x538] sm:$0xff] %vm2505, %v2431
  %2674 = vst.msk [vmem:[%s3 + $0x540] sm:$0xff] %vm2505, %v2432
  %2675 = vst.msk [vmem:[%s3 + $0x548] sm:$0xff] %vm2505, %v2433
  %2676 = vst.msk [vmem:[%s3 + $0x550] sm:$0xff] %vm2505, %v2434
  %2677 = vst.msk [vmem:[%s3 + $0x558] sm:$0xff] %vm2505, %v2435
  %2678 = vst.msk [vmem:[%s3 + $0x560] sm:$0xff] %vm2505, %v2436
  %2679 = vst.msk [vmem:[%s3 + $0x568] sm:$0xff] %vm2505, %v2437
  %2680 = vst.msk [vmem:[%s3 + $0x570] sm:$0xff] %vm2505, %v2438
  %2681 = vst.msk [vmem:[%s3 + $0x578] sm:$0xff] %vm2505, %v2439
  %2682 = vst.msk [vmem:[%s3 + $0x580] sm:$0xff] %vm2505, %v2440
  %2683 = vst.msk [vmem:[%s3 + $0x588] sm:$0xff] %vm2505, %v2441
  %2684 = vst.msk [vmem:[%s3 + $0x590] sm:$0xff] %vm2505, %v2442
  %2685 = vst.msk [vmem:[%s3 + $0x598] sm:$0xff] %vm2505, %v2443
  %2686 = vst.msk [vmem:[%s3 + $0x5a0] sm:$0xff] %vm2505, %v2444
  %2687 = vst.msk [vmem:[%s3 + $0x5a8] sm:$0xff] %vm2505, %v2445
  %2688 = vst.msk [vmem:[%s3 + $0x5b0] sm:$0xff] %vm2505, %v2446
  %2689 = vst.msk [vmem:[%s3 + $0x5b8] sm:$0xff] %vm2505, %v2447
  %2690 = vst.msk [vmem:[%s3 + $0x5c0] sm:$0xff] %vm2505, %v2448
  %2691 = vst.msk [vmem:[%s3 + $0x5c8] sm:$0xff] %vm2505, %v2449
  %2692 = vst.msk [vmem:[%s3 + $0x5d0] sm:$0xff] %vm2505, %v2450
  %2693 = vst.msk [vmem:[%s3 + $0x5d8] sm:$0xff] %vm2505, %v2451
  %2694 = vst.msk [vmem:[%s3 + $0x5e0] sm:$0xff] %vm2505, %v2452
  %2695 = vst.msk [vmem:[%s3 + $0x5e8] sm:$0xff] %vm2505, %v2453
  %2696 = vst.msk [vmem:[%s3 + $0x5f0] sm:$0xff] %vm2505, %v2454
  %2697 = vst.msk [vmem:[%s3 + $0x5f8] sm:$0xff] %vm2505, %v2455
  %2698 = vst.msk [vmem:[%s3 + $0x600] sm:$0xff] %vm2505, %v2456
  %2699 = vst.msk [vmem:[%s3 + $0x608] sm:$0xff] %vm2505, %v2457
  %2700 = vst.msk [vmem:[%s3 + $0x610] sm:$0xff] %vm2505, %v2458
  %2701 = vst.msk [vmem:[%s3 + $0x618] sm:$0xff] %vm2505, %v2459
  %2702 = vst.msk [vmem:[%s3 + $0x620] sm:$0xff] %vm2505, %v2460
  %2703 = vst.msk [vmem:[%s3 + $0x628] sm:$0xff] %vm2505, %v2461
  %2704 = vst.msk [vmem:[%s3 + $0x630] sm:$0xff] %vm2505, %v2462
  %2705 = vst.msk [vmem:[%s3 + $0x638] sm:$0xff] %vm2505, %v2463
  %2706 = vst.msk [vmem:[%s3 + $0x640] sm:$0xff] %vm2505, %v2464
  %2707 = vst.msk [vmem:[%s3 + $0x648] sm:$0xff] %vm2505, %v2465
  %2708 = vst.msk [vmem:[%s3 + $0x650] sm:$0xff] %vm2505, %v2466
  %2709 = vst.msk [vmem:[%s3 + $0x658] sm:$0xff] %vm2505, %v2467
  %2710 = vst.msk [vmem:[%s3 + $0x660] sm:$0xff] %vm2505, %v2468
  %2711 = vst.msk [vmem:[%s3 + $0x668] sm:$0xff] %vm2505, %v2469
  %2712 = vst.msk [vmem:[%s3 + $0x670] sm:$0xff] %vm2505, %v2470
  %2713 = vst.msk [vmem:[%s3 + $0x678] sm:$0xff] %vm2505, %v2471
  %2714 = vst.msk [vmem:[%s3 + $0x680] sm:$0xff] %vm2505, %v2472
  %2715 = vst.msk [vmem:[%s3 + $0x688] sm:$0xff] %vm2505, %v2473
  %2716 = vst.msk [vmem:[%s3 + $0x690] sm:$0xff] %vm2505, %v2474
  %2717 = vst.msk [vmem:[%s3 + $0x698] sm:$0xff] %vm2505, %v2475
  %2718 = vst.msk [vmem:[%s3 + $0x6a0] sm:$0xff] %vm2505, %v2476
  %2719 = vst.msk [vmem:[%s3 + $0x6a8] sm:$0xff] %vm2505, %v2477
  %2720 = vst.msk [vmem:[%s3 + $0x6b0] sm:$0xff] %vm2505, %v2478
  %2721 = vst.msk [vmem:[%s3 + $0x6b8] sm:$0xff] %vm2505, %v2479
  %2722 = vst.msk [vmem:[%s3 + $0x6c0] sm:$0xff] %vm2505, %v2480
  %2723 = vst.msk [vmem:[%s3 + $0x6c8] sm:$0xff] %vm2505, %v2481
  %2724 = vst.msk [vmem:[%s3 + $0x6d0] sm:$0xff] %vm2505, %v2482
  %2725 = vst.msk [vmem:[%s3 + $0x6d8] sm:$0xff] %vm2505, %v2483
  %2726 = vst.msk [vmem:[%s3 + $0x6e0] sm:$0xff] %vm2505, %v2484
  %2727 = vst.msk [vmem:[%s3 + $0x6e8] sm:$0xff] %vm2505, %v2485
  %2728 = vst.msk [vmem:[%s3 + $0x6f0] sm:$0xff] %vm2505, %v2486
  %2729 = vst.msk [vmem:[%s3 + $0x6f8] sm:$0xff] %vm2505, %v2487
  %2730 = vst.msk [vmem:[%s3 + $0x700] sm:$0xff] %vm2505, %v2488
  %2731 = vst.msk [vmem:[%s3 + $0x708] sm:$0xff] %vm2505, %v2489
  %2732 = vst.msk [vmem:[%s3 + $0x710] sm:$0xff] %vm2505, %v2490
  %2733 = vst.msk [vmem:[%s3 + $0x718] sm:$0xff] %vm2505, %v2491
  %2734 = vst.msk [vmem:[%s3 + $0x720] sm:$0xff] %vm2505, %v2492
  %2735 = vst.msk [vmem:[%s3 + $0x728] sm:$0xff] %vm2505, %v2493
  %2736 = vst.msk [vmem:[%s3 + $0x730] sm:$0xff] %vm2505, %v2494
  %2737 = vst.msk [vmem:[%s3 + $0x738] sm:$0xff] %vm2505, %v2495
  %2738 = vst.msk [vmem:[%s3 + $0x740] sm:$0xff] %vm2505, %v2496
  %2739 = vst.msk [vmem:[%s3 + $0x748] sm:$0xff] %vm2505, %v2497
  %2740 = vst.msk [vmem:[%s3 + $0x750] sm:$0xff] %vm2505, %v2498
  %2741 = vst.msk [vmem:[%s3 + $0x758] sm:$0xff] %vm2505, %v2499
  %2742 = vst.msk [vmem:[%s3 + $0x760] sm:$0xff] %vm2505, %v2500
  %2743 = vst.msk [vmem:[%s3 + $0x768] sm:$0xff] %vm2505, %v2501
  %2744 = vst.msk [vmem:[%s3 + $0x770] sm:$0xff] %vm2505, %v2502
  %2745 = vst.msk [vmem:[%s3 + $0x778] sm:$0xff] %vm2505, %v2503
  %vm2746 = vcmask 254976
  %2747 = vst.msk [vmem:[%s3 + $0x780] sm:$0x3] %vm2746, %v2504
  // Predicated region
  $region14: #{encoder_forward.4} parent=0 // pred_check
    _
  $region15: #{encoder_forward.4} parent=0 // pred_check_branch
    %2749 = sbr.rel (0) target = $region17
  $region16: #{encoder_forward.4} parent=0 // pred_region
    _
  $region17: #{encoder_forward.4} parent=0 // pred_fallthru
    _
  // Predicated region
  $region18: #{encoder_forward.4} parent=0 // pred_check
    _
  $region19: #{encoder_forward.4} parent=0 // pred_check_branch
    %2751 = sbr.rel (0) target = $region21
  $region20: #{encoder_forward.4} parent=0 // pred_region
    _
  $region21: #{encoder_forward.4} parent=0 // pred_fallthru
    _

// kernel: encoder_forward.5
$region0: #{encoder_forward.5}
  #allocation0 [shape = 'u32[]', space=smem, size = 0x4, offset = 0x4, fixed_abs, tag = 'smem constant byte address 0x4 - core index']
  #allocation1 [shape = 'u32[144,128]{1,0:T(1,128)}', space=vmem, size = 0x12000, scoped, tag = 'internal scratch']
  %s0 = inlined_call_operand.vmem [shape: f32[392,512], index: 0, kind: input, shape index: {}]
  %s1 = inlined_call_operand.vmem [shape: f32[512,64], index: 1, kind: input, shape index: {}]
  %s2 = inlined_call_operand.vmem [shape: f32[1,64], index: 2, kind: input, shape index: {}]
  %s3 = inlined_call_operand.vmem [shape: f32[392,64], index: 3, kind: output, shape index: {}]
  %s4 = sld [smem:[#allocation0]]
  $region22: #{encoder_forward.5} parent=0
    _
  %s6 = ssub.s32 1, %s4
  %s7 = scalar_select 0, %s6, %s4
  // Predicated region
  $region2: #{encoder_forward.5} parent=0 // pred_check
    _
  $region3: #{encoder_forward.5} parent=0 // pred_check_branch
    %9 = sbr.rel (0) target = $region5
  $region4: #{encoder_forward.5} parent=0 // pred_region
    _
  $region5: #{encoder_forward.5} parent=0 // pred_fallthru
    _
  // Predicated region
  $region6: #{encoder_forward.5} parent=0 // pred_check
    _
  $region7: #{encoder_forward.5} parent=0 // pred_check_branch
    %11 = sbr.rel (0) target = $region9
  $region8: #{encoder_forward.5} parent=0 // pred_region
    _
  $region9: #{encoder_forward.5} parent=0 // pred_fallthru
    _
  // Predicated region
  $region10: #{encoder_forward.5} parent=0 // pred_check
    _
  $region11: #{encoder_forward.5} parent=0 // pred_check_branch
    %13 = sbr.rel (0) target = $region13
  $region12: #{encoder_forward.5} parent=0 // pred_region
    _
  $region13: #{encoder_forward.5} parent=0 // pred_fallthru
    _
  %v14 = vld [vmem:[%s0] sm:$0xff]
  %v15 = vld [vmem:[%s0 + $0x8] sm:$0xff]
  %v16 = vld [vmem:[%s0 + $0x10] sm:$0xff]
  %v17 = vld [vmem:[%s0 + $0x18] sm:$0xff]
  %v18 = vld [vmem:[%s0 + $0x20] sm:$0xff]
  %v19 = vld [vmem:[%s0 + $0x28] sm:$0xff]
  %v20 = vld [vmem:[%s0 + $0x30] sm:$0xff]
  %v21 = vld [vmem:[%s0 + $0x38] sm:$0xff]
  %v22 = vld [vmem:[%s0 + $0x40] sm:$0xff]
  %v23 = vld [vmem:[%s0 + $0x48] sm:$0xff]
  %v24 = vld [vmem:[%s0 + $0x50] sm:$0xff]
  %v25 = vld [vmem:[%s0 + $0x58] sm:$0xff]
  %v26 = vld [vmem:[%s0 + $0x60] sm:$0xff]
  %v27 = vld [vmem:[%s0 + $0x68] sm:$0xff]
  %v28 = vld [vmem:[%s0 + $0x70] sm:$0xff]
  %v29 = vld [vmem:[%s0 + $0x78] sm:$0xff]
  %v30 = vld [vmem:[%s0 + $0x80] sm:$0xff]
  %v31 = vld [vmem:[%s0 + $0x88] sm:$0xff]
  %v32 = vld [vmem:[%s0 + $0x90] sm:$0xff]
  %v33 = vld [vmem:[%s0 + $0x98] sm:$0xff]
  %v34 = vld [vmem:[%s0 + $0xa0] sm:$0xff]
  %v35 = vld [vmem:[%s0 + $0xa8] sm:$0xff]
  %v36 = vld [vmem:[%s0 + $0xb0] sm:$0xff]
  %v37 = vld [vmem:[%s0 + $0xb8] sm:$0xff]
  %v38 = vld [vmem:[%s0 + $0xc0] sm:$0xff]
  %v39 = vld [vmem:[%s0 + $0xc8] sm:$0xff]
  %v40 = vld [vmem:[%s0 + $0xd0] sm:$0xff]
  %v41 = vld [vmem:[%s0 + $0xd8] sm:$0xff]
  %v42 = vld [vmem:[%s0 + $0xe0] sm:$0xff]
  %v43 = vld [vmem:[%s0 + $0xe8] sm:$0xff]
  %v44 = vld [vmem:[%s0 + $0xf0] sm:$0xff]
  %v45 = vld [vmem:[%s0 + $0xf8] sm:$0xff]
  %v46 = vld [vmem:[%s0 + $0x100] sm:$0xff]
  %v47 = vld [vmem:[%s0 + $0x108] sm:$0xff]
  %v48 = vld [vmem:[%s0 + $0x110] sm:$0xff]
  %v49 = vld [vmem:[%s0 + $0x118] sm:$0xff]
  %v50 = vld [vmem:[%s0 + $0x120] sm:$0xff]
  %v51 = vld [vmem:[%s0 + $0x128] sm:$0xff]
  %v52 = vld [vmem:[%s0 + $0x130] sm:$0xff]
  %v53 = vld [vmem:[%s0 + $0x138] sm:$0xff]
  %v54 = vld [vmem:[%s0 + $0x140] sm:$0xff]
  %v55 = vld [vmem:[%s0 + $0x148] sm:$0xff]
  %v56 = vld [vmem:[%s0 + $0x150] sm:$0xff]
  %v57 = vld [vmem:[%s0 + $0x158] sm:$0xff]
  %v58 = vld [vmem:[%s0 + $0x160] sm:$0xff]
  %v59 = vld [vmem:[%s0 + $0x168] sm:$0xff]
  %v60 = vld [vmem:[%s0 + $0x170] sm:$0xff]
  %v61 = vld [vmem:[%s0 + $0x178] sm:$0xff]
  %v62 = vld [vmem:[%s0 + $0x180] sm:$0xff]
  %v63 = vld [vmem:[%s0 + $0x188] sm:$0xff]
  %v64 = vld [vmem:[%s0 + $0x190] sm:$0xff]
  %v65 = vld [vmem:[%s0 + $0x198] sm:$0xff]
  %v66 = vld [vmem:[%s0 + $0x1a0] sm:$0xff]
  %v67 = vld [vmem:[%s0 + $0x1a8] sm:$0xff]
  %v68 = vld [vmem:[%s0 + $0x1b0] sm:$0xff]
  %v69 = vld [vmem:[%s0 + $0x1b8] sm:$0xff]
  %v70 = vld [vmem:[%s0 + $0x1c0] sm:$0xff]
  %v71 = vld [vmem:[%s0 + $0x1c8] sm:$0xff]
  %v72 = vld [vmem:[%s0 + $0x1d0] sm:$0xff]
  %v73 = vld [vmem:[%s0 + $0x1d8] sm:$0xff]
  %v74 = vld [vmem:[%s0 + $0x1e0] sm:$0xff]
  %v75 = vld [vmem:[%s0 + $0x1e8] sm:$0xff]
  %v76 = vld [vmem:[%s0 + $0x1f0] sm:$0xff]
  %v77 = vld [vmem:[%s0 + $0x1f8] sm:$0xff]
  %v78 = vld [vmem:[%s0 + $0x200] sm:$0xff]
  %v79 = vld [vmem:[%s0 + $0x208] sm:$0xff]
  %v80 = vld [vmem:[%s0 + $0x210] sm:$0xff]
  %v81 = vld [vmem:[%s0 + $0x218] sm:$0xff]
  %v82 = vld [vmem:[%s0 + $0x220] sm:$0xff]
  %v83 = vld [vmem:[%s0 + $0x228] sm:$0xff]
  %v84 = vld [vmem:[%s0 + $0x230] sm:$0xff]
  %v85 = vld [vmem:[%s0 + $0x238] sm:$0xff]
  %v86 = vld [vmem:[%s0 + $0x240] sm:$0xff]
  %v87 = vld [vmem:[%s0 + $0x248] sm:$0xff]
  %v88 = vld [vmem:[%s0 + $0x250] sm:$0xff]
  %v89 = vld [vmem:[%s0 + $0x258] sm:$0xff]
  %v90 = vld [vmem:[%s0 + $0x260] sm:$0xff]
  %v91 = vld [vmem:[%s0 + $0x268] sm:$0xff]
  %v92 = vld [vmem:[%s0 + $0x270] sm:$0xff]
  %v93 = vld [vmem:[%s0 + $0x278] sm:$0xff]
  %v94 = vld [vmem:[%s0 + $0x280] sm:$0xff]
  %v95 = vld [vmem:[%s0 + $0x288] sm:$0xff]
  %v96 = vld [vmem:[%s0 + $0x290] sm:$0xff]
  %v97 = vld [vmem:[%s0 + $0x298] sm:$0xff]
  %v98 = vld [vmem:[%s0 + $0x2a0] sm:$0xff]
  %v99 = vld [vmem:[%s0 + $0x2a8] sm:$0xff]
  %v100 = vld [vmem:[%s0 + $0x2b0] sm:$0xff]
  %v101 = vld [vmem:[%s0 + $0x2b8] sm:$0xff]
  %v102 = vld [vmem:[%s0 + $0x2c0] sm:$0xff]
  %v103 = vld [vmem:[%s0 + $0x2c8] sm:$0xff]
  %v104 = vld [vmem:[%s0 + $0x2d0] sm:$0xff]
  %v105 = vld [vmem:[%s0 + $0x2d8] sm:$0xff]
  %v106 = vld [vmem:[%s0 + $0x2e0] sm:$0xff]
  %v107 = vld [vmem:[%s0 + $0x2e8] sm:$0xff]
  %v108 = vld [vmem:[%s0 + $0x2f0] sm:$0xff]
  %v109 = vld [vmem:[%s0 + $0x2f8] sm:$0xff]
  %v110 = vld [vmem:[%s0 + $0x300] sm:$0xff]
  %v111 = vld [vmem:[%s0 + $0x308] sm:$0xff]
  %v112 = vld [vmem:[%s0 + $0x310] sm:$0xff]
  %v113 = vld [vmem:[%s0 + $0x318] sm:$0xff]
  %v114 = vld [vmem:[%s0 + $0x320] sm:$0xff]
  %v115 = vld [vmem:[%s0 + $0x328] sm:$0xff]
  %v116 = vld [vmem:[%s0 + $0x330] sm:$0xff]
  %v117 = vld [vmem:[%s0 + $0x338] sm:$0xff]
  %v118 = vld [vmem:[%s0 + $0x340] sm:$0xff]
  %v119 = vld [vmem:[%s0 + $0x348] sm:$0xff]
  %v120 = vld [vmem:[%s0 + $0x350] sm:$0xff]
  %v121 = vld [vmem:[%s0 + $0x358] sm:$0xff]
  %v122 = vld [vmem:[%s0 + $0x360] sm:$0xff]
  %v123 = vld [vmem:[%s0 + $0x368] sm:$0xff]
  %v124 = vld [vmem:[%s0 + $0x370] sm:$0xff]
  %v125 = vld [vmem:[%s0 + $0x378] sm:$0xff]
  %v126 = vld [vmem:[%s0 + $0x380] sm:$0xff]
  %v127 = vld [vmem:[%s0 + $0x388] sm:$0xff]
  %v128 = vld [vmem:[%s0 + $0x390] sm:$0xff]
  %v129 = vld [vmem:[%s0 + $0x398] sm:$0xff]
  %v130 = vld [vmem:[%s0 + $0x3a0] sm:$0xff]
  %v131 = vld [vmem:[%s0 + $0x3a8] sm:$0xff]
  %v132 = vld [vmem:[%s0 + $0x3b0] sm:$0xff]
  %v133 = vld [vmem:[%s0 + $0x3b8] sm:$0xff]
  %v134 = vld [vmem:[%s0 + $0x3c0] sm:$0xff]
  %v135 = vld [vmem:[%s0 + $0x3c8] sm:$0xff]
  %v136 = vld [vmem:[%s0 + $0x3d0] sm:$0xff]
  %v137 = vld [vmem:[%s0 + $0x3d8] sm:$0xff]
  %v138 = vld [vmem:[%s0 + $0x3e0] sm:$0xff]
  %v139 = vld [vmem:[%s0 + $0x3e8] sm:$0xff]
  %v140 = vld [vmem:[%s0 + $0x3f0] sm:$0xff]
  %v141 = vld [vmem:[%s0 + $0x3f8] sm:$0xff]
  %v142 = vld [vmem:[%s0 + $0x400] sm:$0xff]
  %v143 = vld [vmem:[%s0 + $0x408] sm:$0xff]
  %v144 = vld [vmem:[%s0 + $0x410] sm:$0xff]
  %v145 = vld [vmem:[%s0 + $0x418] sm:$0xff]
  %v146 = vld [vmem:[%s0 + $0x420] sm:$0xff]
  %v147 = vld [vmem:[%s0 + $0x428] sm:$0xff]
  %v148 = vld [vmem:[%s0 + $0x430] sm:$0xff]
  %v149 = vld [vmem:[%s0 + $0x438] sm:$0xff]
  %v150 = vld [vmem:[%s0 + $0x440] sm:$0xff]
  %v151 = vld [vmem:[%s0 + $0x448] sm:$0xff]
  %v152 = vld [vmem:[%s0 + $0x450] sm:$0xff]
  %v153 = vld [vmem:[%s0 + $0x458] sm:$0xff]
  %v154 = vld [vmem:[%s0 + $0x460] sm:$0xff]
  %v155 = vld [vmem:[%s0 + $0x468] sm:$0xff]
  %v156 = vld [vmem:[%s0 + $0x470] sm:$0xff]
  %v157 = vld [vmem:[%s0 + $0x478] sm:$0xff]
  %v158 = vld [vmem:[%s0 + $0x480] sm:$0xff]
  %v159 = vld [vmem:[%s0 + $0x488] sm:$0xff]
  %v160 = vld [vmem:[%s0 + $0x490] sm:$0xff]
  %v161 = vld [vmem:[%s0 + $0x498] sm:$0xff]
  %v162 = vld [vmem:[%s0 + $0x4a0] sm:$0xff]
  %v163 = vld [vmem:[%s0 + $0x4a8] sm:$0xff]
  %v164 = vld [vmem:[%s0 + $0x4b0] sm:$0xff]
  %v165 = vld [vmem:[%s0 + $0x4b8] sm:$0xff]
  %v166 = vld [vmem:[%s0 + $0x4c0] sm:$0xff]
  %v167 = vld [vmem:[%s0 + $0x4c8] sm:$0xff]
  %v168 = vld [vmem:[%s0 + $0x4d0] sm:$0xff]
  %v169 = vld [vmem:[%s0 + $0x4d8] sm:$0xff]
  %v170 = vld [vmem:[%s0 + $0x4e0] sm:$0xff]
  %v171 = vld [vmem:[%s0 + $0x4e8] sm:$0xff]
  %v172 = vld [vmem:[%s0 + $0x4f0] sm:$0xff]
  %v173 = vld [vmem:[%s0 + $0x4f8] sm:$0xff]
  %v174 = vld [vmem:[%s0 + $0x500] sm:$0xff]
  %v175 = vld [vmem:[%s0 + $0x508] sm:$0xff]
  %v176 = vld [vmem:[%s0 + $0x510] sm:$0xff]
  %v177 = vld [vmem:[%s0 + $0x518] sm:$0xff]
  %v178 = vld [vmem:[%s0 + $0x520] sm:$0xff]
  %v179 = vld [vmem:[%s0 + $0x528] sm:$0xff]
  %v180 = vld [vmem:[%s0 + $0x530] sm:$0xff]
  %v181 = vld [vmem:[%s0 + $0x538] sm:$0xff]
  %v182 = vld [vmem:[%s0 + $0x540] sm:$0xff]
  %v183 = vld [vmem:[%s0 + $0x548] sm:$0xff]
  %v184 = vld [vmem:[%s0 + $0x550] sm:$0xff]
  %v185 = vld [vmem:[%s0 + $0x558] sm:$0xff]
  %v186 = vld [vmem:[%s0 + $0x560] sm:$0xff]
  %v187 = vld [vmem:[%s0 + $0x568] sm:$0xff]
  %v188 = vld [vmem:[%s0 + $0x570] sm:$0xff]
  %v189 = vld [vmem:[%s0 + $0x578] sm:$0xff]
  %v190 = vld [vmem:[%s0 + $0x580] sm:$0xff]
  %v191 = vld [vmem:[%s0 + $0x588] sm:$0xff]
  %v192 = vld [vmem:[%s0 + $0x590] sm:$0xff]
  %v193 = vld [vmem:[%s0 + $0x598] sm:$0xff]
  %v194 = vld [vmem:[%s0 + $0x5a0] sm:$0xff]
  %v195 = vld [vmem:[%s0 + $0x5a8] sm:$0xff]
  %v196 = vld [vmem:[%s0 + $0x5b0] sm:$0xff]
  %v197 = vld [vmem:[%s0 + $0x5b8] sm:$0xff]
  %v198 = vld [vmem:[%s0 + $0x5c0] sm:$0xff]
  %v199 = vld [vmem:[%s0 + $0x5c8] sm:$0xff]
  %v200 = vld [vmem:[%s0 + $0x5d0] sm:$0xff]
  %v201 = vld [vmem:[%s0 + $0x5d8] sm:$0xff]
  %v202 = vld [vmem:[%s0 + $0x5e0] sm:$0xff]
  %v203 = vld [vmem:[%s0 + $0x5e8] sm:$0xff]
  %v204 = vld [vmem:[%s0 + $0x5f0] sm:$0xff]
  %v205 = vld [vmem:[%s0 + $0x5f8] sm:$0xff]
  %v206 = vld [vmem:[%s0 + $0x600] sm:$0xff]
  %v207 = vld [vmem:[%s0 + $0x608] sm:$0xff]
  %v208 = vld [vmem:[%s0 + $0x610] sm:$0xff]
  %v209 = vld [vmem:[%s0 + $0x618] sm:$0xff]
  %v210 = vld [vmem:[%s1] sm:$0xff]
  %v211 = vld [vmem:[%s1 + $0x8] sm:$0xff]
  %v212 = vld [vmem:[%s1 + $0x10] sm:$0xff]
  %v213 = vld [vmem:[%s1 + $0x18] sm:$0xff]
  %v214 = vld [vmem:[%s1 + $0x20] sm:$0xff]
  %v215 = vld [vmem:[%s1 + $0x28] sm:$0xff]
  %v216 = vld [vmem:[%s1 + $0x30] sm:$0xff]
  %v217 = vld [vmem:[%s1 + $0x38] sm:$0xff]
  %v218 = vld [vmem:[%s1 + $0x40] sm:$0xff]
  %v219 = vld [vmem:[%s1 + $0x48] sm:$0xff]
  %v220 = vld [vmem:[%s1 + $0x50] sm:$0xff]
  %v221 = vld [vmem:[%s1 + $0x58] sm:$0xff]
  %v222 = vld [vmem:[%s1 + $0x60] sm:$0xff]
  %v223 = vld [vmem:[%s1 + $0x68] sm:$0xff]
  %v224 = vld [vmem:[%s1 + $0x70] sm:$0xff]
  %v225 = vld [vmem:[%s1 + $0x78] sm:$0xff]
  %v226 = vld [vmem:[%s1 + $0x80] sm:$0xff]
  %v227 = vld [vmem:[%s1 + $0x88] sm:$0xff]
  %v228 = vld [vmem:[%s1 + $0x90] sm:$0xff]
  %v229 = vld [vmem:[%s1 + $0x98] sm:$0xff]
  %v230 = vld [vmem:[%s1 + $0xa0] sm:$0xff]
  %v231 = vld [vmem:[%s1 + $0xa8] sm:$0xff]
  %v232 = vld [vmem:[%s1 + $0xb0] sm:$0xff]
  %v233 = vld [vmem:[%s1 + $0xb8] sm:$0xff]
  %v234 = vld [vmem:[%s1 + $0xc0] sm:$0xff]
  %v235 = vld [vmem:[%s1 + $0xc8] sm:$0xff]
  %v236 = vld [vmem:[%s1 + $0xd0] sm:$0xff]
  %v237 = vld [vmem:[%s1 + $0xd8] sm:$0xff]
  %v238 = vld [vmem:[%s1 + $0xe0] sm:$0xff]
  %v239 = vld [vmem:[%s1 + $0xe8] sm:$0xff]
  %v240 = vld [vmem:[%s1 + $0xf0] sm:$0xff]
  %v241 = vld [vmem:[%s1 + $0xf8] sm:$0xff]
  %v242 = vld [vmem:[%s1 + $0x100] sm:$0xff]
  %v243 = vld [vmem:[%s1 + $0x108] sm:$0xff]
  %v244 = vld [vmem:[%s1 + $0x110] sm:$0xff]
  %v245 = vld [vmem:[%s1 + $0x118] sm:$0xff]
  %v246 = vld [vmem:[%s1 + $0x120] sm:$0xff]
  %v247 = vld [vmem:[%s1 + $0x128] sm:$0xff]
  %v248 = vld [vmem:[%s1 + $0x130] sm:$0xff]
  %v249 = vld [vmem:[%s1 + $0x138] sm:$0xff]
  %v250 = vld [vmem:[%s1 + $0x140] sm:$0xff]
  %v251 = vld [vmem:[%s1 + $0x148] sm:$0xff]
  %v252 = vld [vmem:[%s1 + $0x150] sm:$0xff]
  %v253 = vld [vmem:[%s1 + $0x158] sm:$0xff]
  %v254 = vld [vmem:[%s1 + $0x160] sm:$0xff]
  %v255 = vld [vmem:[%s1 + $0x168] sm:$0xff]
  %v256 = vld [vmem:[%s1 + $0x170] sm:$0xff]
  %v257 = vld [vmem:[%s1 + $0x178] sm:$0xff]
  %v258 = vld [vmem:[%s1 + $0x180] sm:$0xff]
  %v259 = vld [vmem:[%s1 + $0x188] sm:$0xff]
  %v260 = vld [vmem:[%s1 + $0x190] sm:$0xff]
  %v261 = vld [vmem:[%s1 + $0x198] sm:$0xff]
  %v262 = vld [vmem:[%s1 + $0x1a0] sm:$0xff]
  %v263 = vld [vmem:[%s1 + $0x1a8] sm:$0xff]
  %v264 = vld [vmem:[%s1 + $0x1b0] sm:$0xff]
  %v265 = vld [vmem:[%s1 + $0x1b8] sm:$0xff]
  %v266 = vld [vmem:[%s1 + $0x1c0] sm:$0xff]
  %v267 = vld [vmem:[%s1 + $0x1c8] sm:$0xff]
  %v268 = vld [vmem:[%s1 + $0x1d0] sm:$0xff]
  %v269 = vld [vmem:[%s1 + $0x1d8] sm:$0xff]
  %v270 = vld [vmem:[%s1 + $0x1e0] sm:$0xff]
  %v271 = vld [vmem:[%s1 + $0x1e8] sm:$0xff]
  %v272 = vld [vmem:[%s1 + $0x1f0] sm:$0xff]
  %v273 = vld [vmem:[%s1 + $0x1f8] sm:$0xff]
  %v274 = vld [vmem:[%s2] sm:$0x1]
  %v276 = vlaneseq
  %v277 = vshrl.u32 %v276, 7
  %v278 = vsub.s32 0, %v277
  %v279 = vrot.slane %v274, %v278
  %281 = vmatprep.subr.mxu0 0.0
  %282 = vmatpush1.msra.mxu0 %v210
  %283 = vmatprep.subr.mxu0 0.0
  %284 = vmatpush1.msra.mxu0 %v211
  %285 = vmatprep.subr.mxu0 0.0
  %286 = vmatpush1.msra.mxu0 %v212
  %287 = vmatprep.subr.mxu0 0.0
  %288 = vmatpush1.msra.mxu0 %v213
  %289 = vmatprep.subr.mxu0 0.0
  %290 = vmatpush1.msra.mxu0 %v214
  %291 = vmatprep.subr.mxu0 0.0
  %292 = vmatpush1.msra.mxu0 %v215
  %293 = vmatprep.subr.mxu0 0.0
  %294 = vmatpush1.msra.mxu0 %v216
  %295 = vmatprep.subr.mxu0 0.0
  %296 = vmatpush1.msra.mxu0 %v217
  %297 = vmatprep.subr.mxu0 0.0
  %298 = vmatpush1.msra.mxu0 %v218
  %299 = vmatprep.subr.mxu0 0.0
  %300 = vmatpush1.msra.mxu0 %v219
  %301 = vmatprep.subr.mxu0 0.0
  %302 = vmatpush1.msra.mxu0 %v220
  %303 = vmatprep.subr.mxu0 0.0
  %304 = vmatpush1.msra.mxu0 %v221
  %305 = vmatprep.subr.mxu0 0.0
  %306 = vmatpush1.msra.mxu0 %v222
  %307 = vmatprep.subr.mxu0 0.0
  %308 = vmatpush1.msra.mxu0 %v223
  %309 = vmatprep.subr.mxu0 0.0
  %310 = vmatpush1.msra.mxu0 %v224
  %311 = vmatprep.subr.mxu0 0.0
  %312 = vmatpush1.msra.mxu0 %v225
  %313 = vmatprep.subr.mxu0 0.0
  %314 = vmatpush1.msra.mxu0 %v226
  %315 = vmatprep.subr.mxu0 0.0
  %316 = vmatpush1.msra.mxu0 %v227
  %317 = vmatprep.subr.mxu0 0.0
  %318 = vmatpush1.msra.mxu0 %v228
  %319 = vmatprep.subr.mxu0 0.0
  %320 = vmatpush1.msra.mxu0 %v229
  %321 = vmatprep.subr.mxu0 0.0
  %322 = vmatpush1.msra.mxu0 %v230
  %323 = vmatprep.subr.mxu0 0.0
  %324 = vmatpush1.msra.mxu0 %v231
  %325 = vmatprep.subr.mxu0 0.0
  %326 = vmatpush1.msra.mxu0 %v232
  %327 = vmatprep.subr.mxu0 0.0
  %328 = vmatpush1.msra.mxu0 %v233
  %329 = vmatprep.subr.mxu0 0.0
  %330 = vmatpush1.msra.mxu0 %v234
  %331 = vmatprep.subr.mxu0 0.0
  %332 = vmatpush1.msra.mxu0 %v235
  %333 = vmatprep.subr.mxu0 0.0
  %334 = vmatpush1.msra.mxu0 %v236
  %335 = vmatprep.subr.mxu0 0.0
  %336 = vmatpush1.msra.mxu0 %v237
  %337 = vmatprep.subr.mxu0 0.0
  %338 = vmatpush1.msra.mxu0 %v238
  %339 = vmatprep.subr.mxu0 0.0
  %340 = vmatpush1.msra.mxu0 %v239
  %341 = vmatprep.subr.mxu0 0.0
  %342 = vmatpush1.msra.mxu0 %v240
  %343 = vmatprep.subr.mxu0 0.0
  %344 = vmatpush1.msra.mxu0 %v241
  %345 = vmatprep.mubr.f32.mxu0 %v15
  %346 = vmatmul.mubr.f32.gmra.mrb[0].mxu0 %v14
  %v347 = vpop.f32.mrb[0].mxu0
  %v348 = vadd.f32 %v279, %v347
  %v349 = vpop.f32.mrb[0].mxu0
  %350 = vmatprep.mubr.f32.mxu0 %v19
  %351 = vmatmul.mubr.f32.gmra.mrb[0].mxu0 %v18
  %v352 = vpop.f32.mrb[0].mxu0
  %v353 = vadd.f32 %v279, %v352
  %v354 = vpop.f32.mrb[0].mxu0
  %355 = vmatprep.mubr.f32.mxu0 %v23
  %356 = vmatmul.mubr.f32.gmra.mrb[0].mxu0 %v22
  %v357 = vpop.f32.mrb[0].mxu0
  %v358 = vadd.f32 %v279, %v357
  %v359 = vpop.f32.mrb[0].mxu0
  %360 = vmatprep.mubr.f32.mxu0 %v27
  %361 = vmatmul.mubr.f32.gmra.mrb[0].mxu0 %v26
  %v362 = vpop.f32.mrb[0].mxu0
  %v363 = vadd.f32 %v279, %v362
  %v364 = vpop.f32.mrb[0].mxu0
  %365 = vmatprep.mubr.f32.mxu0 %v31
  %366 = vmatmul.mubr.f32.gmra.mrb[0].mxu0 %v30
  %v367 = vpop.f32.mrb[0].mxu0
  %v368 = vadd.f32 %v279, %v367
  %v369 = vpop.f32.mrb[0].mxu0
  %370 = vmatprep.mubr.f32.mxu0 %v35
  %371 = vmatmul.mubr.f32.gmra.mrb[0].mxu0 %v34
  %v372 = vpop.f32.mrb[0].mxu0
  %v373 = vadd.f32 %v279, %v372
  %v374 = vpop.f32.mrb[0].mxu0
  %375 = vmatprep.mubr.f32.mxu0 %v39
  %376 = vmatmul.mubr.f32.gmra.mrb[0].mxu0 %v38
  %v377 = vpop.f32.mrb[0].mxu0
  %v378 = vadd.f32 %v279, %v377
  %v379 = vpop.f32.mrb[0].mxu0
  %380 = vmatprep.mubr.f32.mxu0 %v43
  %381 = vmatmul.mubr.f32.gmra.mrb[0].mxu0 %v42
  %v382 = vpop.f32.mrb[0].mxu0
  %v383 = vadd.f32 %v279, %v382
  %v384 = vpop.f32.mrb[0].mxu0
  %385 = vmatprep.mubr.f32.mxu0 %v47
  %386 = vmatmul.mubr.f32.gmra.mrb[0].mxu0 %v46
  %v387 = vpop.f32.mrb[0].mxu0
  %v388 = vadd.f32 %v279, %v387
  %v389 = vpop.f32.mrb[0].mxu0
  %390 = vmatprep.mubr.f32.mxu0 %v51
  %391 = vmatmul.mubr.f32.gmra.mrb[0].mxu0 %v50
  %v392 = vpop.f32.mrb[0].mxu0
  %v393 = vadd.f32 %v279, %v392
  %v394 = vpop.f32.mrb[0].mxu0
  %395 = vmatprep.mubr.f32.mxu0 %v55
  %396 = vmatmul.mubr.f32.gmra.mrb[0].mxu0 %v54
  %v397 = vpop.f32.mrb[0].mxu0
  %v398 = vadd.f32 %v279, %v397
  %v399 = vpop.f32.mrb[0].mxu0
  %400 = vmatprep.mubr.f32.mxu0 %v59
  %401 = vmatmul.mubr.f32.gmra.mrb[0].mxu0 %v58
  %v402 = vpop.f32.mrb[0].mxu0
  %v403 = vadd.f32 %v279, %v402
  %v404 = vpop.f32.mrb[0].mxu0
  %405 = vmatprep.mubr.f32.mxu0 %v63
  %406 = vmatmul.mubr.f32.gmra.mrb[0].mxu0 %v62
  %v407 = vpop.f32.mrb[0].mxu0
  %v408 = vadd.f32 %v279, %v407
  %v409 = vpop.f32.mrb[0].mxu0
  %410 = vmatprep.mubr.f32.mxu0 %v67
  %411 = vmatmul.mubr.f32.gmra.mrb[0].mxu0 %v66
  %v412 = vpop.f32.mrb[0].mxu0
  %v413 = vadd.f32 %v279, %v412
  %v414 = vpop.f32.mrb[0].mxu0
  %415 = vmatprep.mubr.f32.mxu0 %v71
  %416 = vmatmul.mubr.f32.gmra.mrb[0].mxu0 %v70
  %v417 = vpop.f32.mrb[0].mxu0
  %v418 = vadd.f32 %v279, %v417
  %v419 = vpop.f32.mrb[0].mxu0
  %420 = vmatprep.mubr.f32.mxu0 %v75
  %421 = vmatmul.mubr.f32.gmra.mrb[0].mxu0 %v74
  %v422 = vpop.f32.mrb[0].mxu0
  %v423 = vadd.f32 %v279, %v422
  %v424 = vpop.f32.mrb[0].mxu0
  %425 = vmatprep.mubr.f32.mxu0 %v79
  %426 = vmatmul.mubr.f32.gmra.mrb[0].mxu0 %v78
  %v427 = vpop.f32.mrb[0].mxu0
  %v428 = vadd.f32 %v279, %v427
  %v429 = vpop.f32.mrb[0].mxu0
  %430 = vmatprep.mubr.f32.mxu0 %v83
  %431 = vmatmul.mubr.f32.gmra.mrb[0].mxu0 %v82
  %v432 = vpop.f32.mrb[0].mxu0
  %v433 = vadd.f32 %v279, %v432
  %v434 = vpop.f32.mrb[0].mxu0
  %435 = vmatprep.mubr.f32.mxu0 %v87
  %436 = vmatmul.mubr.f32.gmra.mrb[0].mxu0 %v86
  %v437 = vpop.f32.mrb[0].mxu0
  %v438 = vadd.f32 %v279, %v437
  %v439 = vpop.f32.mrb[0].mxu0
  %440 = vmatprep.mubr.f32.mxu0 %v91
  %441 = vmatmul.mubr.f32.gmra.mrb[0].mxu0 %v90
  %v442 = vpop.f32.mrb[0].mxu0
  %v443 = vadd.f32 %v279, %v442
  %v444 = vpop.f32.mrb[0].mxu0
  %445 = vmatprep.mubr.f32.mxu0 %v95
  %446 = vmatmul.mubr.f32.gmra.mrb[0].mxu0 %v94
  %v447 = vpop.f32.mrb[0].mxu0
  %v448 = vadd.f32 %v279, %v447
  %v449 = vpop.f32.mrb[0].mxu0
  %450 = vmatprep.mubr.f32.mxu0 %v99
  %451 = vmatmul.mubr.f32.gmra.mrb[0].mxu0 %v98
  %v452 = vpop.f32.mrb[0].mxu0
  %v453 = vadd.f32 %v279, %v452
  %v454 = vpop.f32.mrb[0].mxu0
  %455 = vmatprep.mubr.f32.mxu0 %v103
  %456 = vmatmul.mubr.f32.gmra.mrb[0].mxu0 %v102
  %v457 = vpop.f32.mrb[0].mxu0
  %v458 = vadd.f32 %v279, %v457
  %v459 = vpop.f32.mrb[0].mxu0
  %460 = vmatprep.mubr.f32.mxu0 %v107
  %461 = vmatmul.mubr.f32.gmra.mrb[0].mxu0 %v106
  %v462 = vpop.f32.mrb[0].mxu0
  %v463 = vadd.f32 %v279, %v462
  %v464 = vpop.f32.mrb[0].mxu0
  %465 = vmatprep.mubr.f32.mxu0 %v111
  %466 = vmatmul.mubr.f32.gmra.mrb[0].mxu0 %v110
  %v467 = vpop.f32.mrb[0].mxu0
  %v468 = vadd.f32 %v279, %v467
  %v469 = vpop.f32.mrb[0].mxu0
  %470 = vmatprep.mubr.f32.mxu0 %v115
  %471 = vmatmul.mubr.f32.gmra.mrb[0].mxu0 %v114
  %v472 = vpop.f32.mrb[0].mxu0
  %v473 = vadd.f32 %v279, %v472
  %v474 = vpop.f32.mrb[0].mxu0
  %475 = vmatprep.mubr.f32.mxu0 %v119
  %476 = vmatmul.mubr.f32.gmra.mrb[0].mxu0 %v118
  %v477 = vpop.f32.mrb[0].mxu0
  %v478 = vadd.f32 %v279, %v477
  %v479 = vpop.f32.mrb[0].mxu0
  %480 = vmatprep.mubr.f32.mxu0 %v123
  %481 = vmatmul.mubr.f32.gmra.mrb[0].mxu0 %v122
  %v482 = vpop.f32.mrb[0].mxu0
  %v483 = vadd.f32 %v279, %v482
  %v484 = vpop.f32.mrb[0].mxu0
  %485 = vmatprep.mubr.f32.mxu0 %v127
  %486 = vmatmul.mubr.f32.gmra.mrb[0].mxu0 %v126
  %v487 = vpop.f32.mrb[0].mxu0
  %v488 = vadd.f32 %v279, %v487
  %v489 = vpop.f32.mrb[0].mxu0
  %490 = vmatprep.mubr.f32.mxu0 %v131
  %491 = vmatmul.mubr.f32.gmra.mrb[0].mxu0 %v130
  %v492 = vpop.f32.mrb[0].mxu0
  %v493 = vadd.f32 %v279, %v492
  %v494 = vpop.f32.mrb[0].mxu0
  %495 = vmatprep.mubr.f32.mxu0 %v135
  %496 = vmatmul.mubr.f32.gmra.mrb[0].mxu0 %v134
  %v497 = vpop.f32.mrb[0].mxu0
  %v498 = vadd.f32 %v279, %v497
  %v499 = vpop.f32.mrb[0].mxu0
  %500 = vmatprep.mubr.f32.mxu0 %v139
  %501 = vmatmul.mubr.f32.gmra.mrb[0].mxu0 %v138
  %v502 = vpop.f32.mrb[0].mxu0
  %v503 = vadd.f32 %v279, %v502
  %v504 = vpop.f32.mrb[0].mxu0
  %505 = vmatprep.mubr.f32.mxu0 %v143
  %506 = vmatmul.mubr.f32.gmra.mrb[0].mxu0 %v142
  %v507 = vpop.f32.mrb[0].mxu0
  %v508 = vadd.f32 %v279, %v507
  %v509 = vpop.f32.mrb[0].mxu0
  %510 = vmatprep.mubr.f32.mxu0 %v147
  %511 = vmatmul.mubr.f32.gmra.mrb[0].mxu0 %v146
  %v512 = vpop.f32.mrb[0].mxu0
  %v513 = vadd.f32 %v279, %v512
  %v514 = vpop.f32.mrb[0].mxu0
  %515 = vmatprep.mubr.f32.mxu0 %v151
  %516 = vmatmul.mubr.f32.gmra.mrb[0].mxu0 %v150
  %v517 = vpop.f32.mrb[0].mxu0
  %v518 = vadd.f32 %v279, %v517
  %v519 = vpop.f32.mrb[0].mxu0
  %520 = vmatprep.mubr.f32.mxu0 %v155
  %521 = vmatmul.mubr.f32.gmra.mrb[0].mxu0 %v154
  %v522 = vpop.f32.mrb[0].mxu0
  %v523 = vadd.f32 %v279, %v522
  %v524 = vpop.f32.mrb[0].mxu0
  %525 = vmatprep.mubr.f32.mxu0 %v159
  %526 = vmatmul.mubr.f32.gmra.mrb[0].mxu0 %v158
  %v527 = vpop.f32.mrb[0].mxu0
  %v528 = vadd.f32 %v279, %v527
  %v529 = vpop.f32.mrb[0].mxu0
  %530 = vmatprep.mubr.f32.mxu0 %v163
  %531 = vmatmul.mubr.f32.gmra.mrb[0].mxu0 %v162
  %v532 = vpop.f32.mrb[0].mxu0
  %v533 = vadd.f32 %v279, %v532
  %v534 = vpop.f32.mrb[0].mxu0
  %535 = vmatprep.mubr.f32.mxu0 %v167
  %536 = vmatmul.mubr.f32.gmra.mrb[0].mxu0 %v166
  %v537 = vpop.f32.mrb[0].mxu0
  %v538 = vadd.f32 %v279, %v537
  %v539 = vpop.f32.mrb[0].mxu0
  %540 = vmatprep.mubr.f32.mxu0 %v171
  %541 = vmatmul.mubr.f32.gmra.mrb[0].mxu0 %v170
  %v542 = vpop.f32.mrb[0].mxu0
  %v543 = vadd.f32 %v279, %v542
  %v544 = vpop.f32.mrb[0].mxu0
  %545 = vmatprep.mubr.f32.mxu0 %v175
  %546 = vmatmul.mubr.f32.gmra.mrb[0].mxu0 %v174
  %v547 = vpop.f32.mrb[0].mxu0
  %v548 = vadd.f32 %v279, %v547
  %v549 = vpop.f32.mrb[0].mxu0
  %550 = vmatprep.mubr.f32.mxu0 %v179
  %551 = vmatmul.mubr.f32.gmra.mrb[0].mxu0 %v178
  %v552 = vpop.f32.mrb[0].mxu0
  %v553 = vadd.f32 %v279, %v552
  %v554 = vpop.f32.mrb[0].mxu0
  %555 = vmatprep.mubr.f32.mxu0 %v183
  %556 = vmatmul.mubr.f32.gmra.mrb[0].mxu0 %v182
  %v557 = vpop.f32.mrb[0].mxu0
  %v558 = vadd.f32 %v279, %v557
  %v559 = vpop.f32.mrb[0].mxu0
  %560 = vmatprep.mubr.f32.mxu0 %v187
  %561 = vmatmul.mubr.f32.gmra.mrb[0].mxu0 %v186
  %v562 = vpop.f32.mrb[0].mxu0
  %v563 = vadd.f32 %v279, %v562
  %v564 = vpop.f32.mrb[0].mxu0
  %565 = vmatprep.mubr.f32.mxu0 %v191
  %566 = vmatmul.mubr.f32.gmra.mrb[0].mxu0 %v190
  %v567 = vpop.f32.mrb[0].mxu0
  %v568 = vadd.f32 %v279, %v567
  %v569 = vpop.f32.mrb[0].mxu0
  %570 = vmatprep.mubr.f32.mxu0 %v195
  %571 = vmatmul.mubr.f32.gmra.mrb[0].mxu0 %v194
  %v572 = vpop.f32.mrb[0].mxu0
  %v573 = vadd.f32 %v279, %v572
  %v574 = vpop.f32.mrb[0].mxu0
  %575 = vmatprep.mubr.f32.mxu0 %v199
  %576 = vmatmul.mubr.f32.gmra.mrb[0].mxu0 %v198
  %v577 = vpop.f32.mrb[0].mxu0
  %v578 = vadd.f32 %v279, %v577
  %v579 = vpop.f32.mrb[0].mxu0
  %580 = vmatprep.mubr.f32.mxu0 %v203
  %581 = vmatmul.mubr.f32.gmra.mrb[0].mxu0 %v202
  %v582 = vpop.f32.mrb[0].mxu0
  %v583 = vadd.f32 %v279, %v582
  %v584 = vpop.f32.mrb[0].mxu0
  %585 = vmatprep.mubr.f32.mxu0 %v207
  %586 = vmatmul.mubr.f32.gmra.mrb[0].mxu0 %v206
  %v587 = vpop.f32.mrb[0].mxu0
  %v588 = vadd.f32 %v279, %v587
  %v589 = vpop.f32.mrb[0].mxu0
  %590 = vdwg.mxu0
  %591 = vmatprep.subr.mxu0 0.0
  %592 = vmatpush1.msra.mxu0 %v242
  %593 = vmatprep.subr.mxu0 0.0
  %594 = vmatpush1.msra.mxu0 %v243
  %595 = vmatprep.subr.mxu0 0.0
  %596 = vmatpush1.msra.mxu0 %v244
  %597 = vmatprep.subr.mxu0 0.0
  %598 = vmatpush1.msra.mxu0 %v245
  %599 = vmatprep.subr.mxu0 0.0
  %600 = vmatpush1.msra.mxu0 %v246
  %601 = vmatprep.subr.mxu0 0.0
  %602 = vmatpush1.msra.mxu0 %v247
  %603 = vmatprep.subr.mxu0 0.0
  %604 = vmatpush1.msra.mxu0 %v248
  %605 = vmatprep.subr.mxu0 0.0
  %606 = vmatpush1.msra.mxu0 %v249
  %607 = vmatprep.subr.mxu0 0.0
  %608 = vmatpush1.msra.mxu0 %v250
  %609 = vmatprep.subr.mxu0 0.0
  %610 = vmatpush1.msra.mxu0 %v251
  %611 = vmatprep.subr.mxu0 0.0
  %612 = vmatpush1.msra.mxu0 %v252
  %613 = vmatprep.subr.mxu0 0.0
  %614 = vmatpush1.msra.mxu0 %v253
  %615 = vmatprep.subr.mxu0 0.0
  %616 = vmatpush1.msra.mxu0 %v254
  %617 = vmatprep.subr.mxu0 0.0
  %618 = vmatpush1.msra.mxu0 %v255
  %619 = vmatprep.subr.mxu0 0.0
  %620 = vmatpush1.msra.mxu0 %v256
  %621 = vmatprep.subr.mxu0 0.0
  %622 = vmatpush1.msra.mxu0 %v257
  %623 = vmatprep.subr.mxu0 0.0
  %624 = vmatpush1.msra.mxu0 %v258
  %625 = vmatprep.subr.mxu0 0.0
  %626 = vmatpush1.msra.mxu0 %v259
  %627 = vmatprep.subr.mxu0 0.0
  %628 = vmatpush1.msra.mxu0 %v260
  %629 = vmatprep.subr.mxu0 0.0
  %630 = vmatpush1.msra.mxu0 %v261
  %631 = vmatprep.subr.mxu0 0.0
  %632 = vmatpush1.msra.mxu0 %v262
  %633 = vmatprep.subr.mxu0 0.0
  %634 = vmatpush1.msra.mxu0 %v263
  %635 = vmatprep.subr.mxu0 0.0
  %636 = vmatpush1.msra.mxu0 %v264
  %637 = vmatprep.subr.mxu0 0.0
  %638 = vmatpush1.msra.mxu0 %v265
  %639 = vmatprep.subr.mxu0 0.0
  %640 = vmatpush1.msra.mxu0 %v266
  %641 = vmatprep.subr.mxu0 0.0
  %642 = vmatpush1.msra.mxu0 %v267
  %643 = vmatprep.subr.mxu0 0.0
  %644 = vmatpush1.msra.mxu0 %v268
  %645 = vmatprep.subr.mxu0 0.0
  %646 = vmatpush1.msra.mxu0 %v269
  %647 = vmatprep.subr.mxu0 0.0
  %648 = vmatpush1.msra.mxu0 %v270
  %649 = vmatprep.subr.mxu0 0.0
  %650 = vmatpush1.msra.mxu0 %v271
  %651 = vmatprep.subr.mxu0 0.0
  %652 = vmatpush1.msra.mxu0 %v272
  %653 = vmatprep.subr.mxu0 0.0
  %654 = vmatpush1.msra.mxu0 %v273
  %655 = vmatprep.mubr.f32.mxu0 %v17
  %656 = vmatmul.mubr.f32.gmra.mrb[0].mxu0 %v16
  %v657 = vpop.f32.mrb[0].mxu0
  %v658 = vadd.f32 %v348, %v657
  %v659 = vpop.f32.mrb[0].mxu0
  %660 = vmatprep.mubr.f32.mxu0 %v21
  %661 = vmatmul.mubr.f32.gmra.mrb[0].mxu0 %v20
  %v662 = vpop.f32.mrb[0].mxu0
  %v663 = vadd.f32 %v353, %v662
  %v664 = vpop.f32.mrb[0].mxu0
  %665 = vmatprep.mubr.f32.mxu0 %v25
  %666 = vmatmul.mubr.f32.gmra.mrb[0].mxu0 %v24
  %v667 = vpop.f32.mrb[0].mxu0
  %v668 = vadd.f32 %v358, %v667
  %v669 = vpop.f32.mrb[0].mxu0
  %670 = vmatprep.mubr.f32.mxu0 %v29
  %671 = vmatmul.mubr.f32.gmra.mrb[0].mxu0 %v28
  %v672 = vpop.f32.mrb[0].mxu0
  %v673 = vadd.f32 %v363, %v672
  %v674 = vpop.f32.mrb[0].mxu0
  %675 = vmatprep.mubr.f32.mxu0 %v33
  %676 = vmatmul.mubr.f32.gmra.mrb[0].mxu0 %v32
  %v677 = vpop.f32.mrb[0].mxu0
  %v678 = vadd.f32 %v368, %v677
  %v679 = vpop.f32.mrb[0].mxu0
  %680 = vmatprep.mubr.f32.mxu0 %v37
  %681 = vmatmul.mubr.f32.gmra.mrb[0].mxu0 %v36
  %v682 = vpop.f32.mrb[0].mxu0
  %v683 = vadd.f32 %v373, %v682
  %v684 = vpop.f32.mrb[0].mxu0
  %685 = vmatprep.mubr.f32.mxu0 %v41
  %686 = vmatmul.mubr.f32.gmra.mrb[0].mxu0 %v40
  %v687 = vpop.f32.mrb[0].mxu0
  %v688 = vadd.f32 %v378, %v687
  %v689 = vpop.f32.mrb[0].mxu0
  %690 = vmatprep.mubr.f32.mxu0 %v45
  %691 = vmatmul.mubr.f32.gmra.mrb[0].mxu0 %v44
  %v692 = vpop.f32.mrb[0].mxu0
  %v693 = vadd.f32 %v383, %v692
  %v694 = vpop.f32.mrb[0].mxu0
  %695 = vmatprep.mubr.f32.mxu0 %v49
  %696 = vmatmul.mubr.f32.gmra.mrb[0].mxu0 %v48
  %v697 = vpop.f32.mrb[0].mxu0
  %v698 = vadd.f32 %v388, %v697
  %v699 = vpop.f32.mrb[0].mxu0
  %700 = vmatprep.mubr.f32.mxu0 %v53
  %701 = vmatmul.mubr.f32.gmra.mrb[0].mxu0 %v52
  %v702 = vpop.f32.mrb[0].mxu0
  %v703 = vadd.f32 %v393, %v702
  %v704 = vpop.f32.mrb[0].mxu0
  %705 = vmatprep.mubr.f32.mxu0 %v57
  %706 = vmatmul.mubr.f32.gmra.mrb[0].mxu0 %v56
  %v707 = vpop.f32.mrb[0].mxu0
  %v708 = vadd.f32 %v398, %v707
  %v709 = vpop.f32.mrb[0].mxu0
  %710 = vmatprep.mubr.f32.mxu0 %v61
  %711 = vmatmul.mubr.f32.gmra.mrb[0].mxu0 %v60
  %v712 = vpop.f32.mrb[0].mxu0
  %v713 = vadd.f32 %v403, %v712
  %v714 = vpop.f32.mrb[0].mxu0
  %715 = vmatprep.mubr.f32.mxu0 %v65
  %716 = vmatmul.mubr.f32.gmra.mrb[0].mxu0 %v64
  %v717 = vpop.f32.mrb[0].mxu0
  %v718 = vadd.f32 %v408, %v717
  %v719 = vpop.f32.mrb[0].mxu0
  %720 = vmatprep.mubr.f32.mxu0 %v69
  %721 = vmatmul.mubr.f32.gmra.mrb[0].mxu0 %v68
  %v722 = vpop.f32.mrb[0].mxu0
  %v723 = vadd.f32 %v413, %v722
  %v724 = vpop.f32.mrb[0].mxu0
  %725 = vmatprep.mubr.f32.mxu0 %v73
  %726 = vmatmul.mubr.f32.gmra.mrb[0].mxu0 %v72
  %v727 = vpop.f32.mrb[0].mxu0
  %v728 = vadd.f32 %v418, %v727
  %v729 = vpop.f32.mrb[0].mxu0
  %730 = vmatprep.mubr.f32.mxu0 %v77
  %731 = vmatmul.mubr.f32.gmra.mrb[0].mxu0 %v76
  %v732 = vpop.f32.mrb[0].mxu0
  %v733 = vadd.f32 %v423, %v732
  %v734 = vpop.f32.mrb[0].mxu0
  %735 = vmatprep.mubr.f32.mxu0 %v81
  %736 = vmatmul.mubr.f32.gmra.mrb[0].mxu0 %v80
  %v737 = vpop.f32.mrb[0].mxu0
  %v738 = vadd.f32 %v428, %v737
  %v739 = vpop.f32.mrb[0].mxu0
  %740 = vmatprep.mubr.f32.mxu0 %v85
  %741 = vmatmul.mubr.f32.gmra.mrb[0].mxu0 %v84
  %v742 = vpop.f32.mrb[0].mxu0
  %v743 = vadd.f32 %v433, %v742
  %v744 = vpop.f32.mrb[0].mxu0
  %745 = vmatprep.mubr.f32.mxu0 %v89
  %746 = vmatmul.mubr.f32.gmra.mrb[0].mxu0 %v88
  %v747 = vpop.f32.mrb[0].mxu0
  %v748 = vadd.f32 %v438, %v747
  %v749 = vpop.f32.mrb[0].mxu0
  %750 = vmatprep.mubr.f32.mxu0 %v93
  %751 = vmatmul.mubr.f32.gmra.mrb[0].mxu0 %v92
  %v752 = vpop.f32.mrb[0].mxu0
  %v753 = vadd.f32 %v443, %v752
  %v754 = vpop.f32.mrb[0].mxu0
  %755 = vmatprep.mubr.f32.mxu0 %v97
  %756 = vmatmul.mubr.f32.gmra.mrb[0].mxu0 %v96
  %v757 = vpop.f32.mrb[0].mxu0
  %v758 = vadd.f32 %v448, %v757
  %v759 = vpop.f32.mrb[0].mxu0
  %760 = vmatprep.mubr.f32.mxu0 %v101
  %761 = vmatmul.mubr.f32.gmra.mrb[0].mxu0 %v100
  %v762 = vpop.f32.mrb[0].mxu0
  %v763 = vadd.f32 %v453, %v762
  %v764 = vpop.f32.mrb[0].mxu0
  %765 = vmatprep.mubr.f32.mxu0 %v105
  %766 = vmatmul.mubr.f32.gmra.mrb[0].mxu0 %v104
  %v767 = vpop.f32.mrb[0].mxu0
  %v768 = vadd.f32 %v458, %v767
  %v769 = vpop.f32.mrb[0].mxu0
  %770 = vmatprep.mubr.f32.mxu0 %v109
  %771 = vmatmul.mubr.f32.gmra.mrb[0].mxu0 %v108
  %v772 = vpop.f32.mrb[0].mxu0
  %v773 = vadd.f32 %v463, %v772
  %v774 = vpop.f32.mrb[0].mxu0
  %775 = vmatprep.mubr.f32.mxu0 %v113
  %776 = vmatmul.mubr.f32.gmra.mrb[0].mxu0 %v112
  %v777 = vpop.f32.mrb[0].mxu0
  %v778 = vadd.f32 %v468, %v777
  %v779 = vpop.f32.mrb[0].mxu0
  %780 = vmatprep.mubr.f32.mxu0 %v117
  %781 = vmatmul.mubr.f32.gmra.mrb[0].mxu0 %v116
  %v782 = vpop.f32.mrb[0].mxu0
  %v783 = vadd.f32 %v473, %v782
  %v784 = vpop.f32.mrb[0].mxu0
  %785 = vmatprep.mubr.f32.mxu0 %v121
  %786 = vmatmul.mubr.f32.gmra.mrb[0].mxu0 %v120
  %v787 = vpop.f32.mrb[0].mxu0
  %v788 = vadd.f32 %v478, %v787
  %v789 = vpop.f32.mrb[0].mxu0
  %790 = vmatprep.mubr.f32.mxu0 %v125
  %791 = vmatmul.mubr.f32.gmra.mrb[0].mxu0 %v124
  %v792 = vpop.f32.mrb[0].mxu0
  %v793 = vadd.f32 %v483, %v792
  %v794 = vpop.f32.mrb[0].mxu0
  %795 = vmatprep.mubr.f32.mxu0 %v129
  %796 = vmatmul.mubr.f32.gmra.mrb[0].mxu0 %v128
  %v797 = vpop.f32.mrb[0].mxu0
  %v798 = vadd.f32 %v488, %v797
  %v799 = vpop.f32.mrb[0].mxu0
  %800 = vmatprep.mubr.f32.mxu0 %v133
  %801 = vmatmul.mubr.f32.gmra.mrb[0].mxu0 %v132
  %v802 = vpop.f32.mrb[0].mxu0
  %v803 = vadd.f32 %v493, %v802
  %v804 = vpop.f32.mrb[0].mxu0
  %805 = vmatprep.mubr.f32.mxu0 %v137
  %806 = vmatmul.mubr.f32.gmra.mrb[0].mxu0 %v136
  %v807 = vpop.f32.mrb[0].mxu0
  %v808 = vadd.f32 %v498, %v807
  %v809 = vpop.f32.mrb[0].mxu0
  %810 = vmatprep.mubr.f32.mxu0 %v141
  %811 = vmatmul.mubr.f32.gmra.mrb[0].mxu0 %v140
  %v812 = vpop.f32.mrb[0].mxu0
  %v813 = vadd.f32 %v503, %v812
  %v814 = vpop.f32.mrb[0].mxu0
  %815 = vmatprep.mubr.f32.mxu0 %v145
  %816 = vmatmul.mubr.f32.gmra.mrb[0].mxu0 %v144
  %v817 = vpop.f32.mrb[0].mxu0
  %v818 = vadd.f32 %v508, %v817
  %v819 = vpop.f32.mrb[0].mxu0
  %820 = vmatprep.mubr.f32.mxu0 %v149
  %821 = vmatmul.mubr.f32.gmra.mrb[0].mxu0 %v148
  %v822 = vpop.f32.mrb[0].mxu0
  %v823 = vadd.f32 %v513, %v822
  %v824 = vpop.f32.mrb[0].mxu0
  %825 = vmatprep.mubr.f32.mxu0 %v153
  %826 = vmatmul.mubr.f32.gmra.mrb[0].mxu0 %v152
  %v827 = vpop.f32.mrb[0].mxu0
  %v828 = vadd.f32 %v518, %v827
  %v829 = vpop.f32.mrb[0].mxu0
  %830 = vmatprep.mubr.f32.mxu0 %v157
  %831 = vmatmul.mubr.f32.gmra.mrb[0].mxu0 %v156
  %v832 = vpop.f32.mrb[0].mxu0
  %v833 = vadd.f32 %v523, %v832
  %v834 = vpop.f32.mrb[0].mxu0
  %835 = vmatprep.mubr.f32.mxu0 %v161
  %836 = vmatmul.mubr.f32.gmra.mrb[0].mxu0 %v160
  %v837 = vpop.f32.mrb[0].mxu0
  %v838 = vadd.f32 %v528, %v837
  %v839 = vpop.f32.mrb[0].mxu0
  %840 = vmatprep.mubr.f32.mxu0 %v165
  %841 = vmatmul.mubr.f32.gmra.mrb[0].mxu0 %v164
  %v842 = vpop.f32.mrb[0].mxu0
  %v843 = vadd.f32 %v533, %v842
  %v844 = vpop.f32.mrb[0].mxu0
  %845 = vmatprep.mubr.f32.mxu0 %v169
  %846 = vmatmul.mubr.f32.gmra.mrb[0].mxu0 %v168
  %v847 = vpop.f32.mrb[0].mxu0
  %v848 = vadd.f32 %v538, %v847
  %v849 = vpop.f32.mrb[0].mxu0
  %850 = vmatprep.mubr.f32.mxu0 %v173
  %851 = vmatmul.mubr.f32.gmra.mrb[0].mxu0 %v172
  %v852 = vpop.f32.mrb[0].mxu0
  %v853 = vadd.f32 %v543, %v852
  %v854 = vpop.f32.mrb[0].mxu0
  %855 = vmatprep.mubr.f32.mxu0 %v177
  %856 = vmatmul.mubr.f32.gmra.mrb[0].mxu0 %v176
  %v857 = vpop.f32.mrb[0].mxu0
  %v858 = vadd.f32 %v548, %v857
  %v859 = vpop.f32.mrb[0].mxu0
  %860 = vmatprep.mubr.f32.mxu0 %v181
  %861 = vmatmul.mubr.f32.gmra.mrb[0].mxu0 %v180
  %v862 = vpop.f32.mrb[0].mxu0
  %v863 = vadd.f32 %v553, %v862
  %v864 = vpop.f32.mrb[0].mxu0
  %865 = vmatprep.mubr.f32.mxu0 %v185
  %866 = vmatmul.mubr.f32.gmra.mrb[0].mxu0 %v184
  %v867 = vpop.f32.mrb[0].mxu0
  %v868 = vadd.f32 %v558, %v867
  %v869 = vpop.f32.mrb[0].mxu0
  %870 = vmatprep.mubr.f32.mxu0 %v189
  %871 = vmatmul.mubr.f32.gmra.mrb[0].mxu0 %v188
  %v872 = vpop.f32.mrb[0].mxu0
  %v873 = vadd.f32 %v563, %v872
  %v874 = vpop.f32.mrb[0].mxu0
  %875 = vmatprep.mubr.f32.mxu0 %v193
  %876 = vmatmul.mubr.f32.gmra.mrb[0].mxu0 %v192
  %v877 = vpop.f32.mrb[0].mxu0
  %v878 = vadd.f32 %v568, %v877
  %v879 = vpop.f32.mrb[0].mxu0
  %880 = vmatprep.mubr.f32.mxu0 %v197
  %881 = vmatmul.mubr.f32.gmra.mrb[0].mxu0 %v196
  %v882 = vpop.f32.mrb[0].mxu0
  %v883 = vadd.f32 %v573, %v882
  %v884 = vpop.f32.mrb[0].mxu0
  %885 = vmatprep.mubr.f32.mxu0 %v201
  %886 = vmatmul.mubr.f32.gmra.mrb[0].mxu0 %v200
  %v887 = vpop.f32.mrb[0].mxu0
  %v888 = vadd.f32 %v578, %v887
  %v889 = vpop.f32.mrb[0].mxu0
  %890 = vmatprep.mubr.f32.mxu0 %v205
  %891 = vmatmul.mubr.f32.gmra.mrb[0].mxu0 %v204
  %v892 = vpop.f32.mrb[0].mxu0
  %v893 = vadd.f32 %v583, %v892
  %v894 = vpop.f32.mrb[0].mxu0
  %895 = vmatprep.mubr.f32.mxu0 %v209
  %896 = vmatmul.mubr.f32.gmra.mrb[0].mxu0 %v208
  %v897 = vpop.f32.mrb[0].mxu0
  %v898 = vadd.f32 %v588, %v897
  %v899 = vpop.f32.mrb[0].mxu0
  %900 = vdwg.mxu0
  %v901 = vmax.f32 %v658, 0.0
  %v902 = vmax.f32 %v663, 0.0
  %v903 = vmax.f32 %v668, 0.0
  %v904 = vmax.f32 %v673, 0.0
  %v905 = vmax.f32 %v678, 0.0
  %v906 = vmax.f32 %v683, 0.0
  %v907 = vmax.f32 %v688, 0.0
  %v908 = vmax.f32 %v693, 0.0
  %v909 = vmax.f32 %v698, 0.0
  %v910 = vmax.f32 %v703, 0.0
  %v911 = vmax.f32 %v708, 0.0
  %v912 = vmax.f32 %v713, 0.0
  %v913 = vmax.f32 %v718, 0.0
  %v914 = vmax.f32 %v723, 0.0
  %v915 = vmax.f32 %v728, 0.0
  %v916 = vmax.f32 %v733, 0.0
  %v917 = vmax.f32 %v738, 0.0
  %v918 = vmax.f32 %v743, 0.0
  %v919 = vmax.f32 %v748, 0.0
  %v920 = vmax.f32 %v753, 0.0
  %v921 = vmax.f32 %v758, 0.0
  %v922 = vmax.f32 %v763, 0.0
  %v923 = vmax.f32 %v768, 0.0
  %v924 = vmax.f32 %v773, 0.0
  %v925 = vmax.f32 %v778, 0.0
  %v926 = vmax.f32 %v783, 0.0
  %v927 = vmax.f32 %v788, 0.0
  %v928 = vmax.f32 %v793, 0.0
  %v929 = vmax.f32 %v798, 0.0
  %v930 = vmax.f32 %v803, 0.0
  %v931 = vmax.f32 %v808, 0.0
  %v932 = vmax.f32 %v813, 0.0
  %v933 = vmax.f32 %v818, 0.0
  %v934 = vmax.f32 %v823, 0.0
  %v935 = vmax.f32 %v828, 0.0
  %v936 = vmax.f32 %v833, 0.0
  %v937 = vmax.f32 %v838, 0.0
  %v938 = vmax.f32 %v843, 0.0
  %v939 = vmax.f32 %v848, 0.0
  %v940 = vmax.f32 %v853, 0.0
  %v941 = vmax.f32 %v858, 0.0
  %v942 = vmax.f32 %v863, 0.0
  %v943 = vmax.f32 %v868, 0.0
  %v944 = vmax.f32 %v873, 0.0
  %v945 = vmax.f32 %v878, 0.0
  %v946 = vmax.f32 %v883, 0.0
  %v947 = vmax.f32 %v888, 0.0
  %v948 = vmax.f32 %v893, 0.0
  %v949 = vmax.f32 %v898, 0.0
  %vm950 = vcmask 523264
  %951 = vst.msk [vmem:[%s3] sm:$0xff] %vm950, %v901
  %952 = vst.msk [vmem:[%s3 + $0x8] sm:$0xff] %vm950, %v902
  %953 = vst.msk [vmem:[%s3 + $0x10] sm:$0xff] %vm950, %v903
  %954 = vst.msk [vmem:[%s3 + $0x18] sm:$0xff] %vm950, %v904
  %955 = vst.msk [vmem:[%s3 + $0x20] sm:$0xff] %vm950, %v905
  %956 = vst.msk [vmem:[%s3 + $0x28] sm:$0xff] %vm950, %v906
  %957 = vst.msk [vmem:[%s3 + $0x30] sm:$0xff] %vm950, %v907
  %958 = vst.msk [vmem:[%s3 + $0x38] sm:$0xff] %vm950, %v908
  %959 = vst.msk [vmem:[%s3 + $0x40] sm:$0xff] %vm950, %v909
  %960 = vst.msk [vmem:[%s3 + $0x48] sm:$0xff] %vm950, %v910
  %961 = vst.msk [vmem:[%s3 + $0x50] sm:$0xff] %vm950, %v911
  %962 = vst.msk [vmem:[%s3 + $0x58] sm:$0xff] %vm950, %v912
  %963 = vst.msk [vmem:[%s3 + $0x60] sm:$0xff] %vm950, %v913
  %964 = vst.msk [vmem:[%s3 + $0x68] sm:$0xff] %vm950, %v914
  %965 = vst.msk [vmem:[%s3 + $0x70] sm:$0xff] %vm950, %v915
  %966 = vst.msk [vmem:[%s3 + $0x78] sm:$0xff] %vm950, %v916
  %967 = vst.msk [vmem:[%s3 + $0x80] sm:$0xff] %vm950, %v917
  %968 = vst.msk [vmem:[%s3 + $0x88] sm:$0xff] %vm950, %v918
  %969 = vst.msk [vmem:[%s3 + $0x90] sm:$0xff] %vm950, %v919
  %970 = vst.msk [vmem:[%s3 + $0x98] sm:$0xff] %vm950, %v920
  %971 = vst.msk [vmem:[%s3 + $0xa0] sm:$0xff] %vm950, %v921
  %972 = vst.msk [vmem:[%s3 + $0xa8] sm:$0xff] %vm950, %v922
  %973 = vst.msk [vmem:[%s3 + $0xb0] sm:$0xff] %vm950, %v923
  %974 = vst.msk [vmem:[%s3 + $0xb8] sm:$0xff] %vm950, %v924
  %975 = vst.msk [vmem:[%s3 + $0xc0] sm:$0xff] %vm950, %v925
  %976 = vst.msk [vmem:[%s3 + $0xc8] sm:$0xff] %vm950, %v926
  %977 = vst.msk [vmem:[%s3 + $0xd0] sm:$0xff] %vm950, %v927
  %978 = vst.msk [vmem:[%s3 + $0xd8] sm:$0xff] %vm950, %v928
  %979 = vst.msk [vmem:[%s3 + $0xe0] sm:$0xff] %vm950, %v929
  %980 = vst.msk [vmem:[%s3 + $0xe8] sm:$0xff] %vm950, %v930
  %981 = vst.msk [vmem:[%s3 + $0xf0] sm:$0xff] %vm950, %v931
  %982 = vst.msk [vmem:[%s3 + $0xf8] sm:$0xff] %vm950, %v932
  %983 = vst.msk [vmem:[%s3 + $0x100] sm:$0xff] %vm950, %v933
  %984 = vst.msk [vmem:[%s3 + $0x108] sm:$0xff] %vm950, %v934
  %985 = vst.msk [vmem:[%s3 + $0x110] sm:$0xff] %vm950, %v935
  %986 = vst.msk [vmem:[%s3 + $0x118] sm:$0xff] %vm950, %v936
  %987 = vst.msk [vmem:[%s3 + $0x120] sm:$0xff] %vm950, %v937
  %988 = vst.msk [vmem:[%s3 + $0x128] sm:$0xff] %vm950, %v938
  %989 = vst.msk [vmem:[%s3 + $0x130] sm:$0xff] %vm950, %v939
  %990 = vst.msk [vmem:[%s3 + $0x138] sm:$0xff] %vm950, %v940
  %991 = vst.msk [vmem:[%s3 + $0x140] sm:$0xff] %vm950, %v941
  %992 = vst.msk [vmem:[%s3 + $0x148] sm:$0xff] %vm950, %v942
  %993 = vst.msk [vmem:[%s3 + $0x150] sm:$0xff] %vm950, %v943
  %994 = vst.msk [vmem:[%s3 + $0x158] sm:$0xff] %vm950, %v944
  %995 = vst.msk [vmem:[%s3 + $0x160] sm:$0xff] %vm950, %v945
  %996 = vst.msk [vmem:[%s3 + $0x168] sm:$0xff] %vm950, %v946
  %997 = vst.msk [vmem:[%s3 + $0x170] sm:$0xff] %vm950, %v947
  %998 = vst.msk [vmem:[%s3 + $0x178] sm:$0xff] %vm950, %v948
  %999 = vst.msk [vmem:[%s3 + $0x180] sm:$0xff] %vm950, %v949
  // Predicated region
  $region14: #{encoder_forward.5} parent=0 // pred_check
    _
  $region15: #{encoder_forward.5} parent=0 // pred_check_branch
    %1001 = sbr.rel (0) target = $region17
  $region16: #{encoder_forward.5} parent=0 // pred_region
    _
  $region17: #{encoder_forward.5} parent=0 // pred_fallthru
    _
  // Predicated region
  $region18: #{encoder_forward.5} parent=0 // pred_check
    _
  $region19: #{encoder_forward.5} parent=0 // pred_check_branch
    %1003 = sbr.rel (0) target = $region21
  $region20: #{encoder_forward.5} parent=0 // pred_region
    _
  $region21: #{encoder_forward.5} parent=0 // pred_fallthru
    _

// kernel: encoder_forward.6
$region0: #{encoder_forward.6}
  #allocation0 [shape = 'u32[]', space=smem, size = 0x4, offset = 0x4, fixed_abs, tag = 'smem constant byte address 0x4 - core index']
  #allocation1 [shape = 'u32[144,128]{1,0:T(1,128)}', space=vmem, size = 0x12000, scoped, tag = 'internal scratch']
  %s0 = inlined_call_operand.vmem [shape: f32[72,1024], index: 0, kind: input, shape index: {}]
  %s1 = inlined_call_operand.vmem [shape: f32[1024,128], index: 1, kind: input, shape index: {}]
  %s2 = inlined_call_operand.vmem [shape: f32[1,128], index: 2, kind: input, shape index: {}]
  %s3 = inlined_call_operand.vmem [shape: f32[72,128], index: 3, kind: output, shape index: {}]
  %s4 = sld [smem:[#allocation0]]
  $region22: #{encoder_forward.6} parent=0
    _
  %s6 = ssub.s32 1, %s4
  %s7 = scalar_select 0, %s6, %s4
  // Predicated region
  $region2: #{encoder_forward.6} parent=0 // pred_check
    _
  $region3: #{encoder_forward.6} parent=0 // pred_check_branch
    %9 = sbr.rel (0) target = $region5
  $region4: #{encoder_forward.6} parent=0 // pred_region
    _
  $region5: #{encoder_forward.6} parent=0 // pred_fallthru
    _
  // Predicated region
  $region6: #{encoder_forward.6} parent=0 // pred_check
    _
  $region7: #{encoder_forward.6} parent=0 // pred_check_branch
    %11 = sbr.rel (0) target = $region9
  $region8: #{encoder_forward.6} parent=0 // pred_region
    _
  $region9: #{encoder_forward.6} parent=0 // pred_fallthru
    _
  // Predicated region
  $region10: #{encoder_forward.6} parent=0 // pred_check
    _
  $region11: #{encoder_forward.6} parent=0 // pred_check_branch
    %13 = sbr.rel (0) target = $region13
  $region12: #{encoder_forward.6} parent=0 // pred_region
    _
  $region13: #{encoder_forward.6} parent=0 // pred_fallthru
    _
  %v14 = vld [vmem:[%s0] sm:$0xff]
  %v15 = vld [vmem:[%s0 + $0x8] sm:$0xff]
  %v16 = vld [vmem:[%s0 + $0x10] sm:$0xff]
  %v17 = vld [vmem:[%s0 + $0x18] sm:$0xff]
  %v18 = vld [vmem:[%s0 + $0x20] sm:$0xff]
  %v19 = vld [vmem:[%s0 + $0x28] sm:$0xff]
  %v20 = vld [vmem:[%s0 + $0x30] sm:$0xff]
  %v21 = vld [vmem:[%s0 + $0x38] sm:$0xff]
  %v22 = vld [vmem:[%s0 + $0x40] sm:$0xff]
  %v23 = vld [vmem:[%s0 + $0x48] sm:$0xff]
  %v24 = vld [vmem:[%s0 + $0x50] sm:$0xff]
  %v25 = vld [vmem:[%s0 + $0x58] sm:$0xff]
  %v26 = vld [vmem:[%s0 + $0x60] sm:$0xff]
  %v27 = vld [vmem:[%s0 + $0x68] sm:$0xff]
  %v28 = vld [vmem:[%s0 + $0x70] sm:$0xff]
  %v29 = vld [vmem:[%s0 + $0x78] sm:$0xff]
  %v30 = vld [vmem:[%s0 + $0x80] sm:$0xff]
  %v31 = vld [vmem:[%s0 + $0x88] sm:$0xff]
  %v32 = vld [vmem:[%s0 + $0x90] sm:$0xff]
  %v33 = vld [vmem:[%s0 + $0x98] sm:$0xff]
  %v34 = vld [vmem:[%s0 + $0xa0] sm:$0xff]
  %v35 = vld [vmem:[%s0 + $0xa8] sm:$0xff]
  %v36 = vld [vmem:[%s0 + $0xb0] sm:$0xff]
  %v37 = vld [vmem:[%s0 + $0xb8] sm:$0xff]
  %v38 = vld [vmem:[%s0 + $0xc0] sm:$0xff]
  %v39 = vld [vmem:[%s0 + $0xc8] sm:$0xff]
  %v40 = vld [vmem:[%s0 + $0xd0] sm:$0xff]
  %v41 = vld [vmem:[%s0 + $0xd8] sm:$0xff]
  %v42 = vld [vmem:[%s0 + $0xe0] sm:$0xff]
  %v43 = vld [vmem:[%s0 + $0xe8] sm:$0xff]
  %v44 = vld [vmem:[%s0 + $0xf0] sm:$0xff]
  %v45 = vld [vmem:[%s0 + $0xf8] sm:$0xff]
  %v46 = vld [vmem:[%s0 + $0x100] sm:$0xff]
  %v47 = vld [vmem:[%s0 + $0x108] sm:$0xff]
  %v48 = vld [vmem:[%s0 + $0x110] sm:$0xff]
  %v49 = vld [vmem:[%s0 + $0x118] sm:$0xff]
  %v50 = vld [vmem:[%s0 + $0x120] sm:$0xff]
  %v51 = vld [vmem:[%s0 + $0x128] sm:$0xff]
  %v52 = vld [vmem:[%s0 + $0x130] sm:$0xff]
  %v53 = vld [vmem:[%s0 + $0x138] sm:$0xff]
  %v54 = vld [vmem:[%s0 + $0x140] sm:$0xff]
  %v55 = vld [vmem:[%s0 + $0x148] sm:$0xff]
  %v56 = vld [vmem:[%s0 + $0x150] sm:$0xff]
  %v57 = vld [vmem:[%s0 + $0x158] sm:$0xff]
  %v58 = vld [vmem:[%s0 + $0x160] sm:$0xff]
  %v59 = vld [vmem:[%s0 + $0x168] sm:$0xff]
  %v60 = vld [vmem:[%s0 + $0x170] sm:$0xff]
  %v61 = vld [vmem:[%s0 + $0x178] sm:$0xff]
  %v62 = vld [vmem:[%s0 + $0x180] sm:$0xff]
  %v63 = vld [vmem:[%s0 + $0x188] sm:$0xff]
  %v64 = vld [vmem:[%s0 + $0x190] sm:$0xff]
  %v65 = vld [vmem:[%s0 + $0x198] sm:$0xff]
  %v66 = vld [vmem:[%s0 + $0x1a0] sm:$0xff]
  %v67 = vld [vmem:[%s0 + $0x1a8] sm:$0xff]
  %v68 = vld [vmem:[%s0 + $0x1b0] sm:$0xff]
  %v69 = vld [vmem:[%s0 + $0x1b8] sm:$0xff]
  %v70 = vld [vmem:[%s0 + $0x1c0] sm:$0xff]
  %v71 = vld [vmem:[%s0 + $0x1c8] sm:$0xff]
  %v72 = vld [vmem:[%s0 + $0x1d0] sm:$0xff]
  %v73 = vld [vmem:[%s0 + $0x1d8] sm:$0xff]
  %v74 = vld [vmem:[%s0 + $0x1e0] sm:$0xff]
  %v75 = vld [vmem:[%s0 + $0x1e8] sm:$0xff]
  %v76 = vld [vmem:[%s0 + $0x1f0] sm:$0xff]
  %v77 = vld [vmem:[%s0 + $0x1f8] sm:$0xff]
  %v78 = vld [vmem:[%s0 + $0x200] sm:$0xff]
  %v79 = vld [vmem:[%s0 + $0x208] sm:$0xff]
  %v80 = vld [vmem:[%s0 + $0x210] sm:$0xff]
  %v81 = vld [vmem:[%s0 + $0x218] sm:$0xff]
  %v82 = vld [vmem:[%s0 + $0x220] sm:$0xff]
  %v83 = vld [vmem:[%s0 + $0x228] sm:$0xff]
  %v84 = vld [vmem:[%s0 + $0x230] sm:$0xff]
  %v85 = vld [vmem:[%s0 + $0x238] sm:$0xff]
  %v86 = vld [vmem:[%s1] sm:$0xff]
  %v87 = vld [vmem:[%s1 + $0x8] sm:$0xff]
  %v88 = vld [vmem:[%s1 + $0x10] sm:$0xff]
  %v89 = vld [vmem:[%s1 + $0x18] sm:$0xff]
  %v90 = vld [vmem:[%s1 + $0x20] sm:$0xff]
  %v91 = vld [vmem:[%s1 + $0x28] sm:$0xff]
  %v92 = vld [vmem:[%s1 + $0x30] sm:$0xff]
  %v93 = vld [vmem:[%s1 + $0x38] sm:$0xff]
  %v94 = vld [vmem:[%s1 + $0x40] sm:$0xff]
  %v95 = vld [vmem:[%s1 + $0x48] sm:$0xff]
  %v96 = vld [vmem:[%s1 + $0x50] sm:$0xff]
  %v97 = vld [vmem:[%s1 + $0x58] sm:$0xff]
  %v98 = vld [vmem:[%s1 + $0x60] sm:$0xff]
  %v99 = vld [vmem:[%s1 + $0x68] sm:$0xff]
  %v100 = vld [vmem:[%s1 + $0x70] sm:$0xff]
  %v101 = vld [vmem:[%s1 + $0x78] sm:$0xff]
  %v102 = vld [vmem:[%s1 + $0x80] sm:$0xff]
  %v103 = vld [vmem:[%s1 + $0x88] sm:$0xff]
  %v104 = vld [vmem:[%s1 + $0x90] sm:$0xff]
  %v105 = vld [vmem:[%s1 + $0x98] sm:$0xff]
  %v106 = vld [vmem:[%s1 + $0xa0] sm:$0xff]
  %v107 = vld [vmem:[%s1 + $0xa8] sm:$0xff]
  %v108 = vld [vmem:[%s1 + $0xb0] sm:$0xff]
  %v109 = vld [vmem:[%s1 + $0xb8] sm:$0xff]
  %v110 = vld [vmem:[%s1 + $0xc0] sm:$0xff]
  %v111 = vld [vmem:[%s1 + $0xc8] sm:$0xff]
  %v112 = vld [vmem:[%s1 + $0xd0] sm:$0xff]
  %v113 = vld [vmem:[%s1 + $0xd8] sm:$0xff]
  %v114 = vld [vmem:[%s1 + $0xe0] sm:$0xff]
  %v115 = vld [vmem:[%s1 + $0xe8] sm:$0xff]
  %v116 = vld [vmem:[%s1 + $0xf0] sm:$0xff]
  %v117 = vld [vmem:[%s1 + $0xf8] sm:$0xff]
  %v118 = vld [vmem:[%s1 + $0x100] sm:$0xff]
  %v119 = vld [vmem:[%s1 + $0x108] sm:$0xff]
  %v120 = vld [vmem:[%s1 + $0x110] sm:$0xff]
  %v121 = vld [vmem:[%s1 + $0x118] sm:$0xff]
  %v122 = vld [vmem:[%s1 + $0x120] sm:$0xff]
  %v123 = vld [vmem:[%s1 + $0x128] sm:$0xff]
  %v124 = vld [vmem:[%s1 + $0x130] sm:$0xff]
  %v125 = vld [vmem:[%s1 + $0x138] sm:$0xff]
  %v126 = vld [vmem:[%s1 + $0x140] sm:$0xff]
  %v127 = vld [vmem:[%s1 + $0x148] sm:$0xff]
  %v128 = vld [vmem:[%s1 + $0x150] sm:$0xff]
  %v129 = vld [vmem:[%s1 + $0x158] sm:$0xff]
  %v130 = vld [vmem:[%s1 + $0x160] sm:$0xff]
  %v131 = vld [vmem:[%s1 + $0x168] sm:$0xff]
  %v132 = vld [vmem:[%s1 + $0x170] sm:$0xff]
  %v133 = vld [vmem:[%s1 + $0x178] sm:$0xff]
  %v134 = vld [vmem:[%s1 + $0x180] sm:$0xff]
  %v135 = vld [vmem:[%s1 + $0x188] sm:$0xff]
  %v136 = vld [vmem:[%s1 + $0x190] sm:$0xff]
  %v137 = vld [vmem:[%s1 + $0x198] sm:$0xff]
  %v138 = vld [vmem:[%s1 + $0x1a0] sm:$0xff]
  %v139 = vld [vmem:[%s1 + $0x1a8] sm:$0xff]
  %v140 = vld [vmem:[%s1 + $0x1b0] sm:$0xff]
  %v141 = vld [vmem:[%s1 + $0x1b8] sm:$0xff]
  %v142 = vld [vmem:[%s1 + $0x1c0] sm:$0xff]
  %v143 = vld [vmem:[%s1 + $0x1c8] sm:$0xff]
  %v144 = vld [vmem:[%s1 + $0x1d0] sm:$0xff]
  %v145 = vld [vmem:[%s1 + $0x1d8] sm:$0xff]
  %v146 = vld [vmem:[%s1 + $0x1e0] sm:$0xff]
  %v147 = vld [vmem:[%s1 + $0x1e8] sm:$0xff]
  %v148 = vld [vmem:[%s1 + $0x1f0] sm:$0xff]
  %v149 = vld [vmem:[%s1 + $0x1f8] sm:$0xff]
  %v150 = vld [vmem:[%s1 + $0x200] sm:$0xff]
  %v151 = vld [vmem:[%s1 + $0x208] sm:$0xff]
  %v152 = vld [vmem:[%s1 + $0x210] sm:$0xff]
  %v153 = vld [vmem:[%s1 + $0x218] sm:$0xff]
  %v154 = vld [vmem:[%s1 + $0x220] sm:$0xff]
  %v155 = vld [vmem:[%s1 + $0x228] sm:$0xff]
  %v156 = vld [vmem:[%s1 + $0x230] sm:$0xff]
  %v157 = vld [vmem:[%s1 + $0x238] sm:$0xff]
  %v158 = vld [vmem:[%s1 + $0x240] sm:$0xff]
  %v159 = vld [vmem:[%s1 + $0x248] sm:$0xff]
  %v160 = vld [vmem:[%s1 + $0x250] sm:$0xff]
  %v161 = vld [vmem:[%s1 + $0x258] sm:$0xff]
  %v162 = vld [vmem:[%s1 + $0x260] sm:$0xff]
  %v163 = vld [vmem:[%s1 + $0x268] sm:$0xff]
  %v164 = vld [vmem:[%s1 + $0x270] sm:$0xff]
  %v165 = vld [vmem:[%s1 + $0x278] sm:$0xff]
  %v166 = vld [vmem:[%s1 + $0x280] sm:$0xff]
  %v167 = vld [vmem:[%s1 + $0x288] sm:$0xff]
  %v168 = vld [vmem:[%s1 + $0x290] sm:$0xff]
  %v169 = vld [vmem:[%s1 + $0x298] sm:$0xff]
  %v170 = vld [vmem:[%s1 + $0x2a0] sm:$0xff]
  %v171 = vld [vmem:[%s1 + $0x2a8] sm:$0xff]
  %v172 = vld [vmem:[%s1 + $0x2b0] sm:$0xff]
  %v173 = vld [vmem:[%s1 + $0x2b8] sm:$0xff]
  %v174 = vld [vmem:[%s1 + $0x2c0] sm:$0xff]
  %v175 = vld [vmem:[%s1 + $0x2c8] sm:$0xff]
  %v176 = vld [vmem:[%s1 + $0x2d0] sm:$0xff]
  %v177 = vld [vmem:[%s1 + $0x2d8] sm:$0xff]
  %v178 = vld [vmem:[%s1 + $0x2e0] sm:$0xff]
  %v179 = vld [vmem:[%s1 + $0x2e8] sm:$0xff]
  %v180 = vld [vmem:[%s1 + $0x2f0] sm:$0xff]
  %v181 = vld [vmem:[%s1 + $0x2f8] sm:$0xff]
  %v182 = vld [vmem:[%s1 + $0x300] sm:$0xff]
  %v183 = vld [vmem:[%s1 + $0x308] sm:$0xff]
  %v184 = vld [vmem:[%s1 + $0x310] sm:$0xff]
  %v185 = vld [vmem:[%s1 + $0x318] sm:$0xff]
  %v186 = vld [vmem:[%s1 + $0x320] sm:$0xff]
  %v187 = vld [vmem:[%s1 + $0x328] sm:$0xff]
  %v188 = vld [vmem:[%s1 + $0x330] sm:$0xff]
  %v189 = vld [vmem:[%s1 + $0x338] sm:$0xff]
  %v190 = vld [vmem:[%s1 + $0x340] sm:$0xff]
  %v191 = vld [vmem:[%s1 + $0x348] sm:$0xff]
  %v192 = vld [vmem:[%s1 + $0x350] sm:$0xff]
  %v193 = vld [vmem:[%s1 + $0x358] sm:$0xff]
  %v194 = vld [vmem:[%s1 + $0x360] sm:$0xff]
  %v195 = vld [vmem:[%s1 + $0x368] sm:$0xff]
  %v196 = vld [vmem:[%s1 + $0x370] sm:$0xff]
  %v197 = vld [vmem:[%s1 + $0x378] sm:$0xff]
  %v198 = vld [vmem:[%s1 + $0x380] sm:$0xff]
  %v199 = vld [vmem:[%s1 + $0x388] sm:$0xff]
  %v200 = vld [vmem:[%s1 + $0x390] sm:$0xff]
  %v201 = vld [vmem:[%s1 + $0x398] sm:$0xff]
  %v202 = vld [vmem:[%s1 + $0x3a0] sm:$0xff]
  %v203 = vld [vmem:[%s1 + $0x3a8] sm:$0xff]
  %v204 = vld [vmem:[%s1 + $0x3b0] sm:$0xff]
  %v205 = vld [vmem:[%s1 + $0x3b8] sm:$0xff]
  %v206 = vld [vmem:[%s1 + $0x3c0] sm:$0xff]
  %v207 = vld [vmem:[%s1 + $0x3c8] sm:$0xff]
  %v208 = vld [vmem:[%s1 + $0x3d0] sm:$0xff]
  %v209 = vld [vmem:[%s1 + $0x3d8] sm:$0xff]
  %v210 = vld [vmem:[%s1 + $0x3e0] sm:$0xff]
  %v211 = vld [vmem:[%s1 + $0x3e8] sm:$0xff]
  %v212 = vld [vmem:[%s1 + $0x3f0] sm:$0xff]
  %v213 = vld [vmem:[%s1 + $0x3f8] sm:$0xff]
  %v214 = vld [vmem:[%s2] sm:$0x1]
  %v216 = vlaneseq
  %v217 = vshrl.u32 %v216, 7
  %v218 = vsub.s32 0, %v217
  %v219 = vrot.slane %v214, %v218
  %221 = vmatprep.subr.mxu0 0.0
  %222 = vmatpush1.msra.mxu0 %v86
  %223 = vmatprep.subr.mxu0 0.0
  %224 = vmatpush1.msra.mxu0 %v87
  %225 = vmatprep.subr.mxu0 0.0
  %226 = vmatpush1.msra.mxu0 %v88
  %227 = vmatprep.subr.mxu0 0.0
  %228 = vmatpush1.msra.mxu0 %v89
  %229 = vmatprep.subr.mxu0 0.0
  %230 = vmatpush1.msra.mxu0 %v90
  %231 = vmatprep.subr.mxu0 0.0
  %232 = vmatpush1.msra.mxu0 %v91
  %233 = vmatprep.subr.mxu0 0.0
  %234 = vmatpush1.msra.mxu0 %v92
  %235 = vmatprep.subr.mxu0 0.0
  %236 = vmatpush1.msra.mxu0 %v93
  %237 = vmatprep.subr.mxu0 0.0
  %238 = vmatpush1.msra.mxu0 %v94
  %239 = vmatprep.subr.mxu0 0.0
  %240 = vmatpush1.msra.mxu0 %v95
  %241 = vmatprep.subr.mxu0 0.0
  %242 = vmatpush1.msra.mxu0 %v96
  %243 = vmatprep.subr.mxu0 0.0
  %244 = vmatpush1.msra.mxu0 %v97
  %245 = vmatprep.subr.mxu0 0.0
  %246 = vmatpush1.msra.mxu0 %v98
  %247 = vmatprep.subr.mxu0 0.0
  %248 = vmatpush1.msra.mxu0 %v99
  %249 = vmatprep.subr.mxu0 0.0
  %250 = vmatpush1.msra.mxu0 %v100
  %251 = vmatprep.subr.mxu0 0.0
  %252 = vmatpush1.msra.mxu0 %v101
  %253 = vmatprep.subr.mxu0 0.0
  %254 = vmatpush1.msra.mxu0 %v102
  %255 = vmatprep.subr.mxu0 0.0
  %256 = vmatpush1.msra.mxu0 %v103
  %257 = vmatprep.subr.mxu0 0.0
  %258 = vmatpush1.msra.mxu0 %v104
  %259 = vmatprep.subr.mxu0 0.0
  %260 = vmatpush1.msra.mxu0 %v105
  %261 = vmatprep.subr.mxu0 0.0
  %262 = vmatpush1.msra.mxu0 %v106
  %263 = vmatprep.subr.mxu0 0.0
  %264 = vmatpush1.msra.mxu0 %v107
  %265 = vmatprep.subr.mxu0 0.0
  %266 = vmatpush1.msra.mxu0 %v108
  %267 = vmatprep.subr.mxu0 0.0
  %268 = vmatpush1.msra.mxu0 %v109
  %269 = vmatprep.subr.mxu0 0.0
  %270 = vmatpush1.msra.mxu0 %v110
  %271 = vmatprep.subr.mxu0 0.0
  %272 = vmatpush1.msra.mxu0 %v111
  %273 = vmatprep.subr.mxu0 0.0
  %274 = vmatpush1.msra.mxu0 %v112
  %275 = vmatprep.subr.mxu0 0.0
  %276 = vmatpush1.msra.mxu0 %v113
  %277 = vmatprep.subr.mxu0 0.0
  %278 = vmatpush1.msra.mxu0 %v114
  %279 = vmatprep.subr.mxu0 0.0
  %280 = vmatpush1.msra.mxu0 %v115
  %281 = vmatprep.subr.mxu0 0.0
  %282 = vmatpush1.msra.mxu0 %v116
  %283 = vmatprep.subr.mxu0 0.0
  %284 = vmatpush1.msra.mxu0 %v117
  %285 = vmatprep.mubr.f32.mxu0 %v15
  %286 = vmatmul.mubr.f32.gmra.mrb[0].mxu0 %v14
  %v287 = vpop.f32.mrb[0].mxu0
  %v288 = vadd.f32 %v219, %v287
  %v289 = vpop.f32.mrb[0].mxu0
  %290 = vmatprep.mubr.f32.mxu0 %v23
  %291 = vmatmul.mubr.f32.gmra.mrb[0].mxu0 %v22
  %v292 = vpop.f32.mrb[0].mxu0
  %v293 = vadd.f32 %v219, %v292
  %v294 = vpop.f32.mrb[0].mxu0
  %295 = vmatprep.mubr.f32.mxu0 %v31
  %296 = vmatmul.mubr.f32.gmra.mrb[0].mxu0 %v30
  %v297 = vpop.f32.mrb[0].mxu0
  %v298 = vadd.f32 %v219, %v297
  %v299 = vpop.f32.mrb[0].mxu0
  %300 = vmatprep.mubr.f32.mxu0 %v39
  %301 = vmatmul.mubr.f32.gmra.mrb[0].mxu0 %v38
  %v302 = vpop.f32.mrb[0].mxu0
  %v303 = vadd.f32 %v219, %v302
  %v304 = vpop.f32.mrb[0].mxu0
  %305 = vmatprep.mubr.f32.mxu0 %v47
  %306 = vmatmul.mubr.f32.gmra.mrb[0].mxu0 %v46
  %v307 = vpop.f32.mrb[0].mxu0
  %v308 = vadd.f32 %v219, %v307
  %v309 = vpop.f32.mrb[0].mxu0
  %310 = vmatprep.mubr.f32.mxu0 %v55
  %311 = vmatmul.mubr.f32.gmra.mrb[0].mxu0 %v54
  %v312 = vpop.f32.mrb[0].mxu0
  %v313 = vadd.f32 %v219, %v312
  %v314 = vpop.f32.mrb[0].mxu0
  %315 = vmatprep.mubr.f32.mxu0 %v63
  %316 = vmatmul.mubr.f32.gmra.mrb[0].mxu0 %v62
  %v317 = vpop.f32.mrb[0].mxu0
  %v318 = vadd.f32 %v219, %v317
  %v319 = vpop.f32.mrb[0].mxu0
  %320 = vmatprep.mubr.f32.mxu0 %v71
  %321 = vmatmul.mubr.f32.gmra.mrb[0].mxu0 %v70
  %v322 = vpop.f32.mrb[0].mxu0
  %v323 = vadd.f32 %v219, %v322
  %v324 = vpop.f32.mrb[0].mxu0
  %325 = vmatprep.mubr.f32.mxu0 %v79
  %326 = vmatmul.mubr.f32.gmra.mrb[0].mxu0 %v78
  %v327 = vpop.f32.mrb[0].mxu0
  %v328 = vadd.f32 %v219, %v327
  %v329 = vpop.f32.mrb[0].mxu0
  %330 = vdwg.mxu0
  %331 = vmatprep.subr.mxu0 0.0
  %332 = vmatpush1.msra.mxu0 %v118
  %333 = vmatprep.subr.mxu0 0.0
  %334 = vmatpush1.msra.mxu0 %v119
  %335 = vmatprep.subr.mxu0 0.0
  %336 = vmatpush1.msra.mxu0 %v120
  %337 = vmatprep.subr.mxu0 0.0
  %338 = vmatpush1.msra.mxu0 %v121
  %339 = vmatprep.subr.mxu0 0.0
  %340 = vmatpush1.msra.mxu0 %v122
  %341 = vmatprep.subr.mxu0 0.0
  %342 = vmatpush1.msra.mxu0 %v123
  %343 = vmatprep.subr.mxu0 0.0
  %344 = vmatpush1.msra.mxu0 %v124
  %345 = vmatprep.subr.mxu0 0.0
  %346 = vmatpush1.msra.mxu0 %v125
  %347 = vmatprep.subr.mxu0 0.0
  %348 = vmatpush1.msra.mxu0 %v126
  %349 = vmatprep.subr.mxu0 0.0
  %350 = vmatpush1.msra.mxu0 %v127
  %351 = vmatprep.subr.mxu0 0.0
  %352 = vmatpush1.msra.mxu0 %v128
  %353 = vmatprep.subr.mxu0 0.0
  %354 = vmatpush1.msra.mxu0 %v129
  %355 = vmatprep.subr.mxu0 0.0
  %356 = vmatpush1.msra.mxu0 %v130
  %357 = vmatprep.subr.mxu0 0.0
  %358 = vmatpush1.msra.mxu0 %v131
  %359 = vmatprep.subr.mxu0 0.0
  %360 = vmatpush1.msra.mxu0 %v132
  %361 = vmatprep.subr.mxu0 0.0
  %362 = vmatpush1.msra.mxu0 %v133
  %363 = vmatprep.subr.mxu0 0.0
  %364 = vmatpush1.msra.mxu0 %v134
  %365 = vmatprep.subr.mxu0 0.0
  %366 = vmatpush1.msra.mxu0 %v135
  %367 = vmatprep.subr.mxu0 0.0
  %368 = vmatpush1.msra.mxu0 %v136
  %369 = vmatprep.subr.mxu0 0.0
  %370 = vmatpush1.msra.mxu0 %v137
  %371 = vmatprep.subr.mxu0 0.0
  %372 = vmatpush1.msra.mxu0 %v138
  %373 = vmatprep.subr.mxu0 0.0
  %374 = vmatpush1.msra.mxu0 %v139
  %375 = vmatprep.subr.mxu0 0.0
  %376 = vmatpush1.msra.mxu0 %v140
  %377 = vmatprep.subr.mxu0 0.0
  %378 = vmatpush1.msra.mxu0 %v141
  %379 = vmatprep.subr.mxu0 0.0
  %380 = vmatpush1.msra.mxu0 %v142
  %381 = vmatprep.subr.mxu0 0.0
  %382 = vmatpush1.msra.mxu0 %v143
  %383 = vmatprep.subr.mxu0 0.0
  %384 = vmatpush1.msra.mxu0 %v144
  %385 = vmatprep.subr.mxu0 0.0
  %386 = vmatpush1.msra.mxu0 %v145
  %387 = vmatprep.subr.mxu0 0.0
  %388 = vmatpush1.msra.mxu0 %v146
  %389 = vmatprep.subr.mxu0 0.0
  %390 = vmatpush1.msra.mxu0 %v147
  %391 = vmatprep.subr.mxu0 0.0
  %392 = vmatpush1.msra.mxu0 %v148
  %393 = vmatprep.subr.mxu0 0.0
  %394 = vmatpush1.msra.mxu0 %v149
  %395 = vmatprep.mubr.f32.mxu0 %v17
  %396 = vmatmul.mubr.f32.gmra.mrb[0].mxu0 %v16
  %v397 = vpop.f32.mrb[0].mxu0
  %v398 = vadd.f32 %v288, %v397
  %v399 = vpop.f32.mrb[0].mxu0
  %400 = vmatprep.mubr.f32.mxu0 %v25
  %401 = vmatmul.mubr.f32.gmra.mrb[0].mxu0 %v24
  %v402 = vpop.f32.mrb[0].mxu0
  %v403 = vadd.f32 %v293, %v402
  %v404 = vpop.f32.mrb[0].mxu0
  %405 = vmatprep.mubr.f32.mxu0 %v33
  %406 = vmatmul.mubr.f32.gmra.mrb[0].mxu0 %v32
  %v407 = vpop.f32.mrb[0].mxu0
  %v408 = vadd.f32 %v298, %v407
  %v409 = vpop.f32.mrb[0].mxu0
  %410 = vmatprep.mubr.f32.mxu0 %v41
  %411 = vmatmul.mubr.f32.gmra.mrb[0].mxu0 %v40
  %v412 = vpop.f32.mrb[0].mxu0
  %v413 = vadd.f32 %v303, %v412
  %v414 = vpop.f32.mrb[0].mxu0
  %415 = vmatprep.mubr.f32.mxu0 %v49
  %416 = vmatmul.mubr.f32.gmra.mrb[0].mxu0 %v48
  %v417 = vpop.f32.mrb[0].mxu0
  %v418 = vadd.f32 %v308, %v417
  %v419 = vpop.f32.mrb[0].mxu0
  %420 = vmatprep.mubr.f32.mxu0 %v57
  %421 = vmatmul.mubr.f32.gmra.mrb[0].mxu0 %v56
  %v422 = vpop.f32.mrb[0].mxu0
  %v423 = vadd.f32 %v313, %v422
  %v424 = vpop.f32.mrb[0].mxu0
  %425 = vmatprep.mubr.f32.mxu0 %v65
  %426 = vmatmul.mubr.f32.gmra.mrb[0].mxu0 %v64
  %v427 = vpop.f32.mrb[0].mxu0
  %v428 = vadd.f32 %v318, %v427
  %v429 = vpop.f32.mrb[0].mxu0
  %430 = vmatprep.mubr.f32.mxu0 %v73
  %431 = vmatmul.mubr.f32.gmra.mrb[0].mxu0 %v72
  %v432 = vpop.f32.mrb[0].mxu0
  %v433 = vadd.f32 %v323, %v432
  %v434 = vpop.f32.mrb[0].mxu0
  %435 = vmatprep.mubr.f32.mxu0 %v81
  %436 = vmatmul.mubr.f32.gmra.mrb[0].mxu0 %v80
  %v437 = vpop.f32.mrb[0].mxu0
  %v438 = vadd.f32 %v328, %v437
  %v439 = vpop.f32.mrb[0].mxu0
  %440 = vdwg.mxu0
  %441 = vmatprep.subr.mxu0 0.0
  %442 = vmatpush1.msra.mxu0 %v150
  %443 = vmatprep.subr.mxu0 0.0
  %444 = vmatpush1.msra.mxu0 %v151
  %445 = vmatprep.subr.mxu0 0.0
  %446 = vmatpush1.msra.mxu0 %v152
  %447 = vmatprep.subr.mxu0 0.0
  %448 = vmatpush1.msra.mxu0 %v153
  %449 = vmatprep.subr.mxu0 0.0
  %450 = vmatpush1.msra.mxu0 %v154
  %451 = vmatprep.subr.mxu0 0.0
  %452 = vmatpush1.msra.mxu0 %v155
  %453 = vmatprep.subr.mxu0 0.0
  %454 = vmatpush1.msra.mxu0 %v156
  %455 = vmatprep.subr.mxu0 0.0
  %456 = vmatpush1.msra.mxu0 %v157
  %457 = vmatprep.subr.mxu0 0.0
  %458 = vmatpush1.msra.mxu0 %v158
  %459 = vmatprep.subr.mxu0 0.0
  %460 = vmatpush1.msra.mxu0 %v159
  %461 = vmatprep.subr.mxu0 0.0
  %462 = vmatpush1.msra.mxu0 %v160
  %463 = vmatprep.subr.mxu0 0.0
  %464 = vmatpush1.msra.mxu0 %v161
  %465 = vmatprep.subr.mxu0 0.0
  %466 = vmatpush1.msra.mxu0 %v162
  %467 = vmatprep.subr.mxu0 0.0
  %468 = vmatpush1.msra.mxu0 %v163
  %469 = vmatprep.subr.mxu0 0.0
  %470 = vmatpush1.msra.mxu0 %v164
  %471 = vmatprep.subr.mxu0 0.0
  %472 = vmatpush1.msra.mxu0 %v165
  %473 = vmatprep.subr.mxu0 0.0
  %474 = vmatpush1.msra.mxu0 %v166
  %475 = vmatprep.subr.mxu0 0.0
  %476 = vmatpush1.msra.mxu0 %v167
  %477 = vmatprep.subr.mxu0 0.0
  %478 = vmatpush1.msra.mxu0 %v168
  %479 = vmatprep.subr.mxu0 0.0
  %480 = vmatpush1.msra.mxu0 %v169
  %481 = vmatprep.subr.mxu0 0.0
  %482 = vmatpush1.msra.mxu0 %v170
  %483 = vmatprep.subr.mxu0 0.0
  %484 = vmatpush1.msra.mxu0 %v171
  %485 = vmatprep.subr.mxu0 0.0
  %486 = vmatpush1.msra.mxu0 %v172
  %487 = vmatprep.subr.mxu0 0.0
  %488 = vmatpush1.msra.mxu0 %v173
  %489 = vmatprep.subr.mxu0 0.0
  %490 = vmatpush1.msra.mxu0 %v174
  %491 = vmatprep.subr.mxu0 0.0
  %492 = vmatpush1.msra.mxu0 %v175
  %493 = vmatprep.subr.mxu0 0.0
  %494 = vmatpush1.msra.mxu0 %v176
  %495 = vmatprep.subr.mxu0 0.0
  %496 = vmatpush1.msra.mxu0 %v177
  %497 = vmatprep.subr.mxu0 0.0
  %498 = vmatpush1.msra.mxu0 %v178
  %499 = vmatprep.subr.mxu0 0.0
  %500 = vmatpush1.msra.mxu0 %v179
  %501 = vmatprep.subr.mxu0 0.0
  %502 = vmatpush1.msra.mxu0 %v180
  %503 = vmatprep.subr.mxu0 0.0
  %504 = vmatpush1.msra.mxu0 %v181
  %505 = vmatprep.mubr.f32.mxu0 %v19
  %506 = vmatmul.mubr.f32.gmra.mrb[0].mxu0 %v18
  %v507 = vpop.f32.mrb[0].mxu0
  %v508 = vadd.f32 %v398, %v507
  %v509 = vpop.f32.mrb[0].mxu0
  %510 = vmatprep.mubr.f32.mxu0 %v27
  %511 = vmatmul.mubr.f32.gmra.mrb[0].mxu0 %v26
  %v512 = vpop.f32.mrb[0].mxu0
  %v513 = vadd.f32 %v403, %v512
  %v514 = vpop.f32.mrb[0].mxu0
  %515 = vmatprep.mubr.f32.mxu0 %v35
  %516 = vmatmul.mubr.f32.gmra.mrb[0].mxu0 %v34
  %v517 = vpop.f32.mrb[0].mxu0
  %v518 = vadd.f32 %v408, %v517
  %v519 = vpop.f32.mrb[0].mxu0
  %520 = vmatprep.mubr.f32.mxu0 %v43
  %521 = vmatmul.mubr.f32.gmra.mrb[0].mxu0 %v42
  %v522 = vpop.f32.mrb[0].mxu0
  %v523 = vadd.f32 %v413, %v522
  %v524 = vpop.f32.mrb[0].mxu0
  %525 = vmatprep.mubr.f32.mxu0 %v51
  %526 = vmatmul.mubr.f32.gmra.mrb[0].mxu0 %v50
  %v527 = vpop.f32.mrb[0].mxu0
  %v528 = vadd.f32 %v418, %v527
  %v529 = vpop.f32.mrb[0].mxu0
  %530 = vmatprep.mubr.f32.mxu0 %v59
  %531 = vmatmul.mubr.f32.gmra.mrb[0].mxu0 %v58
  %v532 = vpop.f32.mrb[0].mxu0
  %v533 = vadd.f32 %v423, %v532
  %v534 = vpop.f32.mrb[0].mxu0
  %535 = vmatprep.mubr.f32.mxu0 %v67
  %536 = vmatmul.mubr.f32.gmra.mrb[0].mxu0 %v66
  %v537 = vpop.f32.mrb[0].mxu0
  %v538 = vadd.f32 %v428, %v537
  %v539 = vpop.f32.mrb[0].mxu0
  %540 = vmatprep.mubr.f32.mxu0 %v75
  %541 = vmatmul.mubr.f32.gmra.mrb[0].mxu0 %v74
  %v542 = vpop.f32.mrb[0].mxu0
  %v543 = vadd.f32 %v433, %v542
  %v544 = vpop.f32.mrb[0].mxu0
  %545 = vmatprep.mubr.f32.mxu0 %v83
  %546 = vmatmul.mubr.f32.gmra.mrb[0].mxu0 %v82
  %v547 = vpop.f32.mrb[0].mxu0
  %v548 = vadd.f32 %v438, %v547
  %v549 = vpop.f32.mrb[0].mxu0
  %550 = vdwg.mxu0
  %551 = vmatprep.subr.mxu0 0.0
  %552 = vmatpush1.msra.mxu0 %v182
  %553 = vmatprep.subr.mxu0 0.0
  %554 = vmatpush1.msra.mxu0 %v183
  %555 = vmatprep.subr.mxu0 0.0
  %556 = vmatpush1.msra.mxu0 %v184
  %557 = vmatprep.subr.mxu0 0.0
  %558 = vmatpush1.msra.mxu0 %v185
  %559 = vmatprep.subr.mxu0 0.0
  %560 = vmatpush1.msra.mxu0 %v186
  %561 = vmatprep.subr.mxu0 0.0
  %562 = vmatpush1.msra.mxu0 %v187
  %563 = vmatprep.subr.mxu0 0.0
  %564 = vmatpush1.msra.mxu0 %v188
  %565 = vmatprep.subr.mxu0 0.0
  %566 = vmatpush1.msra.mxu0 %v189
  %567 = vmatprep.subr.mxu0 0.0
  %568 = vmatpush1.msra.mxu0 %v190
  %569 = vmatprep.subr.mxu0 0.0
  %570 = vmatpush1.msra.mxu0 %v191
  %571 = vmatprep.subr.mxu0 0.0
  %572 = vmatpush1.msra.mxu0 %v192
  %573 = vmatprep.subr.mxu0 0.0
  %574 = vmatpush1.msra.mxu0 %v193
  %575 = vmatprep.subr.mxu0 0.0
  %576 = vmatpush1.msra.mxu0 %v194
  %577 = vmatprep.subr.mxu0 0.0
  %578 = vmatpush1.msra.mxu0 %v195
  %579 = vmatprep.subr.mxu0 0.0
  %580 = vmatpush1.msra.mxu0 %v196
  %581 = vmatprep.subr.mxu0 0.0
  %582 = vmatpush1.msra.mxu0 %v197
  %583 = vmatprep.subr.mxu0 0.0
  %584 = vmatpush1.msra.mxu0 %v198
  %585 = vmatprep.subr.mxu0 0.0
  %586 = vmatpush1.msra.mxu0 %v199
  %587 = vmatprep.subr.mxu0 0.0
  %588 = vmatpush1.msra.mxu0 %v200
  %589 = vmatprep.subr.mxu0 0.0
  %590 = vmatpush1.msra.mxu0 %v201
  %591 = vmatprep.subr.mxu0 0.0
  %592 = vmatpush1.msra.mxu0 %v202
  %593 = vmatprep.subr.mxu0 0.0
  %594 = vmatpush1.msra.mxu0 %v203
  %595 = vmatprep.subr.mxu0 0.0
  %596 = vmatpush1.msra.mxu0 %v204
  %597 = vmatprep.subr.mxu0 0.0
  %598 = vmatpush1.msra.mxu0 %v205
  %599 = vmatprep.subr.mxu0 0.0
  %600 = vmatpush1.msra.mxu0 %v206
  %601 = vmatprep.subr.mxu0 0.0
  %602 = vmatpush1.msra.mxu0 %v207
  %603 = vmatprep.subr.mxu0 0.0
  %604 = vmatpush1.msra.mxu0 %v208
  %605 = vmatprep.subr.mxu0 0.0
  %606 = vmatpush1.msra.mxu0 %v209
  %607 = vmatprep.subr.mxu0 0.0
  %608 = vmatpush1.msra.mxu0 %v210
  %609 = vmatprep.subr.mxu0 0.0
  %610 = vmatpush1.msra.mxu0 %v211
  %611 = vmatprep.subr.mxu0 0.0
  %612 = vmatpush1.msra.mxu0 %v212
  %613 = vmatprep.subr.mxu0 0.0
  %614 = vmatpush1.msra.mxu0 %v213
  %615 = vmatprep.mubr.f32.mxu0 %v21
  %616 = vmatmul.mubr.f32.gmra.mrb[0].mxu0 %v20
  %v617 = vpop.f32.mrb[0].mxu0
  %v618 = vadd.f32 %v508, %v617
  %v619 = vpop.f32.mrb[0].mxu0
  %620 = vmatprep.mubr.f32.mxu0 %v29
  %621 = vmatmul.mubr.f32.gmra.mrb[0].mxu0 %v28
  %v622 = vpop.f32.mrb[0].mxu0
  %v623 = vadd.f32 %v513, %v622
  %v624 = vpop.f32.mrb[0].mxu0
  %625 = vmatprep.mubr.f32.mxu0 %v37
  %626 = vmatmul.mubr.f32.gmra.mrb[0].mxu0 %v36
  %v627 = vpop.f32.mrb[0].mxu0
  %v628 = vadd.f32 %v518, %v627
  %v629 = vpop.f32.mrb[0].mxu0
  %630 = vmatprep.mubr.f32.mxu0 %v45
  %631 = vmatmul.mubr.f32.gmra.mrb[0].mxu0 %v44
  %v632 = vpop.f32.mrb[0].mxu0
  %v633 = vadd.f32 %v523, %v632
  %v634 = vpop.f32.mrb[0].mxu0
  %635 = vmatprep.mubr.f32.mxu0 %v53
  %636 = vmatmul.mubr.f32.gmra.mrb[0].mxu0 %v52
  %v637 = vpop.f32.mrb[0].mxu0
  %v638 = vadd.f32 %v528, %v637
  %v639 = vpop.f32.mrb[0].mxu0
  %640 = vmatprep.mubr.f32.mxu0 %v61
  %641 = vmatmul.mubr.f32.gmra.mrb[0].mxu0 %v60
  %v642 = vpop.f32.mrb[0].mxu0
  %v643 = vadd.f32 %v533, %v642
  %v644 = vpop.f32.mrb[0].mxu0
  %645 = vmatprep.mubr.f32.mxu0 %v69
  %646 = vmatmul.mubr.f32.gmra.mrb[0].mxu0 %v68
  %v647 = vpop.f32.mrb[0].mxu0
  %v648 = vadd.f32 %v538, %v647
  %v649 = vpop.f32.mrb[0].mxu0
  %650 = vmatprep.mubr.f32.mxu0 %v77
  %651 = vmatmul.mubr.f32.gmra.mrb[0].mxu0 %v76
  %v652 = vpop.f32.mrb[0].mxu0
  %v653 = vadd.f32 %v543, %v652
  %v654 = vpop.f32.mrb[0].mxu0
  %655 = vmatprep.mubr.f32.mxu0 %v85
  %656 = vmatmul.mubr.f32.gmra.mrb[0].mxu0 %v84
  %v657 = vpop.f32.mrb[0].mxu0
  %v658 = vadd.f32 %v548, %v657
  %v659 = vpop.f32.mrb[0].mxu0
  %660 = vdwg.mxu0
  %v661 = vmax.f32 %v618, 0.0
  %v662 = vmax.f32 %v623, 0.0
  %v663 = vmax.f32 %v628, 0.0
  %v664 = vmax.f32 %v633, 0.0
  %v665 = vmax.f32 %v638, 0.0
  %v666 = vmax.f32 %v643, 0.0
  %v667 = vmax.f32 %v648, 0.0
  %v668 = vmax.f32 %v653, 0.0
  %v669 = vmax.f32 %v658, 0.0
  %670 = vst [vmem:[%s3] sm:$0xff] %v661
  %671 = vst [vmem:[%s3 + $0x8] sm:$0xff] %v662
  %672 = vst [vmem:[%s3 + $0x10] sm:$0xff] %v663
  %673 = vst [vmem:[%s3 + $0x18] sm:$0xff] %v664
  %674 = vst [vmem:[%s3 + $0x20] sm:$0xff] %v665
  %675 = vst [vmem:[%s3 + $0x28] sm:$0xff] %v666
  %676 = vst [vmem:[%s3 + $0x30] sm:$0xff] %v667
  %677 = vst [vmem:[%s3 + $0x38] sm:$0xff] %v668
  %678 = vst [vmem:[%s3 + $0x40] sm:$0xff] %v669
  // Predicated region
  $region14: #{encoder_forward.6} parent=0 // pred_check
    _
  $region15: #{encoder_forward.6} parent=0 // pred_check_branch
    %680 = sbr.rel (0) target = $region17
  $region16: #{encoder_forward.6} parent=0 // pred_region
    _
  $region17: #{encoder_forward.6} parent=0 // pred_fallthru
    _
  // Predicated region
  $region18: #{encoder_forward.6} parent=0 // pred_check
    _
  $region19: #{encoder_forward.6} parent=0 // pred_check_branch
    %682 = sbr.rel (0) target = $region21
  $region20: #{encoder_forward.6} parent=0 // pred_region
    _
  $region21: #{encoder_forward.6} parent=0 // pred_fallthru
    _

// kernel: encoder_forward.7
$region0: #{encoder_forward.7}
  #allocation0 [shape = 'u32[]', space=smem, size = 0x4, offset = 0x4, fixed_abs, tag = 'smem constant byte address 0x4 - core index']
  #allocation1 [shape = 'u32[144,128]{1,0:T(1,128)}', space=vmem, size = 0x12000, scoped, tag = 'internal scratch']
  %s0 = inlined_call_operand.vmem [shape: f32[8,2048], index: 0, kind: input, shape index: {}]
  %s1 = inlined_call_operand.vmem [shape: f32[2048,256], index: 1, kind: input, shape index: {}]
  %s2 = inlined_call_operand.vmem [shape: f32[1,256], index: 2, kind: input, shape index: {}]
  %s3 = inlined_call_operand.vmem [shape: f32[8,256], index: 3, kind: output, shape index: {}]
  %s4 = sld [smem:[#allocation0]]
  $region22: #{encoder_forward.7} parent=0
    _
  %s6 = ssub.s32 1, %s4
  %s7 = scalar_select 0, %s6, %s4
  // Predicated region
  $region2: #{encoder_forward.7} parent=0 // pred_check
    _
  $region3: #{encoder_forward.7} parent=0 // pred_check_branch
    %9 = sbr.rel (0) target = $region5
  $region4: #{encoder_forward.7} parent=0 // pred_region
    _
  $region5: #{encoder_forward.7} parent=0 // pred_fallthru
    _
  // Predicated region
  $region6: #{encoder_forward.7} parent=0 // pred_check
    _
  $region7: #{encoder_forward.7} parent=0 // pred_check_branch
    %11 = sbr.rel (0) target = $region9
  $region8: #{encoder_forward.7} parent=0 // pred_region
    _
  $region9: #{encoder_forward.7} parent=0 // pred_fallthru
    _
  // Predicated region
  $region10: #{encoder_forward.7} parent=0 // pred_check
    _
  $region11: #{encoder_forward.7} parent=0 // pred_check_branch
    %13 = sbr.rel (0) target = $region13
  $region12: #{encoder_forward.7} parent=0 // pred_region
    _
  $region13: #{encoder_forward.7} parent=0 // pred_fallthru
    _
  %v14 = vld [vmem:[%s0] sm:$0xff]
  %v15 = vld [vmem:[%s0 + $0x8] sm:$0xff]
  %v16 = vld [vmem:[%s0 + $0x10] sm:$0xff]
  %v17 = vld [vmem:[%s0 + $0x18] sm:$0xff]
  %v18 = vld [vmem:[%s0 + $0x20] sm:$0xff]
  %v19 = vld [vmem:[%s0 + $0x28] sm:$0xff]
  %v20 = vld [vmem:[%s0 + $0x30] sm:$0xff]
  %v21 = vld [vmem:[%s0 + $0x38] sm:$0xff]
  %v22 = vld [vmem:[%s0 + $0x40] sm:$0xff]
  %v23 = vld [vmem:[%s0 + $0x48] sm:$0xff]
  %v24 = vld [vmem:[%s0 + $0x50] sm:$0xff]
  %v25 = vld [vmem:[%s0 + $0x58] sm:$0xff]
  %v26 = vld [vmem:[%s0 + $0x60] sm:$0xff]
  %v27 = vld [vmem:[%s0 + $0x68] sm:$0xff]
  %v28 = vld [vmem:[%s0 + $0x70] sm:$0xff]
  %v29 = vld [vmem:[%s0 + $0x78] sm:$0xff]
  %v30 = vld [vmem:[%s1] sm:$0xff]
  %v31 = vld [vmem:[%s1 + $0x8] sm:$0xff]
  %v32 = vld [vmem:[%s1 + $0x10] sm:$0xff]
  %v33 = vld [vmem:[%s1 + $0x18] sm:$0xff]
  %v34 = vld [vmem:[%s1 + $0x20] sm:$0xff]
  %v35 = vld [vmem:[%s1 + $0x28] sm:$0xff]
  %v36 = vld [vmem:[%s1 + $0x30] sm:$0xff]
  %v37 = vld [vmem:[%s1 + $0x38] sm:$0xff]
  %v38 = vld [vmem:[%s1 + $0x40] sm:$0xff]
  %v39 = vld [vmem:[%s1 + $0x48] sm:$0xff]
  %v40 = vld [vmem:[%s1 + $0x50] sm:$0xff]
  %v41 = vld [vmem:[%s1 + $0x58] sm:$0xff]
  %v42 = vld [vmem:[%s1 + $0x60] sm:$0xff]
  %v43 = vld [vmem:[%s1 + $0x68] sm:$0xff]
  %v44 = vld [vmem:[%s1 + $0x70] sm:$0xff]
  %v45 = vld [vmem:[%s1 + $0x78] sm:$0xff]
  %v46 = vld [vmem:[%s1 + $0x80] sm:$0xff]
  %v47 = vld [vmem:[%s1 + $0x88] sm:$0xff]
  %v48 = vld [vmem:[%s1 + $0x90] sm:$0xff]
  %v49 = vld [vmem:[%s1 + $0x98] sm:$0xff]
  %v50 = vld [vmem:[%s1 + $0xa0] sm:$0xff]
  %v51 = vld [vmem:[%s1 + $0xa8] sm:$0xff]
  %v52 = vld [vmem:[%s1 + $0xb0] sm:$0xff]
  %v53 = vld [vmem:[%s1 + $0xb8] sm:$0xff]
  %v54 = vld [vmem:[%s1 + $0xc0] sm:$0xff]
  %v55 = vld [vmem:[%s1 + $0xc8] sm:$0xff]
  %v56 = vld [vmem:[%s1 + $0xd0] sm:$0xff]
  %v57 = vld [vmem:[%s1 + $0xd8] sm:$0xff]
  %v58 = vld [vmem:[%s1 + $0xe0] sm:$0xff]
  %v59 = vld [vmem:[%s1 + $0xe8] sm:$0xff]
  %v60 = vld [vmem:[%s1 + $0xf0] sm:$0xff]
  %v61 = vld [vmem:[%s1 + $0xf8] sm:$0xff]
  %v62 = vld [vmem:[%s1 + $0x100] sm:$0xff]
  %v63 = vld [vmem:[%s1 + $0x108] sm:$0xff]
  %v64 = vld [vmem:[%s1 + $0x110] sm:$0xff]
  %v65 = vld [vmem:[%s1 + $0x118] sm:$0xff]
  %v66 = vld [vmem:[%s1 + $0x120] sm:$0xff]
  %v67 = vld [vmem:[%s1 + $0x128] sm:$0xff]
  %v68 = vld [vmem:[%s1 + $0x130] sm:$0xff]
  %v69 = vld [vmem:[%s1 + $0x138] sm:$0xff]
  %v70 = vld [vmem:[%s1 + $0x140] sm:$0xff]
  %v71 = vld [vmem:[%s1 + $0x148] sm:$0xff]
  %v72 = vld [vmem:[%s1 + $0x150] sm:$0xff]
  %v73 = vld [vmem:[%s1 + $0x158] sm:$0xff]
  %v74 = vld [vmem:[%s1 + $0x160] sm:$0xff]
  %v75 = vld [vmem:[%s1 + $0x168] sm:$0xff]
  %v76 = vld [vmem:[%s1 + $0x170] sm:$0xff]
  %v77 = vld [vmem:[%s1 + $0x178] sm:$0xff]
  %v78 = vld [vmem:[%s1 + $0x180] sm:$0xff]
  %v79 = vld [vmem:[%s1 + $0x188] sm:$0xff]
  %v80 = vld [vmem:[%s1 + $0x190] sm:$0xff]
  %v81 = vld [vmem:[%s1 + $0x198] sm:$0xff]
  %v82 = vld [vmem:[%s1 + $0x1a0] sm:$0xff]
  %v83 = vld [vmem:[%s1 + $0x1a8] sm:$0xff]
  %v84 = vld [vmem:[%s1 + $0x1b0] sm:$0xff]
  %v85 = vld [vmem:[%s1 + $0x1b8] sm:$0xff]
  %v86 = vld [vmem:[%s1 + $0x1c0] sm:$0xff]
  %v87 = vld [vmem:[%s1 + $0x1c8] sm:$0xff]
  %v88 = vld [vmem:[%s1 + $0x1d0] sm:$0xff]
  %v89 = vld [vmem:[%s1 + $0x1d8] sm:$0xff]
  %v90 = vld [vmem:[%s1 + $0x1e0] sm:$0xff]
  %v91 = vld [vmem:[%s1 + $0x1e8] sm:$0xff]
  %v92 = vld [vmem:[%s1 + $0x1f0] sm:$0xff]
  %v93 = vld [vmem:[%s1 + $0x1f8] sm:$0xff]
  %v94 = vld [vmem:[%s1 + $0x200] sm:$0xff]
  %v95 = vld [vmem:[%s1 + $0x208] sm:$0xff]
  %v96 = vld [vmem:[%s1 + $0x210] sm:$0xff]
  %v97 = vld [vmem:[%s1 + $0x218] sm:$0xff]
  %v98 = vld [vmem:[%s1 + $0x220] sm:$0xff]
  %v99 = vld [vmem:[%s1 + $0x228] sm:$0xff]
  %v100 = vld [vmem:[%s1 + $0x230] sm:$0xff]
  %v101 = vld [vmem:[%s1 + $0x238] sm:$0xff]
  %v102 = vld [vmem:[%s1 + $0x240] sm:$0xff]
  %v103 = vld [vmem:[%s1 + $0x248] sm:$0xff]
  %v104 = vld [vmem:[%s1 + $0x250] sm:$0xff]
  %v105 = vld [vmem:[%s1 + $0x258] sm:$0xff]
  %v106 = vld [vmem:[%s1 + $0x260] sm:$0xff]
  %v107 = vld [vmem:[%s1 + $0x268] sm:$0xff]
  %v108 = vld [vmem:[%s1 + $0x270] sm:$0xff]
  %v109 = vld [vmem:[%s1 + $0x278] sm:$0xff]
  %v110 = vld [vmem:[%s1 + $0x280] sm:$0xff]
  %v111 = vld [vmem:[%s1 + $0x288] sm:$0xff]
  %v112 = vld [vmem:[%s1 + $0x290] sm:$0xff]
  %v113 = vld [vmem:[%s1 + $0x298] sm:$0xff]
  %v114 = vld [vmem:[%s1 + $0x2a0] sm:$0xff]
  %v115 = vld [vmem:[%s1 + $0x2a8] sm:$0xff]
  %v116 = vld [vmem:[%s1 + $0x2b0] sm:$0xff]
  %v117 = vld [vmem:[%s1 + $0x2b8] sm:$0xff]
  %v118 = vld [vmem:[%s1 + $0x2c0] sm:$0xff]
  %v119 = vld [vmem:[%s1 + $0x2c8] sm:$0xff]
  %v120 = vld [vmem:[%s1 + $0x2d0] sm:$0xff]
  %v121 = vld [vmem:[%s1 + $0x2d8] sm:$0xff]
  %v122 = vld [vmem:[%s1 + $0x2e0] sm:$0xff]
  %v123 = vld [vmem:[%s1 + $0x2e8] sm:$0xff]
  %v124 = vld [vmem:[%s1 + $0x2f0] sm:$0xff]
  %v125 = vld [vmem:[%s1 + $0x2f8] sm:$0xff]
  %v126 = vld [vmem:[%s1 + $0x300] sm:$0xff]
  %v127 = vld [vmem:[%s1 + $0x308] sm:$0xff]
  %v128 = vld [vmem:[%s1 + $0x310] sm:$0xff]
  %v129 = vld [vmem:[%s1 + $0x318] sm:$0xff]
  %v130 = vld [vmem:[%s1 + $0x320] sm:$0xff]
  %v131 = vld [vmem:[%s1 + $0x328] sm:$0xff]
  %v132 = vld [vmem:[%s1 + $0x330] sm:$0xff]
  %v133 = vld [vmem:[%s1 + $0x338] sm:$0xff]
  %v134 = vld [vmem:[%s1 + $0x340] sm:$0xff]
  %v135 = vld [vmem:[%s1 + $0x348] sm:$0xff]
  %v136 = vld [vmem:[%s1 + $0x350] sm:$0xff]
  %v137 = vld [vmem:[%s1 + $0x358] sm:$0xff]
  %v138 = vld [vmem:[%s1 + $0x360] sm:$0xff]
  %v139 = vld [vmem:[%s1 + $0x368] sm:$0xff]
  %v140 = vld [vmem:[%s1 + $0x370] sm:$0xff]
  %v141 = vld [vmem:[%s1 + $0x378] sm:$0xff]
  %v142 = vld [vmem:[%s1 + $0x380] sm:$0xff]
  %v143 = vld [vmem:[%s1 + $0x388] sm:$0xff]
  %v144 = vld [vmem:[%s1 + $0x390] sm:$0xff]
  %v145 = vld [vmem:[%s1 + $0x398] sm:$0xff]
  %v146 = vld [vmem:[%s1 + $0x3a0] sm:$0xff]
  %v147 = vld [vmem:[%s1 + $0x3a8] sm:$0xff]
  %v148 = vld [vmem:[%s1 + $0x3b0] sm:$0xff]
  %v149 = vld [vmem:[%s1 + $0x3b8] sm:$0xff]
  %v150 = vld [vmem:[%s1 + $0x3c0] sm:$0xff]
  %v151 = vld [vmem:[%s1 + $0x3c8] sm:$0xff]
  %v152 = vld [vmem:[%s1 + $0x3d0] sm:$0xff]
  %v153 = vld [vmem:[%s1 + $0x3d8] sm:$0xff]
  %v154 = vld [vmem:[%s1 + $0x3e0] sm:$0xff]
  %v155 = vld [vmem:[%s1 + $0x3e8] sm:$0xff]
  %v156 = vld [vmem:[%s1 + $0x3f0] sm:$0xff]
  %v157 = vld [vmem:[%s1 + $0x3f8] sm:$0xff]
  %v158 = vld [vmem:[%s1 + $0x400] sm:$0xff]
  %v159 = vld [vmem:[%s1 + $0x408] sm:$0xff]
  %v160 = vld [vmem:[%s1 + $0x410] sm:$0xff]
  %v161 = vld [vmem:[%s1 + $0x418] sm:$0xff]
  %v162 = vld [vmem:[%s1 + $0x420] sm:$0xff]
  %v163 = vld [vmem:[%s1 + $0x428] sm:$0xff]
  %v164 = vld [vmem:[%s1 + $0x430] sm:$0xff]
  %v165 = vld [vmem:[%s1 + $0x438] sm:$0xff]
  %v166 = vld [vmem:[%s1 + $0x440] sm:$0xff]
  %v167 = vld [vmem:[%s1 + $0x448] sm:$0xff]
  %v168 = vld [vmem:[%s1 + $0x450] sm:$0xff]
  %v169 = vld [vmem:[%s1 + $0x458] sm:$0xff]
  %v170 = vld [vmem:[%s1 + $0x460] sm:$0xff]
  %v171 = vld [vmem:[%s1 + $0x468] sm:$0xff]
  %v172 = vld [vmem:[%s1 + $0x470] sm:$0xff]
  %v173 = vld [vmem:[%s1 + $0x478] sm:$0xff]
  %v174 = vld [vmem:[%s1 + $0x480] sm:$0xff]
  %v175 = vld [vmem:[%s1 + $0x488] sm:$0xff]
  %v176 = vld [vmem:[%s1 + $0x490] sm:$0xff]
  %v177 = vld [vmem:[%s1 + $0x498] sm:$0xff]
  %v178 = vld [vmem:[%s1 + $0x4a0] sm:$0xff]
  %v179 = vld [vmem:[%s1 + $0x4a8] sm:$0xff]
  %v180 = vld [vmem:[%s1 + $0x4b0] sm:$0xff]
  %v181 = vld [vmem:[%s1 + $0x4b8] sm:$0xff]
  %v182 = vld [vmem:[%s1 + $0x4c0] sm:$0xff]
  %v183 = vld [vmem:[%s1 + $0x4c8] sm:$0xff]
  %v184 = vld [vmem:[%s1 + $0x4d0] sm:$0xff]
  %v185 = vld [vmem:[%s1 + $0x4d8] sm:$0xff]
  %v186 = vld [vmem:[%s1 + $0x4e0] sm:$0xff]
  %v187 = vld [vmem:[%s1 + $0x4e8] sm:$0xff]
  %v188 = vld [vmem:[%s1 + $0x4f0] sm:$0xff]
  %v189 = vld [vmem:[%s1 + $0x4f8] sm:$0xff]
  %v190 = vld [vmem:[%s1 + $0x500] sm:$0xff]
  %v191 = vld [vmem:[%s1 + $0x508] sm:$0xff]
  %v192 = vld [vmem:[%s1 + $0x510] sm:$0xff]
  %v193 = vld [vmem:[%s1 + $0x518] sm:$0xff]
  %v194 = vld [vmem:[%s1 + $0x520] sm:$0xff]
  %v195 = vld [vmem:[%s1 + $0x528] sm:$0xff]
  %v196 = vld [vmem:[%s1 + $0x530] sm:$0xff]
  %v197 = vld [vmem:[%s1 + $0x538] sm:$0xff]
  %v198 = vld [vmem:[%s1 + $0x540] sm:$0xff]
  %v199 = vld [vmem:[%s1 + $0x548] sm:$0xff]
  %v200 = vld [vmem:[%s1 + $0x550] sm:$0xff]
  %v201 = vld [vmem:[%s1 + $0x558] sm:$0xff]
  %v202 = vld [vmem:[%s1 + $0x560] sm:$0xff]
  %v203 = vld [vmem:[%s1 + $0x568] sm:$0xff]
  %v204 = vld [vmem:[%s1 + $0x570] sm:$0xff]
  %v205 = vld [vmem:[%s1 + $0x578] sm:$0xff]
  %v206 = vld [vmem:[%s1 + $0x580] sm:$0xff]
  %v207 = vld [vmem:[%s1 + $0x588] sm:$0xff]
  %v208 = vld [vmem:[%s1 + $0x590] sm:$0xff]
  %v209 = vld [vmem:[%s1 + $0x598] sm:$0xff]
  %v210 = vld [vmem:[%s1 + $0x5a0] sm:$0xff]
  %v211 = vld [vmem:[%s1 + $0x5a8] sm:$0xff]
  %v212 = vld [vmem:[%s1 + $0x5b0] sm:$0xff]
  %v213 = vld [vmem:[%s1 + $0x5b8] sm:$0xff]
  %v214 = vld [vmem:[%s1 + $0x5c0] sm:$0xff]
  %v215 = vld [vmem:[%s1 + $0x5c8] sm:$0xff]
  %v216 = vld [vmem:[%s1 + $0x5d0] sm:$0xff]
  %v217 = vld [vmem:[%s1 + $0x5d8] sm:$0xff]
  %v218 = vld [vmem:[%s1 + $0x5e0] sm:$0xff]
  %v219 = vld [vmem:[%s1 + $0x5e8] sm:$0xff]
  %v220 = vld [vmem:[%s1 + $0x5f0] sm:$0xff]
  %v221 = vld [vmem:[%s1 + $0x5f8] sm:$0xff]
  %v222 = vld [vmem:[%s1 + $0x600] sm:$0xff]
  %v223 = vld [vmem:[%s1 + $0x608] sm:$0xff]
  %v224 = vld [vmem:[%s1 + $0x610] sm:$0xff]
  %v225 = vld [vmem:[%s1 + $0x618] sm:$0xff]
  %v226 = vld [vmem:[%s1 + $0x620] sm:$0xff]
  %v227 = vld [vmem:[%s1 + $0x628] sm:$0xff]
  %v228 = vld [vmem:[%s1 + $0x630] sm:$0xff]
  %v229 = vld [vmem:[%s1 + $0x638] sm:$0xff]
  %v230 = vld [vmem:[%s1 + $0x640] sm:$0xff]
  %v231 = vld [vmem:[%s1 + $0x648] sm:$0xff]
  %v232 = vld [vmem:[%s1 + $0x650] sm:$0xff]
  %v233 = vld [vmem:[%s1 + $0x658] sm:$0xff]
  %v234 = vld [vmem:[%s1 + $0x660] sm:$0xff]
  %v235 = vld [vmem:[%s1 + $0x668] sm:$0xff]
  %v236 = vld [vmem:[%s1 + $0x670] sm:$0xff]
  %v237 = vld [vmem:[%s1 + $0x678] sm:$0xff]
  %v238 = vld [vmem:[%s1 + $0x680] sm:$0xff]
  %v239 = vld [vmem:[%s1 + $0x688] sm:$0xff]
  %v240 = vld [vmem:[%s1 + $0x690] sm:$0xff]
  %v241 = vld [vmem:[%s1 + $0x698] sm:$0xff]
  %v242 = vld [vmem:[%s1 + $0x6a0] sm:$0xff]
  %v243 = vld [vmem:[%s1 + $0x6a8] sm:$0xff]
  %v244 = vld [vmem:[%s1 + $0x6b0] sm:$0xff]
  %v245 = vld [vmem:[%s1 + $0x6b8] sm:$0xff]
  %v246 = vld [vmem:[%s1 + $0x6c0] sm:$0xff]
  %v247 = vld [vmem:[%s1 + $0x6c8] sm:$0xff]
  %v248 = vld [vmem:[%s1 + $0x6d0] sm:$0xff]
  %v249 = vld [vmem:[%s1 + $0x6d8] sm:$0xff]
  %v250 = vld [vmem:[%s1 + $0x6e0] sm:$0xff]
  %v251 = vld [vmem:[%s1 + $0x6e8] sm:$0xff]
  %v252 = vld [vmem:[%s1 + $0x6f0] sm:$0xff]
  %v253 = vld [vmem:[%s1 + $0x6f8] sm:$0xff]
  %v254 = vld [vmem:[%s1 + $0x700] sm:$0xff]
  %v255 = vld [vmem:[%s1 + $0x708] sm:$0xff]
  %v256 = vld [vmem:[%s1 + $0x710] sm:$0xff]
  %v257 = vld [vmem:[%s1 + $0x718] sm:$0xff]
  %v258 = vld [vmem:[%s1 + $0x720] sm:$0xff]
  %v259 = vld [vmem:[%s1 + $0x728] sm:$0xff]
  %v260 = vld [vmem:[%s1 + $0x730] sm:$0xff]
  %v261 = vld [vmem:[%s1 + $0x738] sm:$0xff]
  %v262 = vld [vmem:[%s1 + $0x740] sm:$0xff]
  %v263 = vld [vmem:[%s1 + $0x748] sm:$0xff]
  %v264 = vld [vmem:[%s1 + $0x750] sm:$0xff]
  %v265 = vld [vmem:[%s1 + $0x758] sm:$0xff]
  %v266 = vld [vmem:[%s1 + $0x760] sm:$0xff]
  %v267 = vld [vmem:[%s1 + $0x768] sm:$0xff]
  %v268 = vld [vmem:[%s1 + $0x770] sm:$0xff]
  %v269 = vld [vmem:[%s1 + $0x778] sm:$0xff]
  %v270 = vld [vmem:[%s1 + $0x780] sm:$0xff]
  %v271 = vld [vmem:[%s1 + $0x788] sm:$0xff]
  %v272 = vld [vmem:[%s1 + $0x790] sm:$0xff]
  %v273 = vld [vmem:[%s1 + $0x798] sm:$0xff]
  %v274 = vld [vmem:[%s1 + $0x7a0] sm:$0xff]
  %v275 = vld [vmem:[%s1 + $0x7a8] sm:$0xff]
  %v276 = vld [vmem:[%s1 + $0x7b0] sm:$0xff]
  %v277 = vld [vmem:[%s1 + $0x7b8] sm:$0xff]
  %v278 = vld [vmem:[%s1 + $0x7c0] sm:$0xff]
  %v279 = vld [vmem:[%s1 + $0x7c8] sm:$0xff]
  %v280 = vld [vmem:[%s1 + $0x7d0] sm:$0xff]
  %v281 = vld [vmem:[%s1 + $0x7d8] sm:$0xff]
  %v282 = vld [vmem:[%s1 + $0x7e0] sm:$0xff]
  %v283 = vld [vmem:[%s1 + $0x7e8] sm:$0xff]
  %v284 = vld [vmem:[%s1 + $0x7f0] sm:$0xff]
  %v285 = vld [vmem:[%s1 + $0x7f8] sm:$0xff]
  %v286 = vld [vmem:[%s1 + $0x800] sm:$0xff]
  %v287 = vld [vmem:[%s1 + $0x808] sm:$0xff]
  %v288 = vld [vmem:[%s1 + $0x810] sm:$0xff]
  %v289 = vld [vmem:[%s1 + $0x818] sm:$0xff]
  %v290 = vld [vmem:[%s1 + $0x820] sm:$0xff]
  %v291 = vld [vmem:[%s1 + $0x828] sm:$0xff]
  %v292 = vld [vmem:[%s1 + $0x830] sm:$0xff]
  %v293 = vld [vmem:[%s1 + $0x838] sm:$0xff]
  %v294 = vld [vmem:[%s1 + $0x840] sm:$0xff]
  %v295 = vld [vmem:[%s1 + $0x848] sm:$0xff]
  %v296 = vld [vmem:[%s1 + $0x850] sm:$0xff]
  %v297 = vld [vmem:[%s1 + $0x858] sm:$0xff]
  %v298 = vld [vmem:[%s1 + $0x860] sm:$0xff]
  %v299 = vld [vmem:[%s1 + $0x868] sm:$0xff]
  %v300 = vld [vmem:[%s1 + $0x870] sm:$0xff]
  %v301 = vld [vmem:[%s1 + $0x878] sm:$0xff]
  %v302 = vld [vmem:[%s1 + $0x880] sm:$0xff]
  %v303 = vld [vmem:[%s1 + $0x888] sm:$0xff]
  %v304 = vld [vmem:[%s1 + $0x890] sm:$0xff]
  %v305 = vld [vmem:[%s1 + $0x898] sm:$0xff]
  %v306 = vld [vmem:[%s1 + $0x8a0] sm:$0xff]
  %v307 = vld [vmem:[%s1 + $0x8a8] sm:$0xff]
  %v308 = vld [vmem:[%s1 + $0x8b0] sm:$0xff]
  %v309 = vld [vmem:[%s1 + $0x8b8] sm:$0xff]
  %v310 = vld [vmem:[%s1 + $0x8c0] sm:$0xff]
  %v311 = vld [vmem:[%s1 + $0x8c8] sm:$0xff]
  %v312 = vld [vmem:[%s1 + $0x8d0] sm:$0xff]
  %v313 = vld [vmem:[%s1 + $0x8d8] sm:$0xff]
  %v314 = vld [vmem:[%s1 + $0x8e0] sm:$0xff]
  %v315 = vld [vmem:[%s1 + $0x8e8] sm:$0xff]
  %v316 = vld [vmem:[%s1 + $0x8f0] sm:$0xff]
  %v317 = vld [vmem:[%s1 + $0x8f8] sm:$0xff]
  %v318 = vld [vmem:[%s1 + $0x900] sm:$0xff]
  %v319 = vld [vmem:[%s1 + $0x908] sm:$0xff]
  %v320 = vld [vmem:[%s1 + $0x910] sm:$0xff]
  %v321 = vld [vmem:[%s1 + $0x918] sm:$0xff]
  %v322 = vld [vmem:[%s1 + $0x920] sm:$0xff]
  %v323 = vld [vmem:[%s1 + $0x928] sm:$0xff]
  %v324 = vld [vmem:[%s1 + $0x930] sm:$0xff]
  %v325 = vld [vmem:[%s1 + $0x938] sm:$0xff]
  %v326 = vld [vmem:[%s1 + $0x940] sm:$0xff]
  %v327 = vld [vmem:[%s1 + $0x948] sm:$0xff]
  %v328 = vld [vmem:[%s1 + $0x950] sm:$0xff]
  %v329 = vld [vmem:[%s1 + $0x958] sm:$0xff]
  %v330 = vld [vmem:[%s1 + $0x960] sm:$0xff]
  %v331 = vld [vmem:[%s1 + $0x968] sm:$0xff]
  %v332 = vld [vmem:[%s1 + $0x970] sm:$0xff]
  %v333 = vld [vmem:[%s1 + $0x978] sm:$0xff]
  %v334 = vld [vmem:[%s1 + $0x980] sm:$0xff]
  %v335 = vld [vmem:[%s1 + $0x988] sm:$0xff]
  %v336 = vld [vmem:[%s1 + $0x990] sm:$0xff]
  %v337 = vld [vmem:[%s1 + $0x998] sm:$0xff]
  %v338 = vld [vmem:[%s1 + $0x9a0] sm:$0xff]
  %v339 = vld [vmem:[%s1 + $0x9a8] sm:$0xff]
  %v340 = vld [vmem:[%s1 + $0x9b0] sm:$0xff]
  %v341 = vld [vmem:[%s1 + $0x9b8] sm:$0xff]
  %v342 = vld [vmem:[%s1 + $0x9c0] sm:$0xff]
  %v343 = vld [vmem:[%s1 + $0x9c8] sm:$0xff]
  %v344 = vld [vmem:[%s1 + $0x9d0] sm:$0xff]
  %v345 = vld [vmem:[%s1 + $0x9d8] sm:$0xff]
  %v346 = vld [vmem:[%s1 + $0x9e0] sm:$0xff]
  %v347 = vld [vmem:[%s1 + $0x9e8] sm:$0xff]
  %v348 = vld [vmem:[%s1 + $0x9f0] sm:$0xff]
  %v349 = vld [vmem:[%s1 + $0x9f8] sm:$0xff]
  %v350 = vld [vmem:[%s1 + $0xa00] sm:$0xff]
  %v351 = vld [vmem:[%s1 + $0xa08] sm:$0xff]
  %v352 = vld [vmem:[%s1 + $0xa10] sm:$0xff]
  %v353 = vld [vmem:[%s1 + $0xa18] sm:$0xff]
  %v354 = vld [vmem:[%s1 + $0xa20] sm:$0xff]
  %v355 = vld [vmem:[%s1 + $0xa28] sm:$0xff]
  %v356 = vld [vmem:[%s1 + $0xa30] sm:$0xff]
  %v357 = vld [vmem:[%s1 + $0xa38] sm:$0xff]
  %v358 = vld [vmem:[%s1 + $0xa40] sm:$0xff]
  %v359 = vld [vmem:[%s1 + $0xa48] sm:$0xff]
  %v360 = vld [vmem:[%s1 + $0xa50] sm:$0xff]
  %v361 = vld [vmem:[%s1 + $0xa58] sm:$0xff]
  %v362 = vld [vmem:[%s1 + $0xa60] sm:$0xff]
  %v363 = vld [vmem:[%s1 + $0xa68] sm:$0xff]
  %v364 = vld [vmem:[%s1 + $0xa70] sm:$0xff]
  %v365 = vld [vmem:[%s1 + $0xa78] sm:$0xff]
  %v366 = vld [vmem:[%s1 + $0xa80] sm:$0xff]
  %v367 = vld [vmem:[%s1 + $0xa88] sm:$0xff]
  %v368 = vld [vmem:[%s1 + $0xa90] sm:$0xff]
  %v369 = vld [vmem:[%s1 + $0xa98] sm:$0xff]
  %v370 = vld [vmem:[%s1 + $0xaa0] sm:$0xff]
  %v371 = vld [vmem:[%s1 + $0xaa8] sm:$0xff]
  %v372 = vld [vmem:[%s1 + $0xab0] sm:$0xff]
  %v373 = vld [vmem:[%s1 + $0xab8] sm:$0xff]
  %v374 = vld [vmem:[%s1 + $0xac0] sm:$0xff]
  %v375 = vld [vmem:[%s1 + $0xac8] sm:$0xff]
  %v376 = vld [vmem:[%s1 + $0xad0] sm:$0xff]
  %v377 = vld [vmem:[%s1 + $0xad8] sm:$0xff]
  %v378 = vld [vmem:[%s1 + $0xae0] sm:$0xff]
  %v379 = vld [vmem:[%s1 + $0xae8] sm:$0xff]
  %v380 = vld [vmem:[%s1 + $0xaf0] sm:$0xff]
  %v381 = vld [vmem:[%s1 + $0xaf8] sm:$0xff]
  %v382 = vld [vmem:[%s1 + $0xb00] sm:$0xff]
  %v383 = vld [vmem:[%s1 + $0xb08] sm:$0xff]
  %v384 = vld [vmem:[%s1 + $0xb10] sm:$0xff]
  %v385 = vld [vmem:[%s1 + $0xb18] sm:$0xff]
  %v386 = vld [vmem:[%s1 + $0xb20] sm:$0xff]
  %v387 = vld [vmem:[%s1 + $0xb28] sm:$0xff]
  %v388 = vld [vmem:[%s1 + $0xb30] sm:$0xff]
  %v389 = vld [vmem:[%s1 + $0xb38] sm:$0xff]
  %v390 = vld [vmem:[%s1 + $0xb40] sm:$0xff]
  %v391 = vld [vmem:[%s1 + $0xb48] sm:$0xff]
  %v392 = vld [vmem:[%s1 + $0xb50] sm:$0xff]
  %v393 = vld [vmem:[%s1 + $0xb58] sm:$0xff]
  %v394 = vld [vmem:[%s1 + $0xb60] sm:$0xff]
  %v395 = vld [vmem:[%s1 + $0xb68] sm:$0xff]
  %v396 = vld [vmem:[%s1 + $0xb70] sm:$0xff]
  %v397 = vld [vmem:[%s1 + $0xb78] sm:$0xff]
  %v398 = vld [vmem:[%s1 + $0xb80] sm:$0xff]
  %v399 = vld [vmem:[%s1 + $0xb88] sm:$0xff]
  %v400 = vld [vmem:[%s1 + $0xb90] sm:$0xff]
  %v401 = vld [vmem:[%s1 + $0xb98] sm:$0xff]
  %v402 = vld [vmem:[%s1 + $0xba0] sm:$0xff]
  %v403 = vld [vmem:[%s1 + $0xba8] sm:$0xff]
  %v404 = vld [vmem:[%s1 + $0xbb0] sm:$0xff]
  %v405 = vld [vmem:[%s1 + $0xbb8] sm:$0xff]
  %v406 = vld [vmem:[%s1 + $0xbc0] sm:$0xff]
  %v407 = vld [vmem:[%s1 + $0xbc8] sm:$0xff]
  %v408 = vld [vmem:[%s1 + $0xbd0] sm:$0xff]
  %v409 = vld [vmem:[%s1 + $0xbd8] sm:$0xff]
  %v410 = vld [vmem:[%s1 + $0xbe0] sm:$0xff]
  %v411 = vld [vmem:[%s1 + $0xbe8] sm:$0xff]
  %v412 = vld [vmem:[%s1 + $0xbf0] sm:$0xff]
  %v413 = vld [vmem:[%s1 + $0xbf8] sm:$0xff]
  %v414 = vld [vmem:[%s1 + $0xc00] sm:$0xff]
  %v415 = vld [vmem:[%s1 + $0xc08] sm:$0xff]
  %v416 = vld [vmem:[%s1 + $0xc10] sm:$0xff]
  %v417 = vld [vmem:[%s1 + $0xc18] sm:$0xff]
  %v418 = vld [vmem:[%s1 + $0xc20] sm:$0xff]
  %v419 = vld [vmem:[%s1 + $0xc28] sm:$0xff]
  %v420 = vld [vmem:[%s1 + $0xc30] sm:$0xff]
  %v421 = vld [vmem:[%s1 + $0xc38] sm:$0xff]
  %v422 = vld [vmem:[%s1 + $0xc40] sm:$0xff]
  %v423 = vld [vmem:[%s1 + $0xc48] sm:$0xff]
  %v424 = vld [vmem:[%s1 + $0xc50] sm:$0xff]
  %v425 = vld [vmem:[%s1 + $0xc58] sm:$0xff]
  %v426 = vld [vmem:[%s1 + $0xc60] sm:$0xff]
  %v427 = vld [vmem:[%s1 + $0xc68] sm:$0xff]
  %v428 = vld [vmem:[%s1 + $0xc70] sm:$0xff]
  %v429 = vld [vmem:[%s1 + $0xc78] sm:$0xff]
  %v430 = vld [vmem:[%s1 + $0xc80] sm:$0xff]
  %v431 = vld [vmem:[%s1 + $0xc88] sm:$0xff]
  %v432 = vld [vmem:[%s1 + $0xc90] sm:$0xff]
  %v433 = vld [vmem:[%s1 + $0xc98] sm:$0xff]
  %v434 = vld [vmem:[%s1 + $0xca0] sm:$0xff]
  %v435 = vld [vmem:[%s1 + $0xca8] sm:$0xff]
  %v436 = vld [vmem:[%s1 + $0xcb0] sm:$0xff]
  %v437 = vld [vmem:[%s1 + $0xcb8] sm:$0xff]
  %v438 = vld [vmem:[%s1 + $0xcc0] sm:$0xff]
  %v439 = vld [vmem:[%s1 + $0xcc8] sm:$0xff]
  %v440 = vld [vmem:[%s1 + $0xcd0] sm:$0xff]
  %v441 = vld [vmem:[%s1 + $0xcd8] sm:$0xff]
  %v442 = vld [vmem:[%s1 + $0xce0] sm:$0xff]
  %v443 = vld [vmem:[%s1 + $0xce8] sm:$0xff]
  %v444 = vld [vmem:[%s1 + $0xcf0] sm:$0xff]
  %v445 = vld [vmem:[%s1 + $0xcf8] sm:$0xff]
  %v446 = vld [vmem:[%s1 + $0xd00] sm:$0xff]
  %v447 = vld [vmem:[%s1 + $0xd08] sm:$0xff]
  %v448 = vld [vmem:[%s1 + $0xd10] sm:$0xff]
  %v449 = vld [vmem:[%s1 + $0xd18] sm:$0xff]
  %v450 = vld [vmem:[%s1 + $0xd20] sm:$0xff]
  %v451 = vld [vmem:[%s1 + $0xd28] sm:$0xff]
  %v452 = vld [vmem:[%s1 + $0xd30] sm:$0xff]
  %v453 = vld [vmem:[%s1 + $0xd38] sm:$0xff]
  %v454 = vld [vmem:[%s1 + $0xd40] sm:$0xff]
  %v455 = vld [vmem:[%s1 + $0xd48] sm:$0xff]
  %v456 = vld [vmem:[%s1 + $0xd50] sm:$0xff]
  %v457 = vld [vmem:[%s1 + $0xd58] sm:$0xff]
  %v458 = vld [vmem:[%s1 + $0xd60] sm:$0xff]
  %v459 = vld [vmem:[%s1 + $0xd68] sm:$0xff]
  %v460 = vld [vmem:[%s1 + $0xd70] sm:$0xff]
  %v461 = vld [vmem:[%s1 + $0xd78] sm:$0xff]
  %v462 = vld [vmem:[%s1 + $0xd80] sm:$0xff]
  %v463 = vld [vmem:[%s1 + $0xd88] sm:$0xff]
  %v464 = vld [vmem:[%s1 + $0xd90] sm:$0xff]
  %v465 = vld [vmem:[%s1 + $0xd98] sm:$0xff]
  %v466 = vld [vmem:[%s1 + $0xda0] sm:$0xff]
  %v467 = vld [vmem:[%s1 + $0xda8] sm:$0xff]
  %v468 = vld [vmem:[%s1 + $0xdb0] sm:$0xff]
  %v469 = vld [vmem:[%s1 + $0xdb8] sm:$0xff]
  %v470 = vld [vmem:[%s1 + $0xdc0] sm:$0xff]
  %v471 = vld [vmem:[%s1 + $0xdc8] sm:$0xff]
  %v472 = vld [vmem:[%s1 + $0xdd0] sm:$0xff]
  %v473 = vld [vmem:[%s1 + $0xdd8] sm:$0xff]
  %v474 = vld [vmem:[%s1 + $0xde0] sm:$0xff]
  %v475 = vld [vmem:[%s1 + $0xde8] sm:$0xff]
  %v476 = vld [vmem:[%s1 + $0xdf0] sm:$0xff]
  %v477 = vld [vmem:[%s1 + $0xdf8] sm:$0xff]
  %v478 = vld [vmem:[%s1 + $0xe00] sm:$0xff]
  %v479 = vld [vmem:[%s1 + $0xe08] sm:$0xff]
  %v480 = vld [vmem:[%s1 + $0xe10] sm:$0xff]
  %v481 = vld [vmem:[%s1 + $0xe18] sm:$0xff]
  %v482 = vld [vmem:[%s1 + $0xe20] sm:$0xff]
  %v483 = vld [vmem:[%s1 + $0xe28] sm:$0xff]
  %v484 = vld [vmem:[%s1 + $0xe30] sm:$0xff]
  %v485 = vld [vmem:[%s1 + $0xe38] sm:$0xff]
  %v486 = vld [vmem:[%s1 + $0xe40] sm:$0xff]
  %v487 = vld [vmem:[%s1 + $0xe48] sm:$0xff]
  %v488 = vld [vmem:[%s1 + $0xe50] sm:$0xff]
  %v489 = vld [vmem:[%s1 + $0xe58] sm:$0xff]
  %v490 = vld [vmem:[%s1 + $0xe60] sm:$0xff]
  %v491 = vld [vmem:[%s1 + $0xe68] sm:$0xff]
  %v492 = vld [vmem:[%s1 + $0xe70] sm:$0xff]
  %v493 = vld [vmem:[%s1 + $0xe78] sm:$0xff]
  %v494 = vld [vmem:[%s1 + $0xe80] sm:$0xff]
  %v495 = vld [vmem:[%s1 + $0xe88] sm:$0xff]
  %v496 = vld [vmem:[%s1 + $0xe90] sm:$0xff]
  %v497 = vld [vmem:[%s1 + $0xe98] sm:$0xff]
  %v498 = vld [vmem:[%s1 + $0xea0] sm:$0xff]
  %v499 = vld [vmem:[%s1 + $0xea8] sm:$0xff]
  %v500 = vld [vmem:[%s1 + $0xeb0] sm:$0xff]
  %v501 = vld [vmem:[%s1 + $0xeb8] sm:$0xff]
  %v502 = vld [vmem:[%s1 + $0xec0] sm:$0xff]
  %v503 = vld [vmem:[%s1 + $0xec8] sm:$0xff]
  %v504 = vld [vmem:[%s1 + $0xed0] sm:$0xff]
  %v505 = vld [vmem:[%s1 + $0xed8] sm:$0xff]
  %v506 = vld [vmem:[%s1 + $0xee0] sm:$0xff]
  %v507 = vld [vmem:[%s1 + $0xee8] sm:$0xff]
  %v508 = vld [vmem:[%s1 + $0xef0] sm:$0xff]
  %v509 = vld [vmem:[%s1 + $0xef8] sm:$0xff]
  %v510 = vld [vmem:[%s1 + $0xf00] sm:$0xff]
  %v511 = vld [vmem:[%s1 + $0xf08] sm:$0xff]
  %v512 = vld [vmem:[%s1 + $0xf10] sm:$0xff]
  %v513 = vld [vmem:[%s1 + $0xf18] sm:$0xff]
  %v514 = vld [vmem:[%s1 + $0xf20] sm:$0xff]
  %v515 = vld [vmem:[%s1 + $0xf28] sm:$0xff]
  %v516 = vld [vmem:[%s1 + $0xf30] sm:$0xff]
  %v517 = vld [vmem:[%s1 + $0xf38] sm:$0xff]
  %v518 = vld [vmem:[%s1 + $0xf40] sm:$0xff]
  %v519 = vld [vmem:[%s1 + $0xf48] sm:$0xff]
  %v520 = vld [vmem:[%s1 + $0xf50] sm:$0xff]
  %v521 = vld [vmem:[%s1 + $0xf58] sm:$0xff]
  %v522 = vld [vmem:[%s1 + $0xf60] sm:$0xff]
  %v523 = vld [vmem:[%s1 + $0xf68] sm:$0xff]
  %v524 = vld [vmem:[%s1 + $0xf70] sm:$0xff]
  %v525 = vld [vmem:[%s1 + $0xf78] sm:$0xff]
  %v526 = vld [vmem:[%s1 + $0xf80] sm:$0xff]
  %v527 = vld [vmem:[%s1 + $0xf88] sm:$0xff]
  %v528 = vld [vmem:[%s1 + $0xf90] sm:$0xff]
  %v529 = vld [vmem:[%s1 + $0xf98] sm:$0xff]
  %v530 = vld [vmem:[%s1 + $0xfa0] sm:$0xff]
  %v531 = vld [vmem:[%s1 + $0xfa8] sm:$0xff]
  %v532 = vld [vmem:[%s1 + $0xfb0] sm:$0xff]
  %v533 = vld [vmem:[%s1 + $0xfb8] sm:$0xff]
  %v534 = vld [vmem:[%s1 + $0xfc0] sm:$0xff]
  %v535 = vld [vmem:[%s1 + $0xfc8] sm:$0xff]
  %v536 = vld [vmem:[%s1 + $0xfd0] sm:$0xff]
  %v537 = vld [vmem:[%s1 + $0xfd8] sm:$0xff]
  %v538 = vld [vmem:[%s1 + $0xfe0] sm:$0xff]
  %v539 = vld [vmem:[%s1 + $0xfe8] sm:$0xff]
  %v540 = vld [vmem:[%s1 + $0xff0] sm:$0xff]
  %v541 = vld [vmem:[%s1 + $0xff8] sm:$0xff]
  %v542 = vld [vmem:[%s2] sm:$0x3]
  %v544 = vlaneseq
  %v545 = vshrl.u32 %v544, 7
  %v546 = vsub.s32 0, %v545
  %v547 = vrot.slane %v542, %v546
  %v548 = vlaneseq
  %v549 = vshrl.u32 %v548, 7
  %v550 = vsub.s32 1, %v549
  %v551 = vrot.slane %v542, %v550
  %554 = vmatprep.subr.mxu0 %v31
  %555 = vmatpush1.msra.mxu0 %v30
  %556 = vmatprep.subr.mxu0 %v33
  %557 = vmatpush1.msra.mxu0 %v32
  %558 = vmatprep.subr.mxu0 %v35
  %559 = vmatpush1.msra.mxu0 %v34
  %560 = vmatprep.subr.mxu0 %v37
  %561 = vmatpush1.msra.mxu0 %v36
  %562 = vmatprep.subr.mxu0 %v39
  %563 = vmatpush1.msra.mxu0 %v38
  %564 = vmatprep.subr.mxu0 %v41
  %565 = vmatpush1.msra.mxu0 %v40
  %566 = vmatprep.subr.mxu0 %v43
  %567 = vmatpush1.msra.mxu0 %v42
  %568 = vmatprep.subr.mxu0 %v45
  %569 = vmatpush1.msra.mxu0 %v44
  %570 = vmatprep.subr.mxu0 %v47
  %571 = vmatpush1.msra.mxu0 %v46
  %572 = vmatprep.subr.mxu0 %v49
  %573 = vmatpush1.msra.mxu0 %v48
  %574 = vmatprep.subr.mxu0 %v51
  %575 = vmatpush1.msra.mxu0 %v50
  %576 = vmatprep.subr.mxu0 %v53
  %577 = vmatpush1.msra.mxu0 %v52
  %578 = vmatprep.subr.mxu0 %v55
  %579 = vmatpush1.msra.mxu0 %v54
  %580 = vmatprep.subr.mxu0 %v57
  %581 = vmatpush1.msra.mxu0 %v56
  %582 = vmatprep.subr.mxu0 %v59
  %583 = vmatpush1.msra.mxu0 %v58
  %584 = vmatprep.subr.mxu0 %v61
  %585 = vmatpush1.msra.mxu0 %v60
  %586 = vmatprep.subr.mxu0 %v63
  %587 = vmatpush1.msra.mxu0 %v62
  %588 = vmatprep.subr.mxu0 %v65
  %589 = vmatpush1.msra.mxu0 %v64
  %590 = vmatprep.subr.mxu0 %v67
  %591 = vmatpush1.msra.mxu0 %v66
  %592 = vmatprep.subr.mxu0 %v69
  %593 = vmatpush1.msra.mxu0 %v68
  %594 = vmatprep.subr.mxu0 %v71
  %595 = vmatpush1.msra.mxu0 %v70
  %596 = vmatprep.subr.mxu0 %v73
  %597 = vmatpush1.msra.mxu0 %v72
  %598 = vmatprep.subr.mxu0 %v75
  %599 = vmatpush1.msra.mxu0 %v74
  %600 = vmatprep.subr.mxu0 %v77
  %601 = vmatpush1.msra.mxu0 %v76
  %602 = vmatprep.subr.mxu0 %v79
  %603 = vmatpush1.msra.mxu0 %v78
  %604 = vmatprep.subr.mxu0 %v81
  %605 = vmatpush1.msra.mxu0 %v80
  %606 = vmatprep.subr.mxu0 %v83
  %607 = vmatpush1.msra.mxu0 %v82
  %608 = vmatprep.subr.mxu0 %v85
  %609 = vmatpush1.msra.mxu0 %v84
  %610 = vmatprep.subr.mxu0 %v87
  %611 = vmatpush1.msra.mxu0 %v86
  %612 = vmatprep.subr.mxu0 %v89
  %613 = vmatpush1.msra.mxu0 %v88
  %614 = vmatprep.subr.mxu0 %v91
  %615 = vmatpush1.msra.mxu0 %v90
  %616 = vmatprep.subr.mxu0 %v93
  %617 = vmatpush1.msra.mxu0 %v92
  %618 = vmatprep.mubr.f32.mxu0 %v15
  %619 = vmatmul.mubr.f32.gmra.mrb[0].mxu0 %v14
  %v620 = vpop.f32.mrb[0].mxu0
  %v621 = vadd.f32 %v547, %v620
  %v622 = vpop.f32.mrb[0].mxu0
  %v623 = vadd.f32 %v551, %v622
  %624 = vdwg.mxu0
  %625 = vmatprep.subr.mxu0 %v95
  %626 = vmatpush1.msra.mxu0 %v94
  %627 = vmatprep.subr.mxu0 %v97
  %628 = vmatpush1.msra.mxu0 %v96
  %629 = vmatprep.subr.mxu0 %v99
  %630 = vmatpush1.msra.mxu0 %v98
  %631 = vmatprep.subr.mxu0 %v101
  %632 = vmatpush1.msra.mxu0 %v100
  %633 = vmatprep.subr.mxu0 %v103
  %634 = vmatpush1.msra.mxu0 %v102
  %635 = vmatprep.subr.mxu0 %v105
  %636 = vmatpush1.msra.mxu0 %v104
  %637 = vmatprep.subr.mxu0 %v107
  %638 = vmatpush1.msra.mxu0 %v106
  %639 = vmatprep.subr.mxu0 %v109
  %640 = vmatpush1.msra.mxu0 %v108
  %641 = vmatprep.subr.mxu0 %v111
  %642 = vmatpush1.msra.mxu0 %v110
  %643 = vmatprep.subr.mxu0 %v113
  %644 = vmatpush1.msra.mxu0 %v112
  %645 = vmatprep.subr.mxu0 %v115
  %646 = vmatpush1.msra.mxu0 %v114
  %647 = vmatprep.subr.mxu0 %v117
  %648 = vmatpush1.msra.mxu0 %v116
  %649 = vmatprep.subr.mxu0 %v119
  %650 = vmatpush1.msra.mxu0 %v118
  %651 = vmatprep.subr.mxu0 %v121
  %652 = vmatpush1.msra.mxu0 %v120
  %653 = vmatprep.subr.mxu0 %v123
  %654 = vmatpush1.msra.mxu0 %v122
  %655 = vmatprep.subr.mxu0 %v125
  %656 = vmatpush1.msra.mxu0 %v124
  %657 = vmatprep.subr.mxu0 %v127
  %658 = vmatpush1.msra.mxu0 %v126
  %659 = vmatprep.subr.mxu0 %v129
  %660 = vmatpush1.msra.mxu0 %v128
  %661 = vmatprep.subr.mxu0 %v131
  %662 = vmatpush1.msra.mxu0 %v130
  %663 = vmatprep.subr.mxu0 %v133
  %664 = vmatpush1.msra.mxu0 %v132
  %665 = vmatprep.subr.mxu0 %v135
  %666 = vmatpush1.msra.mxu0 %v134
  %667 = vmatprep.subr.mxu0 %v137
  %668 = vmatpush1.msra.mxu0 %v136
  %669 = vmatprep.subr.mxu0 %v139
  %670 = vmatpush1.msra.mxu0 %v138
  %671 = vmatprep.subr.mxu0 %v141
  %672 = vmatpush1.msra.mxu0 %v140
  %673 = vmatprep.subr.mxu0 %v143
  %674 = vmatpush1.msra.mxu0 %v142
  %675 = vmatprep.subr.mxu0 %v145
  %676 = vmatpush1.msra.mxu0 %v144
  %677 = vmatprep.subr.mxu0 %v147
  %678 = vmatpush1.msra.mxu0 %v146
  %679 = vmatprep.subr.mxu0 %v149
  %680 = vmatpush1.msra.mxu0 %v148
  %681 = vmatprep.subr.mxu0 %v151
  %682 = vmatpush1.msra.mxu0 %v150
  %683 = vmatprep.subr.mxu0 %v153
  %684 = vmatpush1.msra.mxu0 %v152
  %685 = vmatprep.subr.mxu0 %v155
  %686 = vmatpush1.msra.mxu0 %v154
  %687 = vmatprep.subr.mxu0 %v157
  %688 = vmatpush1.msra.mxu0 %v156
  %689 = vmatprep.mubr.f32.mxu0 %v17
  %690 = vmatmul.mubr.f32.gmra.mrb[0].mxu0 %v16
  %v691 = vpop.f32.mrb[0].mxu0
  %v692 = vadd.f32 %v621, %v691
  %v693 = vpop.f32.mrb[0].mxu0
  %v694 = vadd.f32 %v623, %v693
  %695 = vdwg.mxu0
  %696 = vmatprep.subr.mxu0 %v159
  %697 = vmatpush1.msra.mxu0 %v158
  %698 = vmatprep.subr.mxu0 %v161
  %699 = vmatpush1.msra.mxu0 %v160
  %700 = vmatprep.subr.mxu0 %v163
  %701 = vmatpush1.msra.mxu0 %v162
  %702 = vmatprep.subr.mxu0 %v165
  %703 = vmatpush1.msra.mxu0 %v164
  %704 = vmatprep.subr.mxu0 %v167
  %705 = vmatpush1.msra.mxu0 %v166
  %706 = vmatprep.subr.mxu0 %v169
  %707 = vmatpush1.msra.mxu0 %v168
  %708 = vmatprep.subr.mxu0 %v171
  %709 = vmatpush1.msra.mxu0 %v170
  %710 = vmatprep.subr.mxu0 %v173
  %711 = vmatpush1.msra.mxu0 %v172
  %712 = vmatprep.subr.mxu0 %v175
  %713 = vmatpush1.msra.mxu0 %v174
  %714 = vmatprep.subr.mxu0 %v177
  %715 = vmatpush1.msra.mxu0 %v176
  %716 = vmatprep.subr.mxu0 %v179
  %717 = vmatpush1.msra.mxu0 %v178
  %718 = vmatprep.subr.mxu0 %v181
  %719 = vmatpush1.msra.mxu0 %v180
  %720 = vmatprep.subr.mxu0 %v183
  %721 = vmatpush1.msra.mxu0 %v182
  %722 = vmatprep.subr.mxu0 %v185
  %723 = vmatpush1.msra.mxu0 %v184
  %724 = vmatprep.subr.mxu0 %v187
  %725 = vmatpush1.msra.mxu0 %v186
  %726 = vmatprep.subr.mxu0 %v189
  %727 = vmatpush1.msra.mxu0 %v188
  %728 = vmatprep.subr.mxu0 %v191
  %729 = vmatpush1.msra.mxu0 %v190
  %730 = vmatprep.subr.mxu0 %v193
  %731 = vmatpush1.msra.mxu0 %v192
  %732 = vmatprep.subr.mxu0 %v195
  %733 = vmatpush1.msra.mxu0 %v194
  %734 = vmatprep.subr.mxu0 %v197
  %735 = vmatpush1.msra.mxu0 %v196
  %736 = vmatprep.subr.mxu0 %v199
  %737 = vmatpush1.msra.mxu0 %v198
  %738 = vmatprep.subr.mxu0 %v201
  %739 = vmatpush1.msra.mxu0 %v200
  %740 = vmatprep.subr.mxu0 %v203
  %741 = vmatpush1.msra.mxu0 %v202
  %742 = vmatprep.subr.mxu0 %v205
  %743 = vmatpush1.msra.mxu0 %v204
  %744 = vmatprep.subr.mxu0 %v207
  %745 = vmatpush1.msra.mxu0 %v206
  %746 = vmatprep.subr.mxu0 %v209
  %747 = vmatpush1.msra.mxu0 %v208
  %748 = vmatprep.subr.mxu0 %v211
  %749 = vmatpush1.msra.mxu0 %v210
  %750 = vmatprep.subr.mxu0 %v213
  %751 = vmatpush1.msra.mxu0 %v212
  %752 = vmatprep.subr.mxu0 %v215
  %753 = vmatpush1.msra.mxu0 %v214
  %754 = vmatprep.subr.mxu0 %v217
  %755 = vmatpush1.msra.mxu0 %v216
  %756 = vmatprep.subr.mxu0 %v219
  %757 = vmatpush1.msra.mxu0 %v218
  %758 = vmatprep.subr.mxu0 %v221
  %759 = vmatpush1.msra.mxu0 %v220
  %760 = vmatprep.mubr.f32.mxu0 %v19
  %761 = vmatmul.mubr.f32.gmra.mrb[0].mxu0 %v18
  %v762 = vpop.f32.mrb[0].mxu0
  %v763 = vadd.f32 %v692, %v762
  %v764 = vpop.f32.mrb[0].mxu0
  %v765 = vadd.f32 %v694, %v764
  %766 = vdwg.mxu0
  %767 = vmatprep.subr.mxu0 %v223
  %768 = vmatpush1.msra.mxu0 %v222
  %769 = vmatprep.subr.mxu0 %v225
  %770 = vmatpush1.msra.mxu0 %v224
  %771 = vmatprep.subr.mxu0 %v227
  %772 = vmatpush1.msra.mxu0 %v226
  %773 = vmatprep.subr.mxu0 %v229
  %774 = vmatpush1.msra.mxu0 %v228
  %775 = vmatprep.subr.mxu0 %v231
  %776 = vmatpush1.msra.mxu0 %v230
  %777 = vmatprep.subr.mxu0 %v233
  %778 = vmatpush1.msra.mxu0 %v232
  %779 = vmatprep.subr.mxu0 %v235
  %780 = vmatpush1.msra.mxu0 %v234
  %781 = vmatprep.subr.mxu0 %v237
  %782 = vmatpush1.msra.mxu0 %v236
  %783 = vmatprep.subr.mxu0 %v239
  %784 = vmatpush1.msra.mxu0 %v238
  %785 = vmatprep.subr.mxu0 %v241
  %786 = vmatpush1.msra.mxu0 %v240
  %787 = vmatprep.subr.mxu0 %v243
  %788 = vmatpush1.msra.mxu0 %v242
  %789 = vmatprep.subr.mxu0 %v245
  %790 = vmatpush1.msra.mxu0 %v244
  %791 = vmatprep.subr.mxu0 %v247
  %792 = vmatpush1.msra.mxu0 %v246
  %793 = vmatprep.subr.mxu0 %v249
  %794 = vmatpush1.msra.mxu0 %v248
  %795 = vmatprep.subr.mxu0 %v251
  %796 = vmatpush1.msra.mxu0 %v250
  %797 = vmatprep.subr.mxu0 %v253
  %798 = vmatpush1.msra.mxu0 %v252
  %799 = vmatprep.subr.mxu0 %v255
  %800 = vmatpush1.msra.mxu0 %v254
  %801 = vmatprep.subr.mxu0 %v257
  %802 = vmatpush1.msra.mxu0 %v256
  %803 = vmatprep.subr.mxu0 %v259
  %804 = vmatpush1.msra.mxu0 %v258
  %805 = vmatprep.subr.mxu0 %v261
  %806 = vmatpush1.msra.mxu0 %v260
  %807 = vmatprep.subr.mxu0 %v263
  %808 = vmatpush1.msra.mxu0 %v262
  %809 = vmatprep.subr.mxu0 %v265
  %810 = vmatpush1.msra.mxu0 %v264
  %811 = vmatprep.subr.mxu0 %v267
  %812 = vmatpush1.msra.mxu0 %v266
  %813 = vmatprep.subr.mxu0 %v269
  %814 = vmatpush1.msra.mxu0 %v268
  %815 = vmatprep.subr.mxu0 %v271
  %816 = vmatpush1.msra.mxu0 %v270
  %817 = vmatprep.subr.mxu0 %v273
  %818 = vmatpush1.msra.mxu0 %v272
  %819 = vmatprep.subr.mxu0 %v275
  %820 = vmatpush1.msra.mxu0 %v274
  %821 = vmatprep.subr.mxu0 %v277
  %822 = vmatpush1.msra.mxu0 %v276
  %823 = vmatprep.subr.mxu0 %v279
  %824 = vmatpush1.msra.mxu0 %v278
  %825 = vmatprep.subr.mxu0 %v281
  %826 = vmatpush1.msra.mxu0 %v280
  %827 = vmatprep.subr.mxu0 %v283
  %828 = vmatpush1.msra.mxu0 %v282
  %829 = vmatprep.subr.mxu0 %v285
  %830 = vmatpush1.msra.mxu0 %v284
  %831 = vmatprep.mubr.f32.mxu0 %v21
  %832 = vmatmul.mubr.f32.gmra.mrb[0].mxu0 %v20
  %v833 = vpop.f32.mrb[0].mxu0
  %v834 = vadd.f32 %v763, %v833
  %v835 = vpop.f32.mrb[0].mxu0
  %v836 = vadd.f32 %v765, %v835
  %837 = vdwg.mxu0
  %838 = vmatprep.subr.mxu0 %v287
  %839 = vmatpush1.msra.mxu0 %v286
  %840 = vmatprep.subr.mxu0 %v289
  %841 = vmatpush1.msra.mxu0 %v288
  %842 = vmatprep.subr.mxu0 %v291
  %843 = vmatpush1.msra.mxu0 %v290
  %844 = vmatprep.subr.mxu0 %v293
  %845 = vmatpush1.msra.mxu0 %v292
  %846 = vmatprep.subr.mxu0 %v295
  %847 = vmatpush1.msra.mxu0 %v294
  %848 = vmatprep.subr.mxu0 %v297
  %849 = vmatpush1.msra.mxu0 %v296
  %850 = vmatprep.subr.mxu0 %v299
  %851 = vmatpush1.msra.mxu0 %v298
  %852 = vmatprep.subr.mxu0 %v301
  %853 = vmatpush1.msra.mxu0 %v300
  %854 = vmatprep.subr.mxu0 %v303
  %855 = vmatpush1.msra.mxu0 %v302
  %856 = vmatprep.subr.mxu0 %v305
  %857 = vmatpush1.msra.mxu0 %v304
  %858 = vmatprep.subr.mxu0 %v307
  %859 = vmatpush1.msra.mxu0 %v306
  %860 = vmatprep.subr.mxu0 %v309
  %861 = vmatpush1.msra.mxu0 %v308
  %862 = vmatprep.subr.mxu0 %v311
  %863 = vmatpush1.msra.mxu0 %v310
  %864 = vmatprep.subr.mxu0 %v313
  %865 = vmatpush1.msra.mxu0 %v312
  %866 = vmatprep.subr.mxu0 %v315
  %867 = vmatpush1.msra.mxu0 %v314
  %868 = vmatprep.subr.mxu0 %v317
  %869 = vmatpush1.msra.mxu0 %v316
  %870 = vmatprep.subr.mxu0 %v319
  %871 = vmatpush1.msra.mxu0 %v318
  %872 = vmatprep.subr.mxu0 %v321
  %873 = vmatpush1.msra.mxu0 %v320
  %874 = vmatprep.subr.mxu0 %v323
  %875 = vmatpush1.msra.mxu0 %v322
  %876 = vmatprep.subr.mxu0 %v325
  %877 = vmatpush1.msra.mxu0 %v324
  %878 = vmatprep.subr.mxu0 %v327
  %879 = vmatpush1.msra.mxu0 %v326
  %880 = vmatprep.subr.mxu0 %v329
  %881 = vmatpush1.msra.mxu0 %v328
  %882 = vmatprep.subr.mxu0 %v331
  %883 = vmatpush1.msra.mxu0 %v330
  %884 = vmatprep.subr.mxu0 %v333
  %885 = vmatpush1.msra.mxu0 %v332
  %886 = vmatprep.subr.mxu0 %v335
  %887 = vmatpush1.msra.mxu0 %v334
  %888 = vmatprep.subr.mxu0 %v337
  %889 = vmatpush1.msra.mxu0 %v336
  %890 = vmatprep.subr.mxu0 %v339
  %891 = vmatpush1.msra.mxu0 %v338
  %892 = vmatprep.subr.mxu0 %v341
  %893 = vmatpush1.msra.mxu0 %v340
  %894 = vmatprep.subr.mxu0 %v343
  %895 = vmatpush1.msra.mxu0 %v342
  %896 = vmatprep.subr.mxu0 %v345
  %897 = vmatpush1.msra.mxu0 %v344
  %898 = vmatprep.subr.mxu0 %v347
  %899 = vmatpush1.msra.mxu0 %v346
  %900 = vmatprep.subr.mxu0 %v349
  %901 = vmatpush1.msra.mxu0 %v348
  %902 = vmatprep.mubr.f32.mxu0 %v23
  %903 = vmatmul.mubr.f32.gmra.mrb[0].mxu0 %v22
  %v904 = vpop.f32.mrb[0].mxu0
  %v905 = vadd.f32 %v834, %v904
  %v906 = vpop.f32.mrb[0].mxu0
  %v907 = vadd.f32 %v836, %v906
  %908 = vdwg.mxu0
  %909 = vmatprep.subr.mxu0 %v351
  %910 = vmatpush1.msra.mxu0 %v350
  %911 = vmatprep.subr.mxu0 %v353
  %912 = vmatpush1.msra.mxu0 %v352
  %913 = vmatprep.subr.mxu0 %v355
  %914 = vmatpush1.msra.mxu0 %v354
  %915 = vmatprep.subr.mxu0 %v357
  %916 = vmatpush1.msra.mxu0 %v356
  %917 = vmatprep.subr.mxu0 %v359
  %918 = vmatpush1.msra.mxu0 %v358
  %919 = vmatprep.subr.mxu0 %v361
  %920 = vmatpush1.msra.mxu0 %v360
  %921 = vmatprep.subr.mxu0 %v363
  %922 = vmatpush1.msra.mxu0 %v362
  %923 = vmatprep.subr.mxu0 %v365
  %924 = vmatpush1.msra.mxu0 %v364
  %925 = vmatprep.subr.mxu0 %v367
  %926 = vmatpush1.msra.mxu0 %v366
  %927 = vmatprep.subr.mxu0 %v369
  %928 = vmatpush1.msra.mxu0 %v368
  %929 = vmatprep.subr.mxu0 %v371
  %930 = vmatpush1.msra.mxu0 %v370
  %931 = vmatprep.subr.mxu0 %v373
  %932 = vmatpush1.msra.mxu0 %v372
  %933 = vmatprep.subr.mxu0 %v375
  %934 = vmatpush1.msra.mxu0 %v374
  %935 = vmatprep.subr.mxu0 %v377
  %936 = vmatpush1.msra.mxu0 %v376
  %937 = vmatprep.subr.mxu0 %v379
  %938 = vmatpush1.msra.mxu0 %v378
  %939 = vmatprep.subr.mxu0 %v381
  %940 = vmatpush1.msra.mxu0 %v380
  %941 = vmatprep.subr.mxu0 %v383
  %942 = vmatpush1.msra.mxu0 %v382
  %943 = vmatprep.subr.mxu0 %v385
  %944 = vmatpush1.msra.mxu0 %v384
  %945 = vmatprep.subr.mxu0 %v387
  %946 = vmatpush1.msra.mxu0 %v386
  %947 = vmatprep.subr.mxu0 %v389
  %948 = vmatpush1.msra.mxu0 %v388
  %949 = vmatprep.subr.mxu0 %v391
  %950 = vmatpush1.msra.mxu0 %v390
  %951 = vmatprep.subr.mxu0 %v393
  %952 = vmatpush1.msra.mxu0 %v392
  %953 = vmatprep.subr.mxu0 %v395
  %954 = vmatpush1.msra.mxu0 %v394
  %955 = vmatprep.subr.mxu0 %v397
  %956 = vmatpush1.msra.mxu0 %v396
  %957 = vmatprep.subr.mxu0 %v399
  %958 = vmatpush1.msra.mxu0 %v398
  %959 = vmatprep.subr.mxu0 %v401
  %960 = vmatpush1.msra.mxu0 %v400
  %961 = vmatprep.subr.mxu0 %v403
  %962 = vmatpush1.msra.mxu0 %v402
  %963 = vmatprep.subr.mxu0 %v405
  %964 = vmatpush1.msra.mxu0 %v404
  %965 = vmatprep.subr.mxu0 %v407
  %966 = vmatpush1.msra.mxu0 %v406
  %967 = vmatprep.subr.mxu0 %v409
  %968 = vmatpush1.msra.mxu0 %v408
  %969 = vmatprep.subr.mxu0 %v411
  %970 = vmatpush1.msra.mxu0 %v410
  %971 = vmatprep.subr.mxu0 %v413
  %972 = vmatpush1.msra.mxu0 %v412
  %973 = vmatprep.mubr.f32.mxu0 %v25
  %974 = vmatmul.mubr.f32.gmra.mrb[0].mxu0 %v24
  %v975 = vpop.f32.mrb[0].mxu0
  %v976 = vadd.f32 %v905, %v975
  %v977 = vpop.f32.mrb[0].mxu0
  %v978 = vadd.f32 %v907, %v977
  %979 = vdwg.mxu0
  %980 = vmatprep.subr.mxu0 %v415
  %981 = vmatpush1.msra.mxu0 %v414
  %982 = vmatprep.subr.mxu0 %v417
  %983 = vmatpush1.msra.mxu0 %v416
  %984 = vmatprep.subr.mxu0 %v419
  %985 = vmatpush1.msra.mxu0 %v418
  %986 = vmatprep.subr.mxu0 %v421
  %987 = vmatpush1.msra.mxu0 %v420
  %988 = vmatprep.subr.mxu0 %v423
  %989 = vmatpush1.msra.mxu0 %v422
  %990 = vmatprep.subr.mxu0 %v425
  %991 = vmatpush1.msra.mxu0 %v424
  %992 = vmatprep.subr.mxu0 %v427
  %993 = vmatpush1.msra.mxu0 %v426
  %994 = vmatprep.subr.mxu0 %v429
  %995 = vmatpush1.msra.mxu0 %v428
  %996 = vmatprep.subr.mxu0 %v431
  %997 = vmatpush1.msra.mxu0 %v430
  %998 = vmatprep.subr.mxu0 %v433
  %999 = vmatpush1.msra.mxu0 %v432
  %1000 = vmatprep.subr.mxu0 %v435
  %1001 = vmatpush1.msra.mxu0 %v434
  %1002 = vmatprep.subr.mxu0 %v437
  %1003 = vmatpush1.msra.mxu0 %v436
  %1004 = vmatprep.subr.mxu0 %v439
  %1005 = vmatpush1.msra.mxu0 %v438
  %1006 = vmatprep.subr.mxu0 %v441
  %1007 = vmatpush1.msra.mxu0 %v440
  %1008 = vmatprep.subr.mxu0 %v443
  %1009 = vmatpush1.msra.mxu0 %v442
  %1010 = vmatprep.subr.mxu0 %v445
  %1011 = vmatpush1.msra.mxu0 %v444
  %1012 = vmatprep.subr.mxu0 %v447
  %1013 = vmatpush1.msra.mxu0 %v446
  %1014 = vmatprep.subr.mxu0 %v449
  %1015 = vmatpush1.msra.mxu0 %v448
  %1016 = vmatprep.subr.mxu0 %v451
  %1017 = vmatpush1.msra.mxu0 %v450
  %1018 = vmatprep.subr.mxu0 %v453
  %1019 = vmatpush1.msra.mxu0 %v452
  %1020 = vmatprep.subr.mxu0 %v455
  %1021 = vmatpush1.msra.mxu0 %v454
  %1022 = vmatprep.subr.mxu0 %v457
  %1023 = vmatpush1.msra.mxu0 %v456
  %1024 = vmatprep.subr.mxu0 %v459
  %1025 = vmatpush1.msra.mxu0 %v458
  %1026 = vmatprep.subr.mxu0 %v461
  %1027 = vmatpush1.msra.mxu0 %v460
  %1028 = vmatprep.subr.mxu0 %v463
  %1029 = vmatpush1.msra.mxu0 %v462
  %1030 = vmatprep.subr.mxu0 %v465
  %1031 = vmatpush1.msra.mxu0 %v464
  %1032 = vmatprep.subr.mxu0 %v467
  %1033 = vmatpush1.msra.mxu0 %v466
  %1034 = vmatprep.subr.mxu0 %v469
  %1035 = vmatpush1.msra.mxu0 %v468
  %1036 = vmatprep.subr.mxu0 %v471
  %1037 = vmatpush1.msra.mxu0 %v470
  %1038 = vmatprep.subr.mxu0 %v473
  %1039 = vmatpush1.msra.mxu0 %v472
  %1040 = vmatprep.subr.mxu0 %v475
  %1041 = vmatpush1.msra.mxu0 %v474
  %1042 = vmatprep.subr.mxu0 %v477
  %1043 = vmatpush1.msra.mxu0 %v476
  %1044 = vmatprep.mubr.f32.mxu0 %v27
  %1045 = vmatmul.mubr.f32.gmra.mrb[0].mxu0 %v26
  %v1046 = vpop.f32.mrb[0].mxu0
  %v1047 = vadd.f32 %v976, %v1046
  %v1048 = vpop.f32.mrb[0].mxu0
  %v1049 = vadd.f32 %v978, %v1048
  %1050 = vdwg.mxu0
  %1051 = vmatprep.subr.mxu0 %v479
  %1052 = vmatpush1.msra.mxu0 %v478
  %1053 = vmatprep.subr.mxu0 %v481
  %1054 = vmatpush1.msra.mxu0 %v480
  %1055 = vmatprep.subr.mxu0 %v483
  %1056 = vmatpush1.msra.mxu0 %v482
  %1057 = vmatprep.subr.mxu0 %v485
  %1058 = vmatpush1.msra.mxu0 %v484
  %1059 = vmatprep.subr.mxu0 %v487
  %1060 = vmatpush1.msra.mxu0 %v486
  %1061 = vmatprep.subr.mxu0 %v489
  %1062 = vmatpush1.msra.mxu0 %v488
  %1063 = vmatprep.subr.mxu0 %v491
  %1064 = vmatpush1.msra.mxu0 %v490
  %1065 = vmatprep.subr.mxu0 %v493
  %1066 = vmatpush1.msra.mxu0 %v492
  %1067 = vmatprep.subr.mxu0 %v495
  %1068 = vmatpush1.msra.mxu0 %v494
  %1069 = vmatprep.subr.mxu0 %v497
  %1070 = vmatpush1.msra.mxu0 %v496
  %1071 = vmatprep.subr.mxu0 %v499
  %1072 = vmatpush1.msra.mxu0 %v498
  %1073 = vmatprep.subr.mxu0 %v501
  %1074 = vmatpush1.msra.mxu0 %v500
  %1075 = vmatprep.subr.mxu0 %v503
  %1076 = vmatpush1.msra.mxu0 %v502
  %1077 = vmatprep.subr.mxu0 %v505
  %1078 = vmatpush1.msra.mxu0 %v504
  %1079 = vmatprep.subr.mxu0 %v507
  %1080 = vmatpush1.msra.mxu0 %v506
  %1081 = vmatprep.subr.mxu0 %v509
  %1082 = vmatpush1.msra.mxu0 %v508
  %1083 = vmatprep.subr.mxu0 %v511
  %1084 = vmatpush1.msra.mxu0 %v510
  %1085 = vmatprep.subr.mxu0 %v513
  %1086 = vmatpush1.msra.mxu0 %v512
  %1087 = vmatprep.subr.mxu0 %v515
  %1088 = vmatpush1.msra.mxu0 %v514
  %1089 = vmatprep.subr.mxu0 %v517
  %1090 = vmatpush1.msra.mxu0 %v516
  %1091 = vmatprep.subr.mxu0 %v519
  %1092 = vmatpush1.msra.mxu0 %v518
  %1093 = vmatprep.subr.mxu0 %v521
  %1094 = vmatpush1.msra.mxu0 %v520
  %1095 = vmatprep.subr.mxu0 %v523
  %1096 = vmatpush1.msra.mxu0 %v522
  %1097 = vmatprep.subr.mxu0 %v525
  %1098 = vmatpush1.msra.mxu0 %v524
  %1099 = vmatprep.subr.mxu0 %v527
  %1100 = vmatpush1.msra.mxu0 %v526
  %1101 = vmatprep.subr.mxu0 %v529
  %1102 = vmatpush1.msra.mxu0 %v528
  %1103 = vmatprep.subr.mxu0 %v531
  %1104 = vmatpush1.msra.mxu0 %v530
  %1105 = vmatprep.subr.mxu0 %v533
  %1106 = vmatpush1.msra.mxu0 %v532
  %1107 = vmatprep.subr.mxu0 %v535
  %1108 = vmatpush1.msra.mxu0 %v534
  %1109 = vmatprep.subr.mxu0 %v537
  %1110 = vmatpush1.msra.mxu0 %v536
  %1111 = vmatprep.subr.mxu0 %v539
  %1112 = vmatpush1.msra.mxu0 %v538
  %1113 = vmatprep.subr.mxu0 %v541
  %1114 = vmatpush1.msra.mxu0 %v540
  %1115 = vmatprep.mubr.f32.mxu0 %v29
  %1116 = vmatmul.mubr.f32.gmra.mrb[0].mxu0 %v28
  %v1117 = vpop.f32.mrb[0].mxu0
  %v1118 = vadd.f32 %v1047, %v1117
  %v1119 = vpop.f32.mrb[0].mxu0
  %v1120 = vadd.f32 %v1049, %v1119
  %1121 = vdwg.mxu0
  %v1122 = vmax.f32 %v1118, 0.0
  %v1123 = vmax.f32 %v1120, 0.0
  %1124 = vst [vmem:[%s3] sm:$0xff] %v1122
  %1125 = vst [vmem:[%s3 + $0x8] sm:$0xff] %v1123
  // Predicated region
  $region14: #{encoder_forward.7} parent=0 // pred_check
    _
  $region15: #{encoder_forward.7} parent=0 // pred_check_branch
    %1127 = sbr.rel (0) target = $region17
  $region16: #{encoder_forward.7} parent=0 // pred_region
    _
  $region17: #{encoder_forward.7} parent=0 // pred_fallthru
    _
  // Predicated region
  $region18: #{encoder_forward.7} parent=0 // pred_check
    _
  $region19: #{encoder_forward.7} parent=0 // pred_check_branch
    %1129 = sbr.rel (0) target = $region21
  $region20: #{encoder_forward.7} parent=0 // pred_region
    _
  $region21: #{encoder_forward.7} parent=0 // pred_fallthru
    _

</llo_original>
